<compile_context>
chip_gen: v7x
topology: tpu7x:2x2x1
jax: 0.10.0
libtpu: 0.0.40
codegen_flags: <defaults>
</compile_context>

<pallas_src>
import functools

import jax
import jax.numpy as jnp
from jax.experimental import pallas as pl
from jax.experimental.pallas import tpu as pltpu

EPS = 1e-5
LANE = 128


# ------------------------------ small helpers -------------------------------

def _round_up(x, m):
    return (x + m - 1) // m * m


def _pad_ch(x, cp):
    """Zero-pad the last (channel) dim of x up to cp (lane-dense layout)."""
    c = x.shape[-1]
    if c == cp:
        return x
    return jnp.pad(x, [(0, 0)] * (x.ndim - 1) + [(0, cp - c)])


def calc_outpad(ks, pad, stride, target):
    return (target - ks + 2 * pad) % stride


# ---------------- static planning of the phase decomposition ----------------

class _TConvPlan:
    """Decompose ConvTranspose2d(k, stride, pad, outpad) into stride**2
    stride-1 tap "convolutions" (sub-pixel trick).

    For output phase r (= oh % stride), output row m:
        y[stride*m + r] = sum_j x[m + off0 + j - pad_lo] * W[tap_table[r][j]]
    over a common KT-tap window (tap index -1 == structurally-zero tap), where
    x is the *undilated* input zero-padded by (pad_lo, pad_hi).
    """

    def __init__(self, k, stride, pad, outpad, in_size, out_size):
        assert out_size == stride * (in_size - 1) + k - 2 * pad + outpad
        assert out_size % stride == 0, (
            "phase-decomposed ConvTranspose requires out_size % stride == 0")
        self.stride = stride
        self.Lm = out_size // stride
        taps = []
        for r in range(stride):
            t0 = (r + pad) % stride
            c = (r + pad) // stride
            n = (k - t0 + stride - 1) // stride if k > t0 else 0
            taps.append({c - u: t0 + stride * u for u in range(n)})
        nonempty = [d for d in taps if d]
        d_min = min(min(d) for d in nonempty)
        d_max = max(max(d) for d in nonempty)
        self.KT = d_max - d_min + 1
        self.pad_lo = max(0, -d_min)
        self.off0 = d_min + self.pad_lo
        self.pad_hi = max(
            0, self.Lm + self.off0 + self.KT - 1 - in_size - self.pad_lo)
        self.tap_table = [
            [taps[r].get(d_min + j, -1) for j in range(self.KT)]
            for r in range(stride)
        ]


def _phase_weights(w_ct, plan, cin_p, cout_p):
    """PyTorch ConvTranspose2d weight (Cin, Cout, k, k) ->
    (stride**2, KT*KT*cin_p, cout_p) bf16 per-phase GEMM weights (zero-padded
    channels and zero-padded structural taps)."""
    cin, cout = w_ct.shape[0], w_ct.shape[1]
    s, KT = plan.stride, plan.KT
    w = jnp.zeros((s * s, KT, KT, cin_p, cout_p), jnp.float32)
    for rh in range(s):
        for rw in range(s):
            for jh in range(KT):
                th = plan.tap_table[rh][jh]
                if th < 0:
                    continue
                for jw in range(KT):
                    tw = plan.tap_table[rw][jw]
                    if tw < 0:
                        continue
                    w = w.at[rh * s + rw, jh, jw, :cin, :cout].set(
                        w_ct[:, :, th, tw])
    return w.reshape(s * s, KT * KT * cin_p, cout_p).astype(jnp.bfloat16)


# ------------------------------ Pallas kernels -------------------------------

def _conv_phase_kernel(KT, off0, L, xq_ref, w_ref, y_ref, st_ref):
    """One (image, phase) tile: KT*KT shifted bf16 GEMMs accumulated in f32,
    plus per-tile per-channel sum / sum-of-squares for the tiled BatchNorm."""
    cin_p = xq_ref.shape[-1]
    cout_p = y_ref.shape[-1]
    acc = jnp.zeros((L * L, cout_p), jnp.float32)
    for jh in range(KT):
        for jw in range(KT):
            xs = xq_ref[off0 + jh:off0 + jh + L,
                        off0 + jw:off0 + jw + L, :].reshape(L * L, cin_p)
            wt = w_ref[(jh * KT + jw) * cin_p:(jh * KT + jw + 1) * cin_p, :]
            acc = acc + jnp.dot(xs, wt, preferred_element_type=jnp.float32)
    y_ref[...] = acc
    st_ref[0:1, :] = jnp.sum(acc, axis=0, keepdims=True)
    st_ref[1:2, :] = jnp.sum(acc * acc, axis=0, keepdims=True)


def _bn_relu_kernel(y_ref, sc_ref, sh_ref, o_ref):
    o_ref[...] = jnp.maximum(
        y_ref[...] * sc_ref[...] + sh_ref[...], 0.0).astype(o_ref.dtype)


def _bn_convskip_relu_kernel(y_ref, sc_ref, sh_ref, xs_ref, wsk_ref, bsk_ref,
                             o_ref):
    """BN2 + ReLU, fused with the 1x1/stride-s skip ConvTranspose + residual
    add + final ReLU.  The skip GEMM only lands on output phase (0,0); other
    phases only receive the skip bias."""
    x2 = jnp.maximum(y_ref[...] * sc_ref[...] + sh_ref[...], 0.0)
    o_ref[...] = jnp.maximum(x2 + bsk_ref[...], 0.0)

    @pl.when(pl.program_id(1) == 0)
    def _():
        sk = jnp.dot(xs_ref[...], wsk_ref[...],
                     preferred_element_type=jnp.float32)
        o_ref[...] = jnp.maximum(x2 + sk + bsk_ref[...], 0.0)


def _bn_addskip_relu_kernel(y_ref, sc_ref, sh_ref, xs_ref, o_ref):
    """BN2 + ReLU + identity skip (pure elementwise add) + final ReLU."""
    x2 = jnp.maximum(y_ref[...] * sc_ref[...] + sh_ref[...], 0.0)
    o_ref[...] = jnp.maximum(x2 + xs_ref[...].astype(jnp.float32), 0.0)


# ------------------------------ pallas_call wrappers -------------------------

_PAR2 = pltpu.CompilerParams(dimension_semantics=("parallel", "parallel"))


def _conv_phase_call(xq, w_ph, L, KT, off0):
    N, Hq, Wq, cin_p = xq.shape
    P, _, cout_p = w_ph.shape
    kern = functools.partial(_conv_phase_kernel, KT, off0, L)
    return pl.pallas_call(
        kern,
        grid=(N, P),
        in_specs=[
            pl.BlockSpec((None, Hq, Wq, cin_p), lambda n, ph: (n, 0, 0, 0)),
            pl.BlockSpec((None, KT * KT * cin_p, cout_p),
                         lambda n, ph: (ph, 0, 0)),
        ],
        out_specs=[
            pl.BlockSpec((None, None, L * L, cout_p),
                         lambda n, ph: (ph, n, 0, 0)),
            pl.BlockSpec((None, None, 2, cout_p), lambda n, ph: (ph, n, 0, 0)),
        ],
        out_shape=[
            jax.ShapeDtypeStruct((P, N, L * L, cout_p), jnp.float32),
            jax.ShapeDtypeStruct((P, N, 2, cout_p), jnp.float32),
        ],
        compiler_params=_PAR2,
    )(xq, w_ph)


def _bn_relu_call(y_ph, scale, shift, out_dtype):
    P, N, M, C = y_ph.shape
    return pl.pallas_call(
        _bn_relu_kernel,
        grid=(N, P),
        in_specs=[
            pl.BlockSpec((None, None, M, C), lambda n, ph: (ph, n, 0, 0)),
            pl.BlockSpec((1, C), lambda n, ph: (0, 0)),
            pl.BlockSpec((1, C), lambda n, ph: (0, 0)),
        ],
        out_specs=pl.BlockSpec((None, None, M, C), lambda n, ph: (ph, n, 0, 0)),
        out_shape=jax.ShapeDtypeStruct((P, N, M, C), out_dtype),
        compiler_params=_PAR2,
    )(y_ph, scale, shift)


def _bn_convskip_relu_call(y_ph, scale, shift, xs, wsk, bsk):
    P, N, M, C = y_ph.shape
    Ci = xs.shape[-1]
    return pl.pallas_call(
        _bn_convskip_relu_kernel,
        grid=(N, P),
        in_specs=[
            pl.BlockSpec((None, None, M, C), lambda n, ph: (ph, n, 0, 0)),
            pl.BlockSpec((1, C), lambda n, ph: (0, 0)),
            pl.BlockSpec((1, C), lambda n, ph: (0, 0)),
            pl.BlockSpec((None, M, Ci), lambda n, ph: (n, 0, 0)),
            pl.BlockSpec((Ci, C), lambda n, ph: (0, 0)),
            pl.BlockSpec((1, C), lambda n, ph: (0, 0)),
        ],
        out_specs=pl.BlockSpec((None, None, M, C), lambda n, ph: (ph, n, 0, 0)),
        out_shape=jax.ShapeDtypeStruct((P, N, M, C), jnp.float32),
        compiler_params=_PAR2,
    )(y_ph, scale, shift, xs, wsk, bsk)


def _bn_addskip_relu_call(y_ph, scale, shift, xs):
    P, N, M, C = y_ph.shape
    return pl.pallas_call(
        _bn_addskip_relu_kernel,
        grid=(N, P),
        in_specs=[
            pl.BlockSpec((None, None, M, C), lambda n, ph: (ph, n, 0, 0)),
            pl.BlockSpec((1, C), lambda n, ph: (0, 0)),
            pl.BlockSpec((1, C), lambda n, ph: (0, 0)),
            pl.BlockSpec((None, M, C), lambda n, ph: (n, 0, 0)),
        ],
        out_specs=pl.BlockSpec((None, None, M, C), lambda n, ph: (ph, n, 0, 0)),
        out_shape=jax.ShapeDtypeStruct((P, N, M, C), jnp.float32),
        compiler_params=_PAR2,
    )(y_ph, scale, shift, xs)


def _bn_scale_shift(stats, gamma, beta, m_total):
    """Reduce the per-tile (sum, sumsq) partials (tiny array) and fold BN into
    a single per-channel scale/shift for the finalize pass."""
    cp = stats.shape[-1]
    s1 = jnp.sum(stats[:, :, 0, :], axis=(0, 1))
    s2 = jnp.sum(stats[:, :, 1, :], axis=(0, 1))
    mu = s1 / m_total
    # TODO(synk): E[y^2]-mu^2 can cancel for very large activations; switch to
    # a centered second pass / Welford merge if activations stop being BN-scale.
    var = jnp.maximum(s2 / m_total - mu * mu, 0.0)
    g = _pad_ch(gamma.reshape(1, -1).astype(jnp.float32), cp)
    b = _pad_ch(beta.reshape(1, -1).astype(jnp.float32), cp)
    scale = g * jax.lax.rsqrt(var + EPS).reshape(1, -1)
    shift = b - mu.reshape(1, -1) * scale
    return scale, shift


# ------------------------------ forward pass ---------------------------------

def inv_res_block_forward(x_nchw, params, *, insize, outsize, in_ch, out_ch,
                          kernel_size, stride):
    assert kernel_size % 2 == 1, "Need odd kernel to make same conv"
    k, p = kernel_size, kernel_size // 2
    cin_p = _round_up(in_ch, LANE)
    cout_p = _round_up(out_ch, LANE)
    N = x_nchw.shape[0]

    x = jnp.transpose(x_nchw, (0, 2, 3, 1)).astype(jnp.float32)   # NHWC
    x_pc = _pad_ch(x, cin_p)                                      # lane-dense

    # ---- convtrans1: ConvTranspose2d(in,in,k,stride=1,pad) + BN + ReLU ----
    plan1 = _TConvPlan(k, 1, p, calc_outpad(k, p, 1, insize), insize, insize)
    xq1 = jnp.pad(x_pc, ((0, 0), (plan1.pad_lo, plan1.pad_hi),
                         (plan1.pad_lo, plan1.pad_hi), (0, 0)))
    xq1 = xq1.astype(jnp.bfloat16)
    w1 = _phase_weights(params["w1"], plan1, cin_p, cin_p)
    y1, st1 = _conv_phase_call(xq1, w1, plan1.Lm, plan1.KT, plan1.off0)
    sc1, sh1 = _bn_scale_shift(st1, params["g1"], params["b1"],
                               float(N * insize * insize))
    x1 = _bn_relu_call(y1, sc1, sh1, jnp.bfloat16)       # (1, N, Hi*Wi, cin_p)
    x1 = x1.reshape(N, insize, insize, cin_p)

    # ---- convtrans2: ConvTranspose2d(in,out,k,stride,pad) + BN (+ ReLU) ----
    plan2 = _TConvPlan(k, stride, p, calc_outpad(k, p, stride, outsize),
                       insize, outsize)
    xq2 = jnp.pad(x1, ((0, 0), (plan2.pad_lo, plan2.pad_hi),
                       (plan2.pad_lo, plan2.pad_hi), (0, 0)))
    w2 = _phase_weights(params["w2"], plan2, cin_p, cout_p)
    y2, st2 = _conv_phase_call(xq2, w2, plan2.Lm, plan2.KT, plan2.off0)
    sc2, sh2 = _bn_scale_shift(st2, params["g2"], params["b2"],
                               float(N * outsize * outsize))

    # ---- fused finalize: BN2 + ReLU + skip + final ReLU ----
    Lm2 = plan2.Lm
    if stride != 1 or in_ch != out_ch:
        xs = x_pc
        if Lm2 != insize:  # align the skip input with the per-phase grid
            grow = max(0, Lm2 - insize)
            xs = jnp.pad(xs, ((0, 0), (0, grow), (0, grow), (0, 0)))
            xs = xs[:, :Lm2, :Lm2, :]
        xs = xs.reshape(N, Lm2 * Lm2, cin_p).astype(jnp.bfloat16)
        wsk = jnp.zeros((cin_p, cout_p), jnp.float32)
        wsk = wsk.at[:in_ch, :out_ch].set(params["wskip"][:, :, 0, 0])
        wsk = wsk.astype(jnp.bfloat16)
        bsk = _pad_ch(params["bskip"].reshape(1, -1).astype(jnp.float32),
                      cout_p)
        out_ph = _bn_convskip_relu_call(y2, sc2, sh2, xs, wsk, bsk)
    else:
        assert Lm2 == insize and cin_p == cout_p
        xs = x_pc.reshape(N, Lm2 * Lm2, cin_p)
        out_ph = _bn_addskip_relu_call(y2, sc2, sh2, xs)

    # ---- interleave phases back to (N, Ho, Wo, C), crop channels, NCHW ----
    s = stride
    out = out_ph.reshape(s, s, N, Lm2, Lm2, cout_p)
    out = jnp.transpose(out, (2, 3, 0, 4, 1, 5))
    out = out.reshape(N, outsize, outsize, cout_p)
    # TODO(synk): for very large per-image slabs (H*W*C beyond a few MiB) add a
    # second row-tiling level inside the per-image block.
    return jnp.transpose(out[..., :out_ch], (0, 3, 1, 2))


# ------------------------- pure-JAX reference (f32) --------------------------

def _ref_conv_transpose(x, w_ct, stride, pad, outpad, bias=None):
    """Reference ConvTranspose2d via dilate+pad+flipped-kernel conv (NHWC)."""
    N, H, W, C = x.shape
    cout, k = w_ct.shape[1], w_ct.shape[2]
    if stride > 1:
        xd = jnp.zeros((N, stride * (H - 1) + 1, stride * (W - 1) + 1, C),
                       x.dtype)
        xd = xd.at[:, ::stride, ::stride, :].set(x)
    else:
        xd = x
    P = k - 1 - pad
    xp = jnp.pad(xd, ((0, 0), (P, P + outpad), (P, P + outpad), (0, 0)))
    Ho = stride * (H - 1) + k - 2 * pad + outpad
    wf = jnp.transpose(w_ct[:, :, ::-1, ::-1], (2, 3, 0, 1))   # (k,k,Cin,Cout)
    y = jnp.zeros((N, Ho, Ho, cout), jnp.float32)
    for i in range(k):
        for j in range(k):
            y = y + jnp.einsum('nhwc,cd->nhwd', xp[:, i:i + Ho, j:j + Ho, :],
                               wf[i, j])
    if bias is not None:
        y = y + bias.reshape(1, 1, 1, -1)
    return y


def _ref_bn_relu(y, gamma, beta):
    mu = jnp.mean(y, axis=(0, 1, 2), keepdims=True)
    var = jnp.mean(jnp.square(y - mu), axis=(0, 1, 2), keepdims=True)
    yn = (y - mu) * jax.lax.rsqrt(var + EPS)
    return jnp.maximum(yn * gamma.reshape(1, 1, 1, -1)
                       + beta.reshape(1, 1, 1, -1), 0.0)


def ref_forward(x_nchw, params, *, insize, outsize, in_ch, out_ch,
                kernel_size, stride):
    k, p = kernel_size, kernel_size // 2
    b16 = lambda a: a.astype(jnp.bfloat16).astype(jnp.float32)
    x = jnp.transpose(x_nchw, (0, 2, 3, 1)).astype(jnp.float32)
    xb = b16(x)
    y1 = _ref_conv_transpose(xb, b16(params["w1"]), 1, p,
                             calc_outpad(k, p, 1, insize))
    x1 = b16(_ref_bn_relu(y1, params["g1"], params["b1"]))
    y2 = _ref_conv_transpose(x1, b16(params["w2"]), stride, p,
                             calc_outpad(k, p, stride, outsize))
    x2 = _ref_bn_relu(y2, params["g2"], params["b2"])
    if stride != 1 or in_ch != out_ch:
        xsk = _ref_conv_transpose(xb, b16(params["wskip"]), stride, 0,
                                  calc_outpad(1, 0, stride, outsize),
                                  bias=params["bskip"])
    else:
        xsk = x
    out = jnp.maximum(x2 + xsk, 0.0)
    return jnp.transpose(out, (0, 3, 1, 2))


# ------------------------------------ main ------------------------------------

if __name__ == "__main__":
    key = jax.random.PRNGKey(0)
    k_par1, k_x1, k_par2, k_x2 = jax.random.split(key, 4)

    def make_params(pkey, in_ch, out_ch, k, conv_skip):
        ks = jax.random.split(pkey, 8)
        p = {
            "w1": 0.1 * jax.random.normal(ks[0], (in_ch, in_ch, k, k), jnp.float32),
            "g1": 1.0 + 0.1 * jax.random.normal(ks[1], (in_ch,), jnp.float32),
            "b1": 0.1 * jax.random.normal(ks[2], (in_ch,), jnp.float32),
            "w2": 0.1 * jax.random.normal(ks[3], (in_ch, out_ch, k, k), jnp.float32),
            "g2": 1.0 + 0.1 * jax.random.normal(ks[4], (out_ch,), jnp.float32),
            "b2": 0.1 * jax.random.normal(ks[5], (out_ch,), jnp.float32),
        }
        if conv_skip:
            p["wskip"] = 0.1 * jax.random.normal(ks[6], (in_ch, out_ch, 1, 1),
                                                 jnp.float32)
            p["bskip"] = 0.1 * jax.random.normal(ks[7], (out_ch,), jnp.float32)
        return p

    # --- config 1: upsampling block (8 -> 16 spatial, 4 -> 8 ch, k=3, stride=2)
    N, IN_CH, OUT_CH, INSIZE, OUTSIZE, K, STRIDE = 2, 4, 8, 8, 16, 3, 2
    params = make_params(k_par1, IN_CH, OUT_CH, K, True)
    x = jax.random.normal(k_x1, (N, IN_CH, INSIZE, INSIZE), jnp.float32)
    fwd = jax.jit(functools.partial(
        inv_res_block_forward, insize=INSIZE, outsize=OUTSIZE, in_ch=IN_CH,
        out_ch=OUT_CH, kernel_size=K, stride=STRIDE))
    y = fwd(x, params)
    jax.block_until_ready(y)
    assert y.shape == (N, OUT_CH, OUTSIZE, OUTSIZE)
    assert bool(jnp.all(y >= 0.0))                     # final ReLU
    y_ref = ref_forward(x, params, insize=INSIZE, outsize=OUTSIZE, in_ch=IN_CH,
                        out_ch=OUT_CH, kernel_size=K, stride=STRIDE)
    err = float(jnp.max(jnp.abs(y - y_ref)))
    assert err < 3e-2, f"config-1 mismatch vs reference: max|err|={err:.4f}"

    # --- config 2: identity-skip block (stride 1, in_ch == out_ch)
    params_i = make_params(k_par2, 4, 4, K, False)
    x_i = jax.random.normal(k_x2, (2, 4, 8, 8), jnp.float32)
    fwd_i = jax.jit(functools.partial(
        inv_res_block_forward, insize=8, outsize=8, in_ch=4, out_ch=4,
        kernel_size=K, stride=1))
    y_i = fwd_i(x_i, params_i)
    jax.block_until_ready(y_i)
    assert y_i.shape == (2, 4, 8, 8)
    y_iref = ref_forward(x_i, params_i, insize=8, outsize=8, in_ch=4, out_ch=4,
                         kernel_size=K, stride=1)
    err_i = float(jnp.max(jnp.abs(y_i - y_iref)))
    assert err_i < 3e-2, f"config-2 mismatch vs reference: max|err|={err_i:.4f}"

    print("KERNEL_OK")
</pallas_src>

<mosaic_0001>
module attributes {stable_mosaic.version = 11 : i64} {
  func.func @_conv_phase_kernel(%arg0: i32, %arg1: i32, %arg2: memref<1x10x10x128xbf16, #tpu.memory_space<vmem>>, %arg3: memref<1x1152x128xbf16, #tpu.memory_space<vmem>>, %arg4: memref<1x1x64x128xf32, #tpu.memory_space<vmem>>, %arg5: memref<1x1x2x128xf32, #tpu.memory_space<vmem>>) attributes {dimension_semantics = [#tpu.dimension_semantics<parallel>, #tpu.dimension_semantics<parallel>], iteration_bounds = array<i64: 2, 1>, scalar_prefetch = 0 : i64, scratch_operands = 0 : i64, tpu.core_type = #tpu.core_type<tc>, window_params = [{transform_indices = @transform_0, window_bounds = array<i64: 1, 10, 10, 128>}, {transform_indices = @transform_1, window_bounds = array<i64: 1, 1152, 128>}, {transform_indices = @transform_2, window_bounds = array<i64: 1, 1, 64, 128>}, {transform_indices = @transform_3, window_bounds = array<i64: 1, 1, 2, 128>}]} {
    %cst = arith.constant 0.000000e+00 : f32
    %0 = vector.broadcast %cst : f32 to vector<64x128xf32>
    %c0 = arith.constant 0 : index
    %c0_0 = arith.constant 0 : index
    %c0_1 = arith.constant 0 : index
    %c0_2 = arith.constant 0 : index
    %1 = vector.load %arg2[%c0, %c0_0, %c0_1, %c0_2] : memref<1x10x10x128xbf16, #tpu.memory_space<vmem>>, vector<1x8x8x128xbf16>
    %2 = vector.shape_cast %1 : vector<1x8x8x128xbf16> to vector<8x8x128xbf16>
    %3 = vector.shape_cast %2 : vector<8x8x128xbf16> to vector<64x128xbf16>
    %c0_3 = arith.constant 0 : index
    %c0_4 = arith.constant 0 : index
    %c0_5 = arith.constant 0 : index
    %4 = vector.load %arg3[%c0_3, %c0_4, %c0_5] : memref<1x1152x128xbf16, #tpu.memory_space<vmem>>, vector<1x128x128xbf16>
    %5 = vector.shape_cast %4 : vector<1x128x128xbf16> to vector<128x128xbf16>
    %cst_6 = arith.constant dense<0.000000e+00> : vector<64x128xf32>
    %6 = tpu.matmul %3, %5, %cst_6 {dimension_numbers = #tpu.dot_dimension_numbers<[1], [0], [0], [1], [0, 0, 1, 1], [], []>} : vector<64x128xbf16>, vector<128x128xbf16>, vector<64x128xf32> -> vector<64x128xf32>
    %7 = arith.addf %0, %6 : vector<64x128xf32>
    %c0_7 = arith.constant 0 : index
    %c0_8 = arith.constant 0 : index
    %c1 = arith.constant 1 : index
    %c0_9 = arith.constant 0 : index
    %8 = vector.load %arg2[%c0_7, %c0_8, %c1, %c0_9] : memref<1x10x10x128xbf16, #tpu.memory_space<vmem>>, vector<1x8x8x128xbf16>
    %9 = vector.shape_cast %8 : vector<1x8x8x128xbf16> to vector<8x8x128xbf16>
    %10 = vector.shape_cast %9 : vector<8x8x128xbf16> to vector<64x128xbf16>
    %c0_10 = arith.constant 0 : index
    %c128 = arith.constant 128 : index
    %c0_11 = arith.constant 0 : index
    %11 = vector.load %arg3[%c0_10, %c128, %c0_11] : memref<1x1152x128xbf16, #tpu.memory_space<vmem>>, vector<1x128x128xbf16>
    %12 = vector.shape_cast %11 : vector<1x128x128xbf16> to vector<128x128xbf16>
    %cst_12 = arith.constant dense<0.000000e+00> : vector<64x128xf32>
    %13 = tpu.matmul %10, %12, %cst_12 {dimension_numbers = #tpu.dot_dimension_numbers<[1], [0], [0], [1], [0, 0, 1, 1], [], []>} : vector<64x128xbf16>, vector<128x128xbf16>, vector<64x128xf32> -> vector<64x128xf32>
    %14 = arith.addf %7, %13 : vector<64x128xf32>
    %c0_13 = arith.constant 0 : index
    %c0_14 = arith.constant 0 : index
    %c2 = arith.constant 2 : index
    %c0_15 = arith.constant 0 : index
    %15 = vector.load %arg2[%c0_13, %c0_14, %c2, %c0_15] : memref<1x10x10x128xbf16, #tpu.memory_space<vmem>>, vector<1x8x8x128xbf16>
    %16 = vector.shape_cast %15 : vector<1x8x8x128xbf16> to vector<8x8x128xbf16>
    %17 = vector.shape_cast %16 : vector<8x8x128xbf16> to vector<64x128xbf16>
    %c0_16 = arith.constant 0 : index
    %c256 = arith.constant 256 : index
    %c0_17 = arith.constant 0 : index
    %18 = vector.load %arg3[%c0_16, %c256, %c0_17] : memref<1x1152x128xbf16, #tpu.memory_space<vmem>>, vector<1x128x128xbf16>
    %19 = vector.shape_cast %18 : vector<1x128x128xbf16> to vector<128x128xbf16>
    %cst_18 = arith.constant dense<0.000000e+00> : vector<64x128xf32>
    %20 = tpu.matmul %17, %19, %cst_18 {dimension_numbers = #tpu.dot_dimension_numbers<[1], [0], [0], [1], [0, 0, 1, 1], [], []>} : vector<64x128xbf16>, vector<128x128xbf16>, vector<64x128xf32> -> vector<64x128xf32>
    %21 = arith.addf %14, %20 : vector<64x128xf32>
    %c0_19 = arith.constant 0 : index
    %c1_20 = arith.constant 1 : index
    %c0_21 = arith.constant 0 : index
    %c0_22 = arith.constant 0 : index
    %22 = vector.load %arg2[%c0_19, %c1_20, %c0_21, %c0_22] : memref<1x10x10x128xbf16, #tpu.memory_space<vmem>>, vector<1x8x8x128xbf16>
    %23 = vector.shape_cast %22 : vector<1x8x8x128xbf16> to vector<8x8x128xbf16>
    %24 = vector.shape_cast %23 : vector<8x8x128xbf16> to vector<64x128xbf16>
    %c0_23 = arith.constant 0 : index
    %c384 = arith.constant 384 : index
    %c0_24 = arith.constant 0 : index
    %25 = vector.load %arg3[%c0_23, %c384, %c0_24] : memref<1x1152x128xbf16, #tpu.memory_space<vmem>>, vector<1x128x128xbf16>
    %26 = vector.shape_cast %25 : vector<1x128x128xbf16> to vector<128x128xbf16>
    %cst_25 = arith.constant dense<0.000000e+00> : vector<64x128xf32>
    %27 = tpu.matmul %24, %26, %cst_25 {dimension_numbers = #tpu.dot_dimension_numbers<[1], [0], [0], [1], [0, 0, 1, 1], [], []>} : vector<64x128xbf16>, vector<128x128xbf16>, vector<64x128xf32> -> vector<64x128xf32>
    %28 = arith.addf %21, %27 : vector<64x128xf32>
    %c0_26 = arith.constant 0 : index
    %c1_27 = arith.constant 1 : index
    %c1_28 = arith.constant 1 : index
    %c0_29 = arith.constant 0 : index
    %29 = vector.load %arg2[%c0_26, %c1_27, %c1_28, %c0_29] : memref<1x10x10x128xbf16, #tpu.memory_space<vmem>>, vector<1x8x8x128xbf16>
    %30 = vector.shape_cast %29 : vector<1x8x8x128xbf16> to vector<8x8x128xbf16>
    %31 = vector.shape_cast %30 : vector<8x8x128xbf16> to vector<64x128xbf16>
    %c0_30 = arith.constant 0 : index
    %c512 = arith.constant 512 : index
    %c0_31 = arith.constant 0 : index
    %32 = vector.load %arg3[%c0_30, %c512, %c0_31] : memref<1x1152x128xbf16, #tpu.memory_space<vmem>>, vector<1x128x128xbf16>
    %33 = vector.shape_cast %32 : vector<1x128x128xbf16> to vector<128x128xbf16>
    %cst_32 = arith.constant dense<0.000000e+00> : vector<64x128xf32>
    %34 = tpu.matmul %31, %33, %cst_32 {dimension_numbers = #tpu.dot_dimension_numbers<[1], [0], [0], [1], [0, 0, 1, 1], [], []>} : vector<64x128xbf16>, vector<128x128xbf16>, vector<64x128xf32> -> vector<64x128xf32>
    %35 = arith.addf %28, %34 : vector<64x128xf32>
    %c0_33 = arith.constant 0 : index
    %c1_34 = arith.constant 1 : index
    %c2_35 = arith.constant 2 : index
    %c0_36 = arith.constant 0 : index
    %36 = vector.load %arg2[%c0_33, %c1_34, %c2_35, %c0_36] : memref<1x10x10x128xbf16, #tpu.memory_space<vmem>>, vector<1x8x8x128xbf16>
    %37 = vector.shape_cast %36 : vector<1x8x8x128xbf16> to vector<8x8x128xbf16>
    %38 = vector.shape_cast %37 : vector<8x8x128xbf16> to vector<64x128xbf16>
    %c0_37 = arith.constant 0 : index
    %c640 = arith.constant 640 : index
    %c0_38 = arith.constant 0 : index
    %39 = vector.load %arg3[%c0_37, %c640, %c0_38] : memref<1x1152x128xbf16, #tpu.memory_space<vmem>>, vector<1x128x128xbf16>
    %40 = vector.shape_cast %39 : vector<1x128x128xbf16> to vector<128x128xbf16>
    %cst_39 = arith.constant dense<0.000000e+00> : vector<64x128xf32>
    %41 = tpu.matmul %38, %40, %cst_39 {dimension_numbers = #tpu.dot_dimension_numbers<[1], [0], [0], [1], [0, 0, 1, 1], [], []>} : vector<64x128xbf16>, vector<128x128xbf16>, vector<64x128xf32> -> vector<64x128xf32>
    %42 = arith.addf %35, %41 : vector<64x128xf32>
    %c0_40 = arith.constant 0 : index
    %c2_41 = arith.constant 2 : index
    %c0_42 = arith.constant 0 : index
    %c0_43 = arith.constant 0 : index
    %43 = vector.load %arg2[%c0_40, %c2_41, %c0_42, %c0_43] : memref<1x10x10x128xbf16, #tpu.memory_space<vmem>>, vector<1x8x8x128xbf16>
    %44 = vector.shape_cast %43 : vector<1x8x8x128xbf16> to vector<8x8x128xbf16>
    %45 = vector.shape_cast %44 : vector<8x8x128xbf16> to vector<64x128xbf16>
    %c0_44 = arith.constant 0 : index
    %c768 = arith.constant 768 : index
    %c0_45 = arith.constant 0 : index
    %46 = vector.load %arg3[%c0_44, %c768, %c0_45] : memref<1x1152x128xbf16, #tpu.memory_space<vmem>>, vector<1x128x128xbf16>
    %47 = vector.shape_cast %46 : vector<1x128x128xbf16> to vector<128x128xbf16>
    %cst_46 = arith.constant dense<0.000000e+00> : vector<64x128xf32>
    %48 = tpu.matmul %45, %47, %cst_46 {dimension_numbers = #tpu.dot_dimension_numbers<[1], [0], [0], [1], [0, 0, 1, 1], [], []>} : vector<64x128xbf16>, vector<128x128xbf16>, vector<64x128xf32> -> vector<64x128xf32>
    %49 = arith.addf %42, %48 : vector<64x128xf32>
    %c0_47 = arith.constant 0 : index
    %c2_48 = arith.constant 2 : index
    %c1_49 = arith.constant 1 : index
    %c0_50 = arith.constant 0 : index
    %50 = vector.load %arg2[%c0_47, %c2_48, %c1_49, %c0_50] : memref<1x10x10x128xbf16, #tpu.memory_space<vmem>>, vector<1x8x8x128xbf16>
    %51 = vector.shape_cast %50 : vector<1x8x8x128xbf16> to vector<8x8x128xbf16>
    %52 = vector.shape_cast %51 : vector<8x8x128xbf16> to vector<64x128xbf16>
    %c0_51 = arith.constant 0 : index
    %c896 = arith.constant 896 : index
    %c0_52 = arith.constant 0 : index
    %53 = vector.load %arg3[%c0_51, %c896, %c0_52] : memref<1x1152x128xbf16, #tpu.memory_space<vmem>>, vector<1x128x128xbf16>
    %54 = vector.shape_cast %53 : vector<1x128x128xbf16> to vector<128x128xbf16>
    %cst_53 = arith.constant dense<0.000000e+00> : vector<64x128xf32>
    %55 = tpu.matmul %52, %54, %cst_53 {dimension_numbers = #tpu.dot_dimension_numbers<[1], [0], [0], [1], [0, 0, 1, 1], [], []>} : vector<64x128xbf16>, vector<128x128xbf16>, vector<64x128xf32> -> vector<64x128xf32>
    %56 = arith.addf %49, %55 : vector<64x128xf32>
    %c0_54 = arith.constant 0 : index
    %c2_55 = arith.constant 2 : index
    %c2_56 = arith.constant 2 : index
    %c0_57 = arith.constant 0 : index
    %57 = vector.load %arg2[%c0_54, %c2_55, %c2_56, %c0_57] : memref<1x10x10x128xbf16, #tpu.memory_space<vmem>>, vector<1x8x8x128xbf16>
    %58 = vector.shape_cast %57 : vector<1x8x8x128xbf16> to vector<8x8x128xbf16>
    %59 = vector.shape_cast %58 : vector<8x8x128xbf16> to vector<64x128xbf16>
    %c0_58 = arith.constant 0 : index
    %c1024 = arith.constant 1024 : index
    %c0_59 = arith.constant 0 : index
    %60 = vector.load %arg3[%c0_58, %c1024, %c0_59] : memref<1x1152x128xbf16, #tpu.memory_space<vmem>>, vector<1x128x128xbf16>
    %61 = vector.shape_cast %60 : vector<1x128x128xbf16> to vector<128x128xbf16>
    %cst_60 = arith.constant dense<0.000000e+00> : vector<64x128xf32>
    %62 = tpu.matmul %59, %61, %cst_60 {dimension_numbers = #tpu.dot_dimension_numbers<[1], [0], [0], [1], [0, 0, 1, 1], [], []>} : vector<64x128xbf16>, vector<128x128xbf16>, vector<64x128xf32> -> vector<64x128xf32>
    %63 = arith.addf %56, %62 : vector<64x128xf32>
    %c0_61 = arith.constant 0 : index
    %c0_62 = arith.constant 0 : index
    %c0_63 = arith.constant 0 : index
    %c0_64 = arith.constant 0 : index
    %64 = vector.load %arg4[%c0_61, %c0_62, %c0_63, %c0_64] : memref<1x1x64x128xf32, #tpu.memory_space<vmem>>, vector<1x1x64x128xf32>
    %65 = vector.shape_cast %64 : vector<1x1x64x128xf32> to vector<64x128xf32>
    %66 = vector.shape_cast %63 : vector<64x128xf32> to vector<1x1x64x128xf32>
    tpu.vector_store %arg4[%c0_61, %c0_62, %c0_63, %c0_64], %66 {strides = array<i32>} : memref<1x1x64x128xf32, #tpu.memory_space<vmem>>, vector<1x1x64x128xf32>,
    %cst_65 = arith.constant dense<0.000000e+00> : vector<128xf32>
    %67 = vector.multi_reduction <add>, %63, %cst_65 [0] : vector<64x128xf32> to vector<128xf32>
    %68 = vector.shape_cast %67 : vector<128xf32> to vector<1x128xf32>
    %c0_66 = arith.constant 0 : index
    %c0_67 = arith.constant 0 : index
    %c0_68 = arith.constant 0 : index
    %c0_69 = arith.constant 0 : index
    %69 = vector.load %arg5[%c0_66, %c0_67, %c0_68, %c0_69] : memref<1x1x2x128xf32, #tpu.memory_space<vmem>>, vector<1x1x1x128xf32>
    %70 = vector.shape_cast %69 : vector<1x1x1x128xf32> to vector<1x128xf32>
    %71 = vector.shape_cast %68 : vector<1x128xf32> to vector<1x1x1x128xf32>
    tpu.vector_store %arg5[%c0_66, %c0_67, %c0_68, %c0_69], %71 {strides = array<i32>} : memref<1x1x2x128xf32, #tpu.memory_space<vmem>>, vector<1x1x1x128xf32>,
    %72 = arith.mulf %63, %63 : vector<64x128xf32>
    %cst_70 = arith.constant dense<0.000000e+00> : vector<128xf32>
    %73 = vector.multi_reduction <add>, %72, %cst_70 [0] : vector<64x128xf32> to vector<128xf32>
    %74 = vector.shape_cast %73 : vector<128xf32> to vector<1x128xf32>
    %c0_71 = arith.constant 0 : index
    %c0_72 = arith.constant 0 : index
    %c1_73 = arith.constant 1 : index
    %c0_74 = arith.constant 0 : index
    %75 = vector.load %arg5[%c0_71, %c0_72, %c1_73, %c0_74] : memref<1x1x2x128xf32, #tpu.memory_space<vmem>>, vector<1x1x1x128xf32>
    %76 = vector.shape_cast %75 : vector<1x1x1x128xf32> to vector<1x128xf32>
    %77 = vector.shape_cast %74 : vector<1x128xf32> to vector<1x1x1x128xf32>
    tpu.vector_store %arg5[%c0_71, %c0_72, %c1_73, %c0_74], %77 {strides = array<i32>} : memref<1x1x2x128xf32, #tpu.memory_space<vmem>>, vector<1x1x1x128xf32>,
    return
  }
  func.func @transform_0(%arg0: i32, %arg1: i32) -> (i32, i32, i32, i32) {
    %c0_i32 = arith.constant 0 : i32
    %c0_i32_0 = arith.constant 0 : i32
    %c0_i32_1 = arith.constant 0 : i32
    %c0_i32_2 = arith.constant 0 : i32
    return %arg0, %c0_i32, %c0_i32_0, %c0_i32_1 : i32, i32, i32, i32
  }
  func.func @transform_1(%arg0: i32, %arg1: i32) -> (i32, i32, i32) {
    %c0_i32 = arith.constant 0 : i32
    %c0_i32_0 = arith.constant 0 : i32
    %c0_i32_1 = arith.constant 0 : i32
    return %arg1, %c0_i32, %c0_i32_0 : i32, i32, i32
  }
  func.func @transform_2(%arg0: i32, %arg1: i32) -> (i32, i32, i32, i32) {
    %c0_i32 = arith.constant 0 : i32
    %c0_i32_0 = arith.constant 0 : i32
    %c0_i32_1 = arith.constant 0 : i32
    return %arg1, %arg0, %c0_i32, %c0_i32_0 : i32, i32, i32, i32
  }
  func.func @transform_3(%arg0: i32, %arg1: i32) -> (i32, i32, i32, i32) {
    %c0_i32 = arith.constant 0 : i32
    %c0_i32_0 = arith.constant 0 : i32
    %c0_i32_1 = arith.constant 0 : i32
    return %arg1, %arg0, %c0_i32, %c0_i32_0 : i32, i32, i32, i32
  }
}

module attributes {stable_mosaic.version = 11 : i64} {
  func.func @_bn_relu_kernel(%arg0: i32, %arg1: i32, %arg2: memref<1x1x64x128xf32, #tpu.memory_space<vmem>>, %arg3: memref<1x128xf32, #tpu.memory_space<vmem>>, %arg4: memref<1x128xf32, #tpu.memory_space<vmem>>, %arg5: memref<1x1x64x128xbf16, #tpu.memory_space<vmem>>) attributes {dimension_semantics = [#tpu.dimension_semantics<parallel>, #tpu.dimension_semantics<parallel>], iteration_bounds = array<i64: 2, 1>, scalar_prefetch = 0 : i64, scratch_operands = 0 : i64, tpu.core_type = #tpu.core_type<tc>, window_params = [{transform_indices = @transform_0, window_bounds = array<i64: 1, 1, 64, 128>}, {pipeline_mode = #tpu.pipeline_mode<synchronous>, transform_indices = @transform_1, window_bounds = array<i64: 1, 128>}, {pipeline_mode = #tpu.pipeline_mode<synchronous>, transform_indices = @transform_2, window_bounds = array<i64: 1, 128>}, {transform_indices = @transform_3, window_bounds = array<i64: 1, 1, 64, 128>}]} {
    %c0 = arith.constant 0 : index
    %c0_0 = arith.constant 0 : index
    %c0_1 = arith.constant 0 : index
    %c0_2 = arith.constant 0 : index
    %0 = vector.load %arg2[%c0, %c0_0, %c0_1, %c0_2] : memref<1x1x64x128xf32, #tpu.memory_space<vmem>>, vector<1x1x64x128xf32>
    %1 = vector.shape_cast %0 : vector<1x1x64x128xf32> to vector<64x128xf32>
    %c0_3 = arith.constant 0 : index
    %c0_4 = arith.constant 0 : index
    %2 = vector.load %arg3[%c0_3, %c0_4] : memref<1x128xf32, #tpu.memory_space<vmem>>, vector<1x128xf32>
    %3 = vector.broadcast %2 : vector<1x128xf32> to vector<64x128xf32>
    %4 = arith.mulf %1, %3 : vector<64x128xf32>
    %c0_5 = arith.constant 0 : index
    %c0_6 = arith.constant 0 : index
    %5 = vector.load %arg4[%c0_5, %c0_6] : memref<1x128xf32, #tpu.memory_space<vmem>>, vector<1x128xf32>
    %6 = vector.broadcast %5 : vector<1x128xf32> to vector<64x128xf32>
    %7 = arith.addf %4, %6 : vector<64x128xf32>
    %cst = arith.constant 0.000000e+00 : f32
    %8 = vector.broadcast %cst : f32 to vector<64x128xf32>
    %9 = arith.maximumf %7, %8 : vector<64x128xf32>
    %10 = arith.truncf %9 : vector<64x128xf32> to vector<64x128xbf16>
    %c0_7 = arith.constant 0 : index
    %c0_8 = arith.constant 0 : index
    %c0_9 = arith.constant 0 : index
    %c0_10 = arith.constant 0 : index
    %11 = vector.load %arg5[%c0_7, %c0_8, %c0_9, %c0_10] : memref<1x1x64x128xbf16, #tpu.memory_space<vmem>>, vector<1x1x64x128xbf16>
    %12 = vector.shape_cast %11 : vector<1x1x64x128xbf16> to vector<64x128xbf16>
    %13 = vector.shape_cast %10 : vector<64x128xbf16> to vector<1x1x64x128xbf16>
    tpu.vector_store %arg5[%c0_7, %c0_8, %c0_9, %c0_10], %13 {strides = array<i32>} : memref<1x1x64x128xbf16, #tpu.memory_space<vmem>>, vector<1x1x64x128xbf16>,
    return
  }
  func.func @transform_0(%arg0: i32, %arg1: i32) -> (i32, i32, i32, i32) {
    %c0_i32 = arith.constant 0 : i32
    %c0_i32_0 = arith.constant 0 : i32
    %c0_i32_1 = arith.constant 0 : i32
    return %arg1, %arg0, %c0_i32, %c0_i32_0 : i32, i32, i32, i32
  }
  func.func @transform_1(%arg0: i32, %arg1: i32) -> (i32, i32) {
    %c0_i32 = arith.constant 0 : i32
    %c0_i32_0 = arith.constant 0 : i32
    %c0_i32_1 = arith.constant 0 : i32
    return %c0_i32, %c0_i32_0 : i32, i32
  }
  func.func @transform_2(%arg0: i32, %arg1: i32) -> (i32, i32) {
    %c0_i32 = arith.constant 0 : i32
    %c0_i32_0 = arith.constant 0 : i32
    %c0_i32_1 = arith.constant 0 : i32
    return %c0_i32, %c0_i32_0 : i32, i32
  }
  func.func @transform_3(%arg0: i32, %arg1: i32) -> (i32, i32, i32, i32) {
    %c0_i32 = arith.constant 0 : i32
    %c0_i32_0 = arith.constant 0 : i32
    %c0_i32_1 = arith.constant 0 : i32
    return %arg1, %arg0, %c0_i32, %c0_i32_0 : i32, i32, i32, i32
  }
}

module attributes {stable_mosaic.version = 11 : i64} {
  func.func @_conv_phase_kernel(%arg0: i32, %arg1: i32, %arg2: memref<1x9x9x128xbf16, #tpu.memory_space<vmem>>, %arg3: memref<1x512x128xbf16, #tpu.memory_space<vmem>>, %arg4: memref<1x1x64x128xf32, #tpu.memory_space<vmem>>, %arg5: memref<1x1x2x128xf32, #tpu.memory_space<vmem>>) attributes {dimension_semantics = [#tpu.dimension_semantics<parallel>, #tpu.dimension_semantics<parallel>], iteration_bounds = array<i64: 2, 4>, scalar_prefetch = 0 : i64, scratch_operands = 0 : i64, tpu.core_type = #tpu.core_type<tc>, window_params = [{transform_indices = @transform_0, window_bounds = array<i64: 1, 9, 9, 128>}, {transform_indices = @transform_1, window_bounds = array<i64: 1, 512, 128>}, {transform_indices = @transform_2, window_bounds = array<i64: 1, 1, 64, 128>}, {transform_indices = @transform_3, window_bounds = array<i64: 1, 1, 2, 128>}]} {
    %cst = arith.constant 0.000000e+00 : f32
    %0 = vector.broadcast %cst : f32 to vector<64x128xf32>
    %c0 = arith.constant 0 : index
    %c0_0 = arith.constant 0 : index
    %c0_1 = arith.constant 0 : index
    %c0_2 = arith.constant 0 : index
    %1 = vector.load %arg2[%c0, %c0_0, %c0_1, %c0_2] : memref<1x9x9x128xbf16, #tpu.memory_space<vmem>>, vector<1x8x8x128xbf16>
    %2 = vector.shape_cast %1 : vector<1x8x8x128xbf16> to vector<8x8x128xbf16>
    %3 = vector.shape_cast %2 : vector<8x8x128xbf16> to vector<64x128xbf16>
    %c0_3 = arith.constant 0 : index
    %c0_4 = arith.constant 0 : index
    %c0_5 = arith.constant 0 : index
    %4 = vector.load %arg3[%c0_3, %c0_4, %c0_5] : memref<1x512x128xbf16, #tpu.memory_space<vmem>>, vector<1x128x128xbf16>
    %5 = vector.shape_cast %4 : vector<1x128x128xbf16> to vector<128x128xbf16>
    %cst_6 = arith.constant dense<0.000000e+00> : vector<64x128xf32>
    %6 = tpu.matmul %3, %5, %cst_6 {dimension_numbers = #tpu.dot_dimension_numbers<[1], [0], [0], [1], [0, 0, 1, 1], [], []>} : vector<64x128xbf16>, vector<128x128xbf16>, vector<64x128xf32> -> vector<64x128xf32>
    %7 = arith.addf %0, %6 : vector<64x128xf32>
    %c0_7 = arith.constant 0 : index
    %c0_8 = arith.constant 0 : index
    %c1 = arith.constant 1 : index
    %c0_9 = arith.constant 0 : index
    %8 = vector.load %arg2[%c0_7, %c0_8, %c1, %c0_9] : memref<1x9x9x128xbf16, #tpu.memory_space<vmem>>, vector<1x8x8x128xbf16>
    %9 = vector.shape_cast %8 : vector<1x8x8x128xbf16> to vector<8x8x128xbf16>
    %10 = vector.shape_cast %9 : vector<8x8x128xbf16> to vector<64x128xbf16>
    %c0_10 = arith.constant 0 : index
    %c128 = arith.constant 128 : index
    %c0_11 = arith.constant 0 : index
    %11 = vector.load %arg3[%c0_10, %c128, %c0_11] : memref<1x512x128xbf16, #tpu.memory_space<vmem>>, vector<1x128x128xbf16>
    %12 = vector.shape_cast %11 : vector<1x128x128xbf16> to vector<128x128xbf16>
    %cst_12 = arith.constant dense<0.000000e+00> : vector<64x128xf32>
    %13 = tpu.matmul %10, %12, %cst_12 {dimension_numbers = #tpu.dot_dimension_numbers<[1], [0], [0], [1], [0, 0, 1, 1], [], []>} : vector<64x128xbf16>, vector<128x128xbf16>, vector<64x128xf32> -> vector<64x128xf32>
    %14 = arith.addf %7, %13 : vector<64x128xf32>
    %c0_13 = arith.constant 0 : index
    %c1_14 = arith.constant 1 : index
    %c0_15 = arith.constant 0 : index
    %c0_16 = arith.constant 0 : index
    %15 = vector.load %arg2[%c0_13, %c1_14, %c0_15, %c0_16] : memref<1x9x9x128xbf16, #tpu.memory_space<vmem>>, vector<1x8x8x128xbf16>
    %16 = vector.shape_cast %15 : vector<1x8x8x128xbf16> to vector<8x8x128xbf16>
    %17 = vector.shape_cast %16 : vector<8x8x128xbf16> to vector<64x128xbf16>
    %c0_17 = arith.constant 0 : index
    %c256 = arith.constant 256 : index
    %c0_18 = arith.constant 0 : index
    %18 = vector.load %arg3[%c0_17, %c256, %c0_18] : memref<1x512x128xbf16, #tpu.memory_space<vmem>>, vector<1x128x128xbf16>
    %19 = vector.shape_cast %18 : vector<1x128x128xbf16> to vector<128x128xbf16>
    %cst_19 = arith.constant dense<0.000000e+00> : vector<64x128xf32>
    %20 = tpu.matmul %17, %19, %cst_19 {dimension_numbers = #tpu.dot_dimension_numbers<[1], [0], [0], [1], [0, 0, 1, 1], [], []>} : vector<64x128xbf16>, vector<128x128xbf16>, vector<64x128xf32> -> vector<64x128xf32>
    %21 = arith.addf %14, %20 : vector<64x128xf32>
    %c0_20 = arith.constant 0 : index
    %c1_21 = arith.constant 1 : index
    %c1_22 = arith.constant 1 : index
    %c0_23 = arith.constant 0 : index
    %22 = vector.load %arg2[%c0_20, %c1_21, %c1_22, %c0_23] : memref<1x9x9x128xbf16, #tpu.memory_space<vmem>>, vector<1x8x8x128xbf16>
    %23 = vector.shape_cast %22 : vector<1x8x8x128xbf16> to vector<8x8x128xbf16>
    %24 = vector.shape_cast %23 : vector<8x8x128xbf16> to vector<64x128xbf16>
    %c0_24 = arith.constant 0 : index
    %c384 = arith.constant 384 : index
    %c0_25 = arith.constant 0 : index
    %25 = vector.load %arg3[%c0_24, %c384, %c0_25] : memref<1x512x128xbf16, #tpu.memory_space<vmem>>, vector<1x128x128xbf16>
    %26 = vector.shape_cast %25 : vector<1x128x128xbf16> to vector<128x128xbf16>
    %cst_26 = arith.constant dense<0.000000e+00> : vector<64x128xf32>
    %27 = tpu.matmul %24, %26, %cst_26 {dimension_numbers = #tpu.dot_dimension_numbers<[1], [0], [0], [1], [0, 0, 1, 1], [], []>} : vector<64x128xbf16>, vector<128x128xbf16>, vector<64x128xf32> -> vector<64x128xf32>
    %28 = arith.addf %21, %27 : vector<64x128xf32>
    %c0_27 = arith.constant 0 : index
    %c0_28 = arith.constant 0 : index
    %c0_29 = arith.constant 0 : index
    %c0_30 = arith.constant 0 : index
    %29 = vector.load %arg4[%c0_27, %c0_28, %c0_29, %c0_30] : memref<1x1x64x128xf32, #tpu.memory_space<vmem>>, vector<1x1x64x128xf32>
    %30 = vector.shape_cast %29 : vector<1x1x64x128xf32> to vector<64x128xf32>
    %31 = vector.shape_cast %28 : vector<64x128xf32> to vector<1x1x64x128xf32>
    tpu.vector_store %arg4[%c0_27, %c0_28, %c0_29, %c0_30], %31 {strides = array<i32>} : memref<1x1x64x128xf32, #tpu.memory_space<vmem>>, vector<1x1x64x128xf32>,
    %cst_31 = arith.constant dense<0.000000e+00> : vector<128xf32>
    %32 = vector.multi_reduction <add>, %28, %cst_31 [0] : vector<64x128xf32> to vector<128xf32>
    %33 = vector.shape_cast %32 : vector<128xf32> to vector<1x128xf32>
    %c0_32 = arith.constant 0 : index
    %c0_33 = arith.constant 0 : index
    %c0_34 = arith.constant 0 : index
    %c0_35 = arith.constant 0 : index
    %34 = vector.load %arg5[%c0_32, %c0_33, %c0_34, %c0_35] : memref<1x1x2x128xf32, #tpu.memory_space<vmem>>, vector<1x1x1x128xf32>
    %35 = vector.shape_cast %34 : vector<1x1x1x128xf32> to vector<1x128xf32>
    %36 = vector.shape_cast %33 : vector<1x128xf32> to vector<1x1x1x128xf32>
    tpu.vector_store %arg5[%c0_32, %c0_33, %c0_34, %c0_35], %36 {strides = array<i32>} : memref<1x1x2x128xf32, #tpu.memory_space<vmem>>, vector<1x1x1x128xf32>,
    %37 = arith.mulf %28, %28 : vector<64x128xf32>
    %cst_36 = arith.constant dense<0.000000e+00> : vector<128xf32>
    %38 = vector.multi_reduction <add>, %37, %cst_36 [0] : vector<64x128xf32> to vector<128xf32>
    %39 = vector.shape_cast %38 : vector<128xf32> to vector<1x128xf32>
    %c0_37 = arith.constant 0 : index
    %c0_38 = arith.constant 0 : index
    %c1_39 = arith.constant 1 : index
    %c0_40 = arith.constant 0 : index
    %40 = vector.load %arg5[%c0_37, %c0_38, %c1_39, %c0_40] : memref<1x1x2x128xf32, #tpu.memory_space<vmem>>, vector<1x1x1x128xf32>
    %41 = vector.shape_cast %40 : vector<1x1x1x128xf32> to vector<1x128xf32>
    %42 = vector.shape_cast %39 : vector<1x128xf32> to vector<1x1x1x128xf32>
    tpu.vector_store %arg5[%c0_37, %c0_38, %c1_39, %c0_40], %42 {strides = array<i32>} : memref<1x1x2x128xf32, #tpu.memory_space<vmem>>, vector<1x1x1x128xf32>,
    return
  }
  func.func @transform_0(%arg0: i32, %arg1: i32) -> (i32, i32, i32, i32) {
    %c0_i32 = arith.constant 0 : i32
    %c0_i32_0 = arith.constant 0 : i32
    %c0_i32_1 = arith.constant 0 : i32
    %c0_i32_2 = arith.constant 0 : i32
    return %arg0, %c0_i32, %c0_i32_0, %c0_i32_1 : i32, i32, i32, i32
  }
  func.func @transform_1(%arg0: i32, %arg1: i32) -> (i32, i32, i32) {
    %c0_i32 = arith.constant 0 : i32
    %c0_i32_0 = arith.constant 0 : i32
    %c0_i32_1 = arith.constant 0 : i32
    return %arg1, %c0_i32, %c0_i32_0 : i32, i32, i32
  }
  func.func @transform_2(%arg0: i32, %arg1: i32) -> (i32, i32, i32, i32) {
    %c0_i32 = arith.constant 0 : i32
    %c0_i32_0 = arith.constant 0 : i32
    %c0_i32_1 = arith.constant 0 : i32
    return %arg1, %arg0, %c0_i32, %c0_i32_0 : i32, i32, i32, i32
  }
  func.func @transform_3(%arg0: i32, %arg1: i32) -> (i32, i32, i32, i32) {
    %c0_i32 = arith.constant 0 : i32
    %c0_i32_0 = arith.constant 0 : i32
    %c0_i32_1 = arith.constant 0 : i32
    return %arg1, %arg0, %c0_i32, %c0_i32_0 : i32, i32, i32, i32
  }
}

module attributes {stable_mosaic.version = 11 : i64} {
  func.func @_bn_convskip_relu_kernel(%arg0: i32, %arg1: i32, %arg2: memref<1x1x64x128xf32, #tpu.memory_space<vmem>>, %arg3: memref<1x128xf32, #tpu.memory_space<vmem>>, %arg4: memref<1x128xf32, #tpu.memory_space<vmem>>, %arg5: memref<1x64x128xbf16, #tpu.memory_space<vmem>>, %arg6: memref<128x128xbf16, #tpu.memory_space<vmem>>, %arg7: memref<1x128xf32, #tpu.memory_space<vmem>>, %arg8: memref<1x1x64x128xf32, #tpu.memory_space<vmem>>) attributes {dimension_semantics = [#tpu.dimension_semantics<parallel>, #tpu.dimension_semantics<parallel>], iteration_bounds = array<i64: 2, 4>, scalar_prefetch = 0 : i64, scratch_operands = 0 : i64, tpu.core_type = #tpu.core_type<tc>, window_params = [{transform_indices = @transform_0, window_bounds = array<i64: 1, 1, 64, 128>}, {pipeline_mode = #tpu.pipeline_mode<synchronous>, transform_indices = @transform_1, window_bounds = array<i64: 1, 128>}, {pipeline_mode = #tpu.pipeline_mode<synchronous>, transform_indices = @transform_2, window_bounds = array<i64: 1, 128>}, {transform_indices = @transform_3, window_bounds = array<i64: 1, 64, 128>}, {pipeline_mode = #tpu.pipeline_mode<synchronous>, transform_indices = @transform_4, window_bounds = array<i64: 128, 128>}, {pipeline_mode = #tpu.pipeline_mode<synchronous>, transform_indices = @transform_5, window_bounds = array<i64: 1, 128>}, {transform_indices = @transform_6, window_bounds = array<i64: 1, 1, 64, 128>}]} {
    %c0 = arith.constant 0 : index
    %c0_0 = arith.constant 0 : index
    %c0_1 = arith.constant 0 : index
    %c0_2 = arith.constant 0 : index
    %0 = vector.load %arg2[%c0, %c0_0, %c0_1, %c0_2] : memref<1x1x64x128xf32, #tpu.memory_space<vmem>>, vector<1x1x64x128xf32>
    %1 = vector.shape_cast %0 : vector<1x1x64x128xf32> to vector<64x128xf32>
    %c0_3 = arith.constant 0 : index
    %c0_4 = arith.constant 0 : index
    %2 = vector.load %arg3[%c0_3, %c0_4] : memref<1x128xf32, #tpu.memory_space<vmem>>, vector<1x128xf32>
    %3 = vector.broadcast %2 : vector<1x128xf32> to vector<64x128xf32>
    %4 = arith.mulf %1, %3 : vector<64x128xf32>
    %c0_5 = arith.constant 0 : index
    %c0_6 = arith.constant 0 : index
    %5 = vector.load %arg4[%c0_5, %c0_6] : memref<1x128xf32, #tpu.memory_space<vmem>>, vector<1x128xf32>
    %6 = vector.broadcast %5 : vector<1x128xf32> to vector<64x128xf32>
    %7 = arith.addf %4, %6 : vector<64x128xf32>
    %cst = arith.constant 0.000000e+00 : f32
    %8 = vector.broadcast %cst : f32 to vector<64x128xf32>
    %9 = arith.maximumf %7, %8 : vector<64x128xf32>
    %c0_7 = arith.constant 0 : index
    %c0_8 = arith.constant 0 : index
    %10 = vector.load %arg7[%c0_7, %c0_8] : memref<1x128xf32, #tpu.memory_space<vmem>>, vector<1x128xf32>
    %11 = vector.broadcast %10 : vector<1x128xf32> to vector<64x128xf32>
    %12 = arith.addf %9, %11 : vector<64x128xf32>
    %cst_9 = arith.constant 0.000000e+00 : f32
    %13 = vector.broadcast %cst_9 : f32 to vector<64x128xf32>
    %14 = arith.maximumf %12, %13 : vector<64x128xf32>
    %c0_10 = arith.constant 0 : index
    %c0_11 = arith.constant 0 : index
    %c0_12 = arith.constant 0 : index
    %c0_13 = arith.constant 0 : index
    %15 = vector.load %arg8[%c0_10, %c0_11, %c0_12, %c0_13] : memref<1x1x64x128xf32, #tpu.memory_space<vmem>>, vector<1x1x64x128xf32>
    %16 = vector.shape_cast %15 : vector<1x1x64x128xf32> to vector<64x128xf32>
    %17 = vector.shape_cast %14 : vector<64x128xf32> to vector<1x1x64x128xf32>
    tpu.vector_store %arg8[%c0_10, %c0_11, %c0_12, %c0_13], %17 {strides = array<i32>} : memref<1x1x64x128xf32, #tpu.memory_space<vmem>>, vector<1x1x64x128xf32>,
    %c0_i32 = arith.constant 0 : i32
    %18 = arith.cmpi eq, %arg1, %c0_i32 : i32
    %19 = arith.extui %18 : i1 to i32
    %c0_i32_14 = arith.constant 0 : i32
    %20 = arith.cmpi ne, %19, %c0_i32_14 : i32
    scf.if %20 {
      %c0_15 = arith.constant 0 : index
      %c0_16 = arith.constant 0 : index
      %c0_17 = arith.constant 0 : index
      %21 = vector.load %arg5[%c0_15, %c0_16, %c0_17] : memref<1x64x128xbf16, #tpu.memory_space<vmem>>, vector<1x64x128xbf16>
      %22 = vector.shape_cast %21 : vector<1x64x128xbf16> to vector<64x128xbf16>
      %c0_18 = arith.constant 0 : index
      %c0_19 = arith.constant 0 : index
      %23 = vector.load %arg6[%c0_18, %c0_19] : memref<128x128xbf16, #tpu.memory_space<vmem>>, vector<128x128xbf16>
      %cst_20 = arith.constant dense<0.000000e+00> : vector<64x128xf32>
      %24 = tpu.matmul %22, %23, %cst_20 {dimension_numbers = #tpu.dot_dimension_numbers<[1], [0], [0], [1], [0, 0, 1, 1], [], []>} : vector<64x128xbf16>, vector<128x128xbf16>, vector<64x128xf32> -> vector<64x128xf32>
      %25 = arith.addf %9, %24 : vector<64x128xf32>
      %c0_21 = arith.constant 0 : index
      %c0_22 = arith.constant 0 : index
      %26 = vector.load %arg7[%c0_21, %c0_22] : memref<1x128xf32, #tpu.memory_space<vmem>>, vector<1x128xf32>
      %27 = vector.broadcast %26 : vector<1x128xf32> to vector<64x128xf32>
      %28 = arith.addf %25, %27 : vector<64x128xf32>
      %cst_23 = arith.constant 0.000000e+00 : f32
      %29 = vector.broadcast %cst_23 : f32 to vector<64x128xf32>
      %30 = arith.maximumf %28, %29 : vector<64x128xf32>
      %c0_24 = arith.constant 0 : index
      %c0_25 = arith.constant 0 : index
      %c0_26 = arith.constant 0 : index
      %c0_27 = arith.constant 0 : index
      %31 = vector.load %arg8[%c0_24, %c0_25, %c0_26, %c0_27] : memref<1x1x64x128xf32, #tpu.memory_space<vmem>>, vector<1x1x64x128xf32>
      %32 = vector.shape_cast %31 : vector<1x1x64x128xf32> to vector<64x128xf32>
      %33 = vector.shape_cast %30 : vector<64x128xf32> to vector<1x1x64x128xf32>
      tpu.vector_store %arg8[%c0_24, %c0_25, %c0_26, %c0_27], %33 {strides = array<i32>} : memref<1x1x64x128xf32, #tpu.memory_space<vmem>>, vector<1x1x64x128xf32>,
    } else {
    }
    return
  }
  func.func @transform_0(%arg0: i32, %arg1: i32) -> (i32, i32, i32, i32) {
    %c0_i32 = arith.constant 0 : i32
    %c0_i32_0 = arith.constant 0 : i32
    %c0_i32_1 = arith.constant 0 : i32
    return %arg1, %arg0, %c0_i32, %c0_i32_0 : i32, i32, i32, i32
  }
  func.func @transform_1(%arg0: i32, %arg1: i32) -> (i32, i32) {
    %c0_i32 = arith.constant 0 : i32
    %c0_i32_0 = arith.constant 0 : i32
    %c0_i32_1 = arith.constant 0 : i32
    return %c0_i32, %c0_i32_0 : i32, i32
  }
  func.func @transform_2(%arg0: i32, %arg1: i32) -> (i32, i32) {
    %c0_i32 = arith.constant 0 : i32
    %c0_i32_0 = arith.constant 0 : i32
    %c0_i32_1 = arith.constant 0 : i32
    return %c0_i32, %c0_i32_0 : i32, i32
  }
  func.func @transform_3(%arg0: i32, %arg1: i32) -> (i32, i32, i32) {
    %c0_i32 = arith.constant 0 : i32
    %c0_i32_0 = arith.constant 0 : i32
    %c0_i32_1 = arith.constant 0 : i32
    return %arg0, %c0_i32, %c0_i32_0 : i32, i32, i32
  }
  func.func @transform_4(%arg0: i32, %arg1: i32) -> (i32, i32) {
    %c0_i32 = arith.constant 0 : i32
    %c0_i32_0 = arith.constant 0 : i32
    %c0_i32_1 = arith.constant 0 : i32
    return %c0_i32, %c0_i32_0 : i32, i32
  }
  func.func @transform_5(%arg0: i32, %arg1: i32) -> (i32, i32) {
    %c0_i32 = arith.constant 0 : i32
    %c0_i32_0 = arith.constant 0 : i32
    %c0_i32_1 = arith.constant 0 : i32
    return %c0_i32, %c0_i32_0 : i32, i32
  }
  func.func @transform_6(%arg0: i32, %arg1: i32) -> (i32, i32, i32, i32) {
    %c0_i32 = arith.constant 0 : i32
    %c0_i32_0 = arith.constant 0 : i32
    %c0_i32_1 = arith.constant 0 : i32
    return %arg1, %arg0, %c0_i32, %c0_i32_0 : i32, i32, i32, i32
  }
}

</mosaic_0001>

<llo_original>
// kernel: inv_res_block_forward.5
$region0: #{inv_res_block_forward.5}
  #allocation0 [shape = 'u32[]', space=smem, size = 0x4, offset = 0x4, fixed_abs, tag = 'smem constant byte address 0x4 - core index']
  #allocation1 [shape = 'u32[144,128]{1,0:T(1,128)}', space=vmem, size = 0x12000, scoped, tag = 'internal scratch']
  %s0 = inlined_call_operand.vmem [shape: f32[1,2,64,128], index: 0, kind: input, shape index: {}]
  %s1 = inlined_call_operand.vmem [shape: f32[1,128], index: 1, kind: input, shape index: {}]
  %s2 = inlined_call_operand.vmem [shape: f32[1,128], index: 2, kind: input, shape index: {}]
  %s3 = inlined_call_operand.vmem [shape: bf16[1,2,64,128], index: 3, kind: output, shape index: {}]
  %s4 = sld [smem:[#allocation0]]
  $region45: #{inv_res_block_forward.5} parent=0
    _
  %s6 = ssub.s32 1, %s4
  %s7 = scalar_select 0, %s6, %s4
  loop: start=0, step=1, limit=4
  $region2: #{inv_res_block_forward.5} parent=0 // loop_pre_header
    _
  $region3: #{inv_res_block_forward.5} parent=0 // loop_header
    %s9 = sphi 0, %s13
    %p10 = scmp.ge.s32.totalorder %s9, 4
    %s16 = sphi 0, %s28
    %s17 = sphi 0, %s24
    %s18 = sphi 0, %s16
    %s19 = sphi 0, %s17
    %s20 = sphi 0, %s18
    %s21 = sphi 0, %s19
    %s33 = sphi 0, %s35
    %s36 = sphi 0, %s33
    %s37 = sphi 0, %s36
    %s53 = sphi 0, %s37
    %s57 = sphi 0, %s57
    %s59 = sphi 0, %s57
    %s60 = sphi 0, %s59
    %s74 = sphi 0, %s60
    %s78 = sphi 0, %s78
    %s80 = sphi 0, %s78
    %s81 = sphi 0, %s80
    %s95 = sphi 0, %s81
    %s103 = sphi 0, %s105
    %s106 = sphi 0, %s103
    %s107 = sphi 0, %s106
    %s123 = sphi 0, %s107
  $region4: #{inv_res_block_forward.5} parent=0 // loop_header_branch
    %12 = sbr.rel (%p10) target = $region8
  $region5: #{inv_res_block_forward.5} parent=0 // loop_body
    %s14 = ssub.s32 %s9, 1
    %s15 = ssub.s32 %s9, 2
    %s22 = sadd.s32 1, %s17
    %p23 = scmp.ge.s32.totalorder %s22, 1
    %s24 = scalar_select %p23, 0, %s22
    %s25 = sadd.s32 1, %s16
    %s26 = scalar_select %p23, %s25, %s16
    %p27 = scmp.ge.s32.totalorder %s26, 2
    %s28 = scalar_select %p27, 0, %s26
    %s29 = ssub.s32 %s17, %s24
    %s30 = ssub.s32 %s16, %s28
    %s31 = sor.u32 %s29, %s30
    %p32 = scmp.eq.s32.totalorder %s31, 0
    %s34 = sadd.s32 %s33, 1
    %s35 = scalar_select %p32, %s33, %s34
    %p38 = pneg %p32
    %p39 = scmp.eq.s32.totalorder %s9, 1
    %p40 = por %p38, %p39
    %p41 = scmp.ne.s32.totalorder %s33, %s36
    %p42 = scmp.eq.s32.totalorder %s9, 0
    %p43 = por %p41, %p42
    %p44 = scmp.ne.s32.totalorder %s33, %s36
    %p45 = scmp.eq.s32.totalorder %s14, 1
    %p46 = por %p44, %p45
    %p47 = scmp.ne.s32.totalorder %s36, %s37
    %p48 = scmp.eq.s32.totalorder %s14, 0
    %p49 = por %p47, %p48
    %p50 = scmp.ne.s32.totalorder %s36, %s37
    %p51 = scmp.eq.s32.totalorder %s15, 1
    %p52 = por %p50, %p51
    %p54 = scmp.ne.s32.totalorder %s37, %s53
    %p55 = scmp.eq.s32.totalorder %s15, 0
    %p56 = por %p54, %p55
    %s58 = sadd.s32 %s57, 1
    %p61 = scmp.eq.s32.totalorder %s9, 1
    %p62 = scmp.ne.s32.totalorder %s57, %s59
    %p63 = scmp.eq.s32.totalorder %s9, 0
    %p64 = por %p62, %p63
    %p65 = scmp.ne.s32.totalorder %s57, %s59
    %p66 = scmp.eq.s32.totalorder %s14, 1
    %p67 = por %p65, %p66
    %p68 = scmp.ne.s32.totalorder %s59, %s60
    %p69 = scmp.eq.s32.totalorder %s14, 0
    %p70 = por %p68, %p69
    %p71 = scmp.ne.s32.totalorder %s59, %s60
    %p72 = scmp.eq.s32.totalorder %s15, 1
    %p73 = por %p71, %p72
    %p75 = scmp.ne.s32.totalorder %s60, %s74
    %p76 = scmp.eq.s32.totalorder %s15, 0
    %p77 = por %p75, %p76
    %s79 = sadd.s32 %s78, 1
    %p82 = scmp.eq.s32.totalorder %s9, 1
    %p83 = scmp.ne.s32.totalorder %s78, %s80
    %p84 = scmp.eq.s32.totalorder %s9, 0
    %p85 = por %p83, %p84
    %p86 = scmp.ne.s32.totalorder %s78, %s80
    %p87 = scmp.eq.s32.totalorder %s14, 1
    %p88 = por %p86, %p87
    %p89 = scmp.ne.s32.totalorder %s80, %s81
    %p90 = scmp.eq.s32.totalorder %s14, 0
    %p91 = por %p89, %p90
    %p92 = scmp.ne.s32.totalorder %s80, %s81
    %p93 = scmp.eq.s32.totalorder %s15, 1
    %p94 = por %p92, %p93
    %p96 = scmp.ne.s32.totalorder %s81, %s95
    %p97 = scmp.eq.s32.totalorder %s15, 0
    %p98 = por %p96, %p97
    %s99 = ssub.s32 %s17, %s24
    %s100 = ssub.s32 %s16, %s28
    %s101 = sor.u32 %s99, %s100
    %p102 = scmp.eq.s32.totalorder %s101, 0
    %s104 = sadd.s32 %s103, 1
    %s105 = scalar_select %p102, %s103, %s104
    %p108 = pneg %p102
    %p109 = scmp.eq.s32.totalorder %s9, 1
    %p110 = por %p108, %p109
    %p111 = scmp.ne.s32.totalorder %s103, %s106
    %p112 = scmp.eq.s32.totalorder %s9, 0
    %p113 = por %p111, %p112
    %p114 = scmp.ne.s32.totalorder %s103, %s106
    %p115 = scmp.eq.s32.totalorder %s14, 1
    %p116 = por %p114, %p115
    %p117 = scmp.ne.s32.totalorder %s106, %s107
    %p118 = scmp.eq.s32.totalorder %s14, 0
    %p119 = por %p117, %p118
    %p120 = scmp.ne.s32.totalorder %s106, %s107
    %p121 = scmp.eq.s32.totalorder %s15, 1
    %p122 = por %p120, %p121
    %p124 = scmp.ne.s32.totalorder %s107, %s123
    %p125 = scmp.eq.s32.totalorder %s15, 0
    %p126 = por %p124, %p125
    %p127 = scmp.le.s32.totalorder 1, %s9
    %p128 = scmp.lt.s32.totalorder %s9, 3
    %p129 = pnand %p127, %p128
    %p130 = pneg %p129
    // Predicated region
    $region9: #{inv_res_block_forward.5} parent=5 // pred_check
      _
    $region10: #{inv_res_block_forward.5} parent=5 // pred_check_branch
      %132 = sbr.rel (%p129) target = $region12
    $region11: #{inv_res_block_forward.5} parent=5 // pred_region
      %s133 = ssub.s32 %s9, 1
      // Predicated region
      $region13: #{inv_res_block_forward.5} parent=11 // pred_check
        %p134 = pneg %p70
      $region14: #{inv_res_block_forward.5} parent=11 // pred_check_branch
        %136 = sbr.rel (%p134) target = $region16
      $region15: #{inv_res_block_forward.5} parent=11 // pred_region
        _
      $region16: #{inv_res_block_forward.5} parent=11 // pred_fallthru
        _
      // Predicated region
      $region17: #{inv_res_block_forward.5} parent=11 // pred_check
        %p137 = pneg %p91
      $region18: #{inv_res_block_forward.5} parent=11 // pred_check_branch
        %139 = sbr.rel (%p137) target = $region20
      $region19: #{inv_res_block_forward.5} parent=11 // pred_region
        _
      $region20: #{inv_res_block_forward.5} parent=11 // pred_fallthru
        _
    $region12: #{inv_res_block_forward.5} parent=5 // pred_fallthru
      _
    %p140 = scmp.lt.s32.totalorder %s9, 2
    // Predicated region
    $region21: #{inv_res_block_forward.5} parent=5 // pred_check
      %p141 = pneg %p140
    $region22: #{inv_res_block_forward.5} parent=5 // pred_check_branch
      %143 = sbr.rel (%p141) target = $region24
    $region23: #{inv_res_block_forward.5} parent=5 // pred_region
      // Predicated region
      $region25: #{inv_res_block_forward.5} parent=23 // pred_check
        %p144 = pneg %p43
      $region26: #{inv_res_block_forward.5} parent=23 // pred_check_branch
        %146 = sbr.rel (%p144) target = $region28
      $region27: #{inv_res_block_forward.5} parent=23 // pred_region
        %p147 = scmp.lt.s32.totalorder %s17, 0
        %s148 = scalar_select %p147, %s17, 0
        %p149 = scmp.lt.s32.totalorder %s16, 1
        %s150 = scalar_select %p149, %s16, 1
        %s151 = smul.addr %s150, 8
        %s152 = smul.addr %s148, 16
        %s153 = sadd.s32 %s151, %s152
        %s154 = smul.addr %s153, 8
        %s155 = scalar_lea.vmem %s0, %s154
      $region28: #{inv_res_block_forward.5} parent=23 // pred_fallthru
        _
    $region24: #{inv_res_block_forward.5} parent=5 // pred_fallthru
      _
    %p156 = scmp.le.s32.totalorder 1, %s9
    %p157 = scmp.lt.s32.totalorder %s9, 3
    %p158 = pnand %p156, %p157
    %p159 = pneg %p158
    // Predicated region
    $region29: #{inv_res_block_forward.5} parent=5 // pred_check
      _
    $region30: #{inv_res_block_forward.5} parent=5 // pred_check_branch
      %161 = sbr.rel (%p158) target = $region32
    $region31: #{inv_res_block_forward.5} parent=5 // pred_region
      %s162 = ssub.s32 %s9, 1
      %p163 = scmp.lt.s32.totalorder %s19, 0
      %s164 = scalar_select %p163, %s19, 0
      %p165 = scmp.lt.s32.totalorder %s18, 1
      %s166 = scalar_select %p165, %s18, 1
      %s167 = smul.addr %s166, 8
      %s168 = smul.addr %s164, 16
      %s169 = sadd.s32 %s167, %s168
      %s170 = smul.addr %s169, 8
      %s171 = scalar_lea.vmem %s0, %s170
      %p172 = pneg %p49
      %p173 = pneg %p46
      %p174 = pneg %p70
      %p175 = pneg %p67
      %p176 = pneg %p91
      %p177 = pneg %p88
      %p178 = pneg %p119
      %p179 = pneg %p116
      %p180 = scmp.lt.s32.totalorder %s19, 0
      %s181 = scalar_select %p180, %s19, 0
      %p182 = scmp.lt.s32.totalorder %s18, 1
      %s183 = scalar_select %p182, %s18, 1
      %s184 = smul.addr %s183, 8
      %s185 = smul.addr %s181, 16
      %s186 = sadd.s32 %s184, %s185
      %s187 = smul.addr %s186, 4
      %s188 = scalar_lea.vmem %s3, %s187
      %p189 = scmp.lt.s32.totalorder %s19, 0
      %s190 = scalar_select %p189, %s19, 0
      %p191 = scmp.lt.s32.totalorder %s18, 1
      %s192 = scalar_select %p191, %s18, 1
      %s193 = smul.addr %s192, 8
      %s194 = smul.addr %s190, 16
      %s195 = sadd.s32 %s193, %s194
      %s196 = smul.addr %s195, 8
      %s197 = scalar_lea.vmem %s0, %s196
      %p198 = scmp.lt.s32.totalorder %s19, 0
      %s199 = scalar_select %p198, %s19, 0
      %p200 = scmp.lt.s32.totalorder %s18, 1
      %s201 = scalar_select %p200, %s18, 1
      %s202 = smul.addr %s201, 8
      %s203 = smul.addr %s199, 16
      %s204 = sadd.s32 %s202, %s203
      %s205 = smul.addr %s204, 4
      %s206 = scalar_lea.vmem %s3, %s205
      %v207 = vld [vmem:[%s197] sm:$0xff]
      %v208 = vld [vmem:[%s197 + $0x8] sm:$0xff]
      %v209 = vld [vmem:[%s197 + $0x10] sm:$0xff]
      %v210 = vld [vmem:[%s197 + $0x18] sm:$0xff]
      %v211 = vld [vmem:[%s197 + $0x20] sm:$0xff]
      %v212 = vld [vmem:[%s197 + $0x28] sm:$0xff]
      %v213 = vld [vmem:[%s197 + $0x30] sm:$0xff]
      %v214 = vld [vmem:[%s197 + $0x38] sm:$0xff]
      %v215 = vld [vmem:[%s1] sm:$0x1]
      %v217 = vlaneseq
      %v218 = vshrl.u32 %v217, 7
      %v219 = vsub.s32 0, %v218
      %v220 = vrot.slane %v215, %v219
      %v222 = vmul.f32 %v207, %v220
      %v223 = vmul.f32 %v208, %v220
      %v224 = vmul.f32 %v209, %v220
      %v225 = vmul.f32 %v210, %v220
      %v226 = vmul.f32 %v211, %v220
      %v227 = vmul.f32 %v212, %v220
      %v228 = vmul.f32 %v213, %v220
      %v229 = vmul.f32 %v214, %v220
      %v230 = vld [vmem:[%s2] sm:$0x1]
      %v232 = vlaneseq
      %v233 = vshrl.u32 %v232, 7
      %v234 = vsub.s32 0, %v233
      %v235 = vrot.slane %v230, %v234
      %v237 = vadd.f32 %v222, %v235
      %v238 = vadd.f32 %v223, %v235
      %v239 = vadd.f32 %v224, %v235
      %v240 = vadd.f32 %v225, %v235
      %v241 = vadd.f32 %v226, %v235
      %v242 = vadd.f32 %v227, %v235
      %v243 = vadd.f32 %v228, %v235
      %v244 = vadd.f32 %v229, %v235
      %v245 = vmax.f32 %v237, 0.0
      %v246 = vmax.f32 %v238, 0.0
      %v247 = vmax.f32 %v239, 0.0
      %v248 = vmax.f32 %v240, 0.0
      %v249 = vmax.f32 %v241, 0.0
      %v250 = vmax.f32 %v242, 0.0
      %v251 = vmax.f32 %v243, 0.0
      %v252 = vmax.f32 %v244, 0.0
      %v253 = vpack.c.bf16 %v246, %v245
      %v254 = vpack.c.bf16 %v248, %v247
      %v255 = vpack.c.bf16 %v250, %v249
      %v256 = vpack.c.bf16 %v252, %v251
      %v261 = vunpack.c.l.b16 %v253
      %v262 = vunpack.c.h.b16 %v253
      %v263 = vunpack.c.l.b16 %v254
      %v264 = vunpack.c.h.b16 %v254
      %v265 = vunpack.c.l.b16 %v255
      %v266 = vunpack.c.h.b16 %v255
      %v267 = vunpack.c.l.b16 %v256
      %v268 = vunpack.c.h.b16 %v256
      %v269 = vpack.c.b16 %v261, %v261
      %v270 = vpack.c.b16 %v262, %v262
      %v271 = vpack.c.b16 %v263, %v263
      %v272 = vpack.c.b16 %v264, %v264
      %v273 = vpack.c.b16 %v265, %v265
      %v274 = vpack.c.b16 %v266, %v266
      %v275 = vpack.c.b16 %v267, %v267
      %v276 = vpack.c.b16 %v268, %v268
      %285 = vst [vmem:[%s206] sm:$0xf] %v269
      %286 = vst [vmem:[%s206 + $0x4] sm:$0xf] %v270
      %287 = vst [vmem:[%s206 + $0x8] sm:$0xf] %v271
      %288 = vst [vmem:[%s206 + $0xc] sm:$0xf] %v272
      %289 = vst [vmem:[%s206 + $0x10] sm:$0xf] %v273
      %290 = vst [vmem:[%s206 + $0x14] sm:$0xf] %v274
      %291 = vst [vmem:[%s206 + $0x18] sm:$0xf] %v275
      %292 = vst [vmem:[%s206 + $0x1c] sm:$0xf] %v276
      %p293 = scmp.lt.s32.totalorder %s19, 0
      %s294 = scalar_select %p293, %s19, 0
      %p295 = scmp.lt.s32.totalorder %s18, 1
      %s296 = scalar_select %p295, %s18, 1
      %s297 = smul.addr %s296, 8
      %s298 = smul.addr %s294, 16
      %s299 = sadd.s32 %s297, %s298
      %s300 = smul.addr %s299, 4
      %s301 = scalar_lea.vmem %s3, %s300
      // Predicated region
      $region33: #{inv_res_block_forward.5} parent=31 // pred_check
        %p302 = pneg %p116
      $region34: #{inv_res_block_forward.5} parent=31 // pred_check_branch
        %304 = sbr.rel (%p302) target = $region36
      $region35: #{inv_res_block_forward.5} parent=31 // pred_region
        _
      $region36: #{inv_res_block_forward.5} parent=31 // pred_fallthru
        _
    $region32: #{inv_res_block_forward.5} parent=5 // pred_fallthru
      _
    %p305 = scmp.le.s32.totalorder 2, %s9
    // Predicated region
    $region37: #{inv_res_block_forward.5} parent=5 // pred_check
      %p306 = pneg %p305
    $region38: #{inv_res_block_forward.5} parent=5 // pred_check_branch
      %308 = sbr.rel (%p306) target = $region40
    $region39: #{inv_res_block_forward.5} parent=5 // pred_region
      %s309 = ssub.s32 %s9, 2
      // Predicated region
      $region41: #{inv_res_block_forward.5} parent=39 // pred_check
        %p310 = pneg %p122
      $region42: #{inv_res_block_forward.5} parent=39 // pred_check_branch
        %312 = sbr.rel (%p310) target = $region44
      $region43: #{inv_res_block_forward.5} parent=39 // pred_region
        %p313 = scmp.lt.s32.totalorder %s21, 0
        %s314 = scalar_select %p313, %s21, 0
        %p315 = scmp.lt.s32.totalorder %s20, 1
        %s316 = scalar_select %p315, %s20, 1
        %s317 = smul.addr %s316, 8
        %s318 = smul.addr %s314, 16
        %s319 = sadd.s32 %s317, %s318
        %s320 = smul.addr %s319, 4
        %s321 = scalar_lea.vmem %s3, %s320
      $region44: #{inv_res_block_forward.5} parent=39 // pred_fallthru
        _
    $region40: #{inv_res_block_forward.5} parent=5 // pred_fallthru
      _
  $region6: #{inv_res_block_forward.5} parent=0 // loop_footer
    %s13 = sadd.s32 1, %s9
  $region7: #{inv_res_block_forward.5} parent=0 // loop_footer_branch
    %8 = sbr.rel target = $region3
  $region8: #{inv_res_block_forward.5} parent=0 // loop_exit
    _

// kernel: inv_res_block_forward.4
$region0: #{inv_res_block_forward.4}
  #allocation0 [shape = 'u32[]', space=smem, size = 0x4, offset = 0x4, fixed_abs, tag = 'smem constant byte address 0x4 - core index']
  #allocation1 [shape = 'u32[144,128]{1,0:T(1,128)}', space=vmem, size = 0x12000, scoped, tag = 'internal scratch']
  %s0 = inlined_call_operand.vmem [shape: bf16[2,10,10,128], index: 0, kind: input, shape index: {}]
  %s1 = inlined_call_operand.vmem [shape: bf16[1,1152,128], index: 1, kind: input, shape index: {}]
  %s2 = inlined_call_operand.vmem [shape: f32[1,2,64,128], index: 2, kind: output, shape index: {0}]
  %s3 = inlined_call_operand.vmem [shape: f32[1,2,2,128], index: 3, kind: output, shape index: {1}]
  %4 = xla_tuple %s2, %s3
  %s5 = sld [smem:[#allocation0]]
  $region49: #{inv_res_block_forward.4} parent=0
    _
  %s7 = ssub.s32 1, %s5
  %s8 = scalar_select 0, %s7, %s5
  loop: start=0, step=1, limit=4
  $region2: #{inv_res_block_forward.4} parent=0 // loop_pre_header
    _
  $region3: #{inv_res_block_forward.4} parent=0 // loop_header
    %s10 = sphi 0, %s14
    %p11 = scmp.ge.s32.totalorder %s10, 4
    %s17 = sphi 0, %s29
    %s18 = sphi 0, %s25
    %s19 = sphi 0, %s17
    %s20 = sphi 0, %s18
    %s21 = sphi 0, %s19
    %s22 = sphi 0, %s20
    %s32 = sphi 0, %s34
    %s35 = sphi 0, %s32
    %s36 = sphi 0, %s35
    %s52 = sphi 0, %s36
    %s58 = sphi 0, %s60
    %s61 = sphi 0, %s58
    %s62 = sphi 0, %s61
    %s78 = sphi 0, %s62
    %s86 = sphi 0, %s88
    %s89 = sphi 0, %s86
    %s90 = sphi 0, %s89
    %s106 = sphi 0, %s90
    %s114 = sphi 0, %s116
    %s117 = sphi 0, %s114
    %s118 = sphi 0, %s117
    %s134 = sphi 0, %s118
  $region4: #{inv_res_block_forward.4} parent=0 // loop_header_branch
    %13 = sbr.rel (%p11) target = $region8
  $region5: #{inv_res_block_forward.4} parent=0 // loop_body
    %s15 = ssub.s32 %s10, 1
    %s16 = ssub.s32 %s10, 2
    %s23 = sadd.s32 1, %s18
    %p24 = scmp.ge.s32.totalorder %s23, 1
    %s25 = scalar_select %p24, 0, %s23
    %s26 = sadd.s32 1, %s17
    %s27 = scalar_select %p24, %s26, %s17
    %p28 = scmp.ge.s32.totalorder %s27, 2
    %s29 = scalar_select %p28, 0, %s27
    %s30 = ssub.s32 %s17, %s29
    %p31 = scmp.eq.s32.totalorder %s30, 0
    %s33 = sadd.s32 %s32, 1
    %s34 = scalar_select %p31, %s32, %s33
    %p37 = pneg %p31
    %p38 = scmp.eq.s32.totalorder %s10, 1
    %p39 = por %p37, %p38
    %p40 = scmp.ne.s32.totalorder %s32, %s35
    %p41 = scmp.eq.s32.totalorder %s10, 0
    %p42 = por %p40, %p41
    %p43 = scmp.ne.s32.totalorder %s32, %s35
    %p44 = scmp.eq.s32.totalorder %s15, 1
    %p45 = por %p43, %p44
    %p46 = scmp.ne.s32.totalorder %s35, %s36
    %p47 = scmp.eq.s32.totalorder %s15, 0
    %p48 = por %p46, %p47
    %p49 = scmp.ne.s32.totalorder %s35, %s36
    %p50 = scmp.eq.s32.totalorder %s16, 1
    %p51 = por %p49, %p50
    %p53 = scmp.ne.s32.totalorder %s36, %s52
    %p54 = scmp.eq.s32.totalorder %s16, 0
    %p55 = por %p53, %p54
    %s56 = ssub.s32 %s18, %s25
    %p57 = scmp.eq.s32.totalorder %s56, 0
    %s59 = sadd.s32 %s58, 1
    %s60 = scalar_select %p57, %s58, %s59
    %p63 = pneg %p57
    %p64 = scmp.eq.s32.totalorder %s10, 1
    %p65 = por %p63, %p64
    %p66 = scmp.ne.s32.totalorder %s58, %s61
    %p67 = scmp.eq.s32.totalorder %s10, 0
    %p68 = por %p66, %p67
    %p69 = scmp.ne.s32.totalorder %s58, %s61
    %p70 = scmp.eq.s32.totalorder %s15, 1
    %p71 = por %p69, %p70
    %p72 = scmp.ne.s32.totalorder %s61, %s62
    %p73 = scmp.eq.s32.totalorder %s15, 0
    %p74 = por %p72, %p73
    %p75 = scmp.ne.s32.totalorder %s61, %s62
    %p76 = scmp.eq.s32.totalorder %s16, 1
    %p77 = por %p75, %p76
    %p79 = scmp.ne.s32.totalorder %s62, %s78
    %p80 = scmp.eq.s32.totalorder %s16, 0
    %p81 = por %p79, %p80
    %s82 = ssub.s32 %s18, %s25
    %s83 = ssub.s32 %s17, %s29
    %s84 = sor.u32 %s82, %s83
    %p85 = scmp.eq.s32.totalorder %s84, 0
    %s87 = sadd.s32 %s86, 1
    %s88 = scalar_select %p85, %s86, %s87
    %p91 = pneg %p85
    %p92 = scmp.eq.s32.totalorder %s10, 1
    %p93 = por %p91, %p92
    %p94 = scmp.ne.s32.totalorder %s86, %s89
    %p95 = scmp.eq.s32.totalorder %s10, 0
    %p96 = por %p94, %p95
    %p97 = scmp.ne.s32.totalorder %s86, %s89
    %p98 = scmp.eq.s32.totalorder %s15, 1
    %p99 = por %p97, %p98
    %p100 = scmp.ne.s32.totalorder %s89, %s90
    %p101 = scmp.eq.s32.totalorder %s15, 0
    %p102 = por %p100, %p101
    %p103 = scmp.ne.s32.totalorder %s89, %s90
    %p104 = scmp.eq.s32.totalorder %s16, 1
    %p105 = por %p103, %p104
    %p107 = scmp.ne.s32.totalorder %s90, %s106
    %p108 = scmp.eq.s32.totalorder %s16, 0
    %p109 = por %p107, %p108
    %s110 = ssub.s32 %s18, %s25
    %s111 = ssub.s32 %s17, %s29
    %s112 = sor.u32 %s110, %s111
    %p113 = scmp.eq.s32.totalorder %s112, 0
    %s115 = sadd.s32 %s114, 1
    %s116 = scalar_select %p113, %s114, %s115
    %p119 = pneg %p113
    %p120 = scmp.eq.s32.totalorder %s10, 1
    %p121 = por %p119, %p120
    %p122 = scmp.ne.s32.totalorder %s114, %s117
    %p123 = scmp.eq.s32.totalorder %s10, 0
    %p124 = por %p122, %p123
    %p125 = scmp.ne.s32.totalorder %s114, %s117
    %p126 = scmp.eq.s32.totalorder %s15, 1
    %p127 = por %p125, %p126
    %p128 = scmp.ne.s32.totalorder %s117, %s118
    %p129 = scmp.eq.s32.totalorder %s15, 0
    %p130 = por %p128, %p129
    %p131 = scmp.ne.s32.totalorder %s117, %s118
    %p132 = scmp.eq.s32.totalorder %s16, 1
    %p133 = por %p131, %p132
    %p135 = scmp.ne.s32.totalorder %s118, %s134
    %p136 = scmp.eq.s32.totalorder %s16, 0
    %p137 = por %p135, %p136
    %p138 = scmp.le.s32.totalorder 1, %s10
    %p139 = scmp.lt.s32.totalorder %s10, 3
    %p140 = pnand %p138, %p139
    %p141 = pneg %p140
    // Predicated region
    $region9: #{inv_res_block_forward.4} parent=5 // pred_check
      _
    $region10: #{inv_res_block_forward.4} parent=5 // pred_check_branch
      %143 = sbr.rel (%p140) target = $region12
    $region11: #{inv_res_block_forward.4} parent=5 // pred_region
      %s144 = ssub.s32 %s10, 1
      // Predicated region
      $region13: #{inv_res_block_forward.4} parent=11 // pred_check
        %p145 = pneg %p74
      $region14: #{inv_res_block_forward.4} parent=11 // pred_check_branch
        %147 = sbr.rel (%p145) target = $region16
      $region15: #{inv_res_block_forward.4} parent=11 // pred_region
        %p148 = scmp.lt.s32.totalorder %s20, 0
        %s149 = scalar_select %p148, %s20, 0
        %s150 = smul.addr %s149, 144
        %s151 = smul.addr %s150, 4
        %s152 = scalar_lea.vmem %s1, %s151
      $region16: #{inv_res_block_forward.4} parent=11 // pred_fallthru
        _
    $region12: #{inv_res_block_forward.4} parent=5 // pred_fallthru
      _
    %p153 = scmp.lt.s32.totalorder %s10, 2
    // Predicated region
    $region17: #{inv_res_block_forward.4} parent=5 // pred_check
      %p154 = pneg %p153
    $region18: #{inv_res_block_forward.4} parent=5 // pred_check_branch
      %156 = sbr.rel (%p154) target = $region20
    $region19: #{inv_res_block_forward.4} parent=5 // pred_region
      // Predicated region
      $region21: #{inv_res_block_forward.4} parent=19 // pred_check
        %p157 = pneg %p42
      $region22: #{inv_res_block_forward.4} parent=19 // pred_check_branch
        %159 = sbr.rel (%p157) target = $region24
      $region23: #{inv_res_block_forward.4} parent=19 // pred_region
        %p160 = scmp.lt.s32.totalorder %s17, 1
        %s161 = scalar_select %p160, %s17, 1
        %s162 = smul.addr %s161, 20
        %s163 = smul.addr %s162, 4
        %s164 = scalar_lea.vmem %s0, %s163
      $region24: #{inv_res_block_forward.4} parent=19 // pred_fallthru
        _
    $region20: #{inv_res_block_forward.4} parent=5 // pred_fallthru
      _
    %p165 = scmp.le.s32.totalorder 1, %s10
    %p166 = scmp.lt.s32.totalorder %s10, 3
    %p167 = pnand %p165, %p166
    %p168 = pneg %p167
    // Predicated region
    $region25: #{inv_res_block_forward.4} parent=5 // pred_check
      _
    $region26: #{inv_res_block_forward.4} parent=5 // pred_check_branch
      %170 = sbr.rel (%p167) target = $region28
    $region27: #{inv_res_block_forward.4} parent=5 // pred_region
      %s171 = ssub.s32 %s10, 1
      %p172 = scmp.lt.s32.totalorder %s19, 1
      %s173 = scalar_select %p172, %s19, 1
      %s174 = smul.addr %s173, 20
      %s175 = smul.addr %s174, 4
      %s176 = scalar_lea.vmem %s0, %s175
      %p177 = pneg %p48
      %p178 = pneg %p45
      %p179 = scmp.lt.s32.totalorder %s20, 0
      %s180 = scalar_select %p179, %s20, 0
      %s181 = smul.addr %s180, 144
      %s182 = smul.addr %s181, 4
      %s183 = scalar_lea.vmem %s1, %s182
      %p184 = pneg %p74
      %p185 = pneg %p71
      %p186 = pneg %p102
      %p187 = pneg %p99
      %p188 = scmp.lt.s32.totalorder %s20, 0
      %s189 = scalar_select %p188, %s20, 0
      %p190 = scmp.lt.s32.totalorder %s19, 1
      %s191 = scalar_select %p190, %s19, 1
      %s192 = smul.addr %s191, 8
      %s193 = smul.addr %s189, 16
      %s194 = sadd.s32 %s192, %s193
      %s195 = smul.addr %s194, 8
      %s196 = scalar_lea.vmem %s2, %s195
      %p197 = pneg %p130
      %p198 = pneg %p127
      %p199 = scmp.lt.s32.totalorder %s20, 0
      %s200 = scalar_select %p199, %s20, 0
      %p201 = scmp.lt.s32.totalorder %s19, 1
      %s202 = scalar_select %p201, %s19, 1
      %s203 = smul.addr %s200, 2
      %s204 = sadd.s32 %s202, %s203
      %s205 = smul.addr %s204, 2
      %s206 = scalar_lea.vmem %s3, %s205
      %p207 = scmp.lt.s32.totalorder %s19, 1
      %s208 = scalar_select %p207, %s19, 1
      %s209 = smul.addr %s208, 20
      %s210 = smul.addr %s209, 4
      %s211 = scalar_lea.vmem %s0, %s210
      %p212 = scmp.lt.s32.totalorder %s20, 0
      %s213 = scalar_select %p212, %s20, 0
      %s214 = smul.addr %s213, 144
      %s215 = smul.addr %s214, 4
      %s216 = scalar_lea.vmem %s1, %s215
      %p217 = scmp.lt.s32.totalorder %s20, 0
      %s218 = scalar_select %p217, %s20, 0
      %p219 = scmp.lt.s32.totalorder %s19, 1
      %s220 = scalar_select %p219, %s19, 1
      %s221 = smul.addr %s220, 8
      %s222 = smul.addr %s218, 16
      %s223 = sadd.s32 %s221, %s222
      %s224 = smul.addr %s223, 8
      %s225 = scalar_lea.vmem %s2, %s224
      %p226 = scmp.lt.s32.totalorder %s20, 0
      %s227 = scalar_select %p226, %s20, 0
      %p228 = scmp.lt.s32.totalorder %s19, 1
      %s229 = scalar_select %p228, %s19, 1
      %s230 = smul.addr %s227, 2
      %s231 = sadd.s32 %s229, %s230
      %s232 = smul.addr %s231, 2
      %s233 = scalar_lea.vmem %s3, %s232
      %v235 = vld [vmem:[%s211] sm:$0xf]
      %v236 = vld [vmem:[%s211 + $0x8] sm:$0xf]
      %v237 = vld [vmem:[%s211 + $0x10] sm:$0xf]
      %v238 = vld [vmem:[%s211 + $0x18] sm:$0xf]
      %v239 = vld [vmem:[%s211 + $0x20] sm:$0xf]
      %v240 = vld [vmem:[%s211 + $0x28] sm:$0xf]
      %v241 = vld [vmem:[%s211 + $0x30] sm:$0xf]
      %v242 = vld [vmem:[%s211 + $0x38] sm:$0xf]
      %v243 = vld [vmem:[%s216] sm:$0xf]
      %v244 = vld [vmem:[%s216 + $0x4] sm:$0xf]
      %v245 = vld [vmem:[%s216 + $0x8] sm:$0xf]
      %v246 = vld [vmem:[%s216 + $0xc] sm:$0xf]
      %v247 = vld [vmem:[%s216 + $0x10] sm:$0xf]
      %v248 = vld [vmem:[%s216 + $0x14] sm:$0xf]
      %v249 = vld [vmem:[%s216 + $0x18] sm:$0xf]
      %v250 = vld [vmem:[%s216 + $0x1c] sm:$0xf]
      %v251 = vld [vmem:[%s216 + $0x20] sm:$0xf]
      %v252 = vld [vmem:[%s216 + $0x24] sm:$0xf]
      %v253 = vld [vmem:[%s216 + $0x28] sm:$0xf]
      %v254 = vld [vmem:[%s216 + $0x2c] sm:$0xf]
      %v255 = vld [vmem:[%s216 + $0x30] sm:$0xf]
      %v256 = vld [vmem:[%s216 + $0x34] sm:$0xf]
      %v257 = vld [vmem:[%s216 + $0x38] sm:$0xf]
      %v258 = vld [vmem:[%s216 + $0x3c] sm:$0xf]
      %v259 = vld [vmem:[%s211 + $0x4] sm:$0x1]
      %v260 = vld [vmem:[%s211 + $0xc] sm:$0x1]
      %v261 = vld [vmem:[%s211 + $0x14] sm:$0x1]
      %v262 = vld [vmem:[%s211 + $0x1c] sm:$0x1]
      %v263 = vld [vmem:[%s211 + $0x24] sm:$0x1]
      %v264 = vld [vmem:[%s211 + $0x2c] sm:$0x1]
      %v265 = vld [vmem:[%s211 + $0x34] sm:$0x1]
      %v266 = vld [vmem:[%s211 + $0x3c] sm:$0x1]
      %vm267 = vsmask.f32 3328
      %vm268 = vsmask.f32 7440
      %vm269 = vmor %vm267, %vm268
      %v271 = vshrl.u32 %v235, 16
      %v273 = vrot.slane %v271, 4
      %v274 = vshll.u32 %v235, 16
      %v276 = vrot.slane %v274, 5
      %v277 = vor.u32 %v273, %v276
      %v278 = vrot.slane %v277, 4
      %v280 = vshll.u32 %v259, 16
      %v282 = vrot.slane %v280, 5
      %v283 = vsel %vm269, %v278, %v282
      %v285 = vshrl.u32 %v236, 16
      %v287 = vrot.slane %v285, 4
      %v288 = vshll.u32 %v236, 16
      %v290 = vrot.slane %v288, 5
      %v291 = vor.u32 %v287, %v290
      %v292 = vrot.slane %v291, 4
      %v294 = vshll.u32 %v260, 16
      %v296 = vrot.slane %v294, 5
      %v297 = vsel %vm269, %v292, %v296
      %v299 = vshrl.u32 %v237, 16
      %v301 = vrot.slane %v299, 4
      %v302 = vshll.u32 %v237, 16
      %v304 = vrot.slane %v302, 5
      %v305 = vor.u32 %v301, %v304
      %v306 = vrot.slane %v305, 4
      %v308 = vshll.u32 %v261, 16
      %v310 = vrot.slane %v308, 5
      %v311 = vsel %vm269, %v306, %v310
      %v313 = vshrl.u32 %v238, 16
      %v315 = vrot.slane %v313, 4
      %v316 = vshll.u32 %v238, 16
      %v318 = vrot.slane %v316, 5
      %v319 = vor.u32 %v315, %v318
      %v320 = vrot.slane %v319, 4
      %v322 = vshll.u32 %v262, 16
      %v324 = vrot.slane %v322, 5
      %v325 = vsel %vm269, %v320, %v324
      %v327 = vshrl.u32 %v239, 16
      %v329 = vrot.slane %v327, 4
      %v330 = vshll.u32 %v239, 16
      %v332 = vrot.slane %v330, 5
      %v333 = vor.u32 %v329, %v332
      %v334 = vrot.slane %v333, 4
      %v336 = vshll.u32 %v263, 16
      %v338 = vrot.slane %v336, 5
      %v339 = vsel %vm269, %v334, %v338
      %v341 = vshrl.u32 %v240, 16
      %v343 = vrot.slane %v341, 4
      %v344 = vshll.u32 %v240, 16
      %v346 = vrot.slane %v344, 5
      %v347 = vor.u32 %v343, %v346
      %v348 = vrot.slane %v347, 4
      %v350 = vshll.u32 %v264, 16
      %v352 = vrot.slane %v350, 5
      %v353 = vsel %vm269, %v348, %v352
      %v355 = vshrl.u32 %v241, 16
      %v357 = vrot.slane %v355, 4
      %v358 = vshll.u32 %v241, 16
      %v360 = vrot.slane %v358, 5
      %v361 = vor.u32 %v357, %v360
      %v362 = vrot.slane %v361, 4
      %v364 = vshll.u32 %v265, 16
      %v366 = vrot.slane %v364, 5
      %v367 = vsel %vm269, %v362, %v366
      %v369 = vshrl.u32 %v242, 16
      %v371 = vrot.slane %v369, 4
      %v372 = vshll.u32 %v242, 16
      %v374 = vrot.slane %v372, 5
      %v375 = vor.u32 %v371, %v374
      %v376 = vrot.slane %v375, 4
      %v378 = vshll.u32 %v266, 16
      %v380 = vrot.slane %v378, 5
      %v381 = vsel %vm269, %v376, %v380
      %v382 = vld [vmem:[%s216 + $0x40] sm:$0xf]
      %v383 = vld [vmem:[%s216 + $0x44] sm:$0xf]
      %v384 = vld [vmem:[%s216 + $0x48] sm:$0xf]
      %v385 = vld [vmem:[%s216 + $0x4c] sm:$0xf]
      %v386 = vld [vmem:[%s216 + $0x50] sm:$0xf]
      %v387 = vld [vmem:[%s216 + $0x54] sm:$0xf]
      %v388 = vld [vmem:[%s216 + $0x58] sm:$0xf]
      %v389 = vld [vmem:[%s216 + $0x5c] sm:$0xf]
      %v390 = vld [vmem:[%s216 + $0x60] sm:$0xf]
      %v391 = vld [vmem:[%s216 + $0x64] sm:$0xf]
      %v392 = vld [vmem:[%s216 + $0x68] sm:$0xf]
      %v393 = vld [vmem:[%s216 + $0x6c] sm:$0xf]
      %v394 = vld [vmem:[%s216 + $0x70] sm:$0xf]
      %v395 = vld [vmem:[%s216 + $0x74] sm:$0xf]
      %v396 = vld [vmem:[%s216 + $0x78] sm:$0xf]
      %v397 = vld [vmem:[%s216 + $0x7c] sm:$0xf]
      %v398 = vunpack.c.l.b16 %v283
      %v399 = vunpack.c.l.b16 %v297
      %v400 = vunpack.c.l.b16 %v311
      %v401 = vunpack.c.l.b16 %v325
      %v402 = vunpack.c.l.b16 %v339
      %v403 = vunpack.c.l.b16 %v353
      %v404 = vunpack.c.l.b16 %v367
      %v405 = vunpack.c.l.b16 %v381
      %v406 = vpack.c.b16 %v399, %v398
      %v407 = vpack.c.b16 %v401, %v400
      %v408 = vpack.c.b16 %v403, %v402
      %v409 = vpack.c.b16 %v405, %v404
      %v430 = vunpack.c.l.b16 %v382
      %v431 = vunpack.c.l.b16 %v383
      %v432 = vunpack.c.l.b16 %v384
      %v433 = vunpack.c.l.b16 %v385
      %v434 = vunpack.c.l.b16 %v386
      %v435 = vunpack.c.l.b16 %v387
      %v436 = vunpack.c.l.b16 %v388
      %v437 = vunpack.c.l.b16 %v389
      %v438 = vunpack.c.l.b16 %v390
      %v439 = vunpack.c.l.b16 %v391
      %v440 = vunpack.c.l.b16 %v392
      %v441 = vunpack.c.l.b16 %v393
      %v442 = vunpack.c.l.b16 %v394
      %v443 = vunpack.c.l.b16 %v395
      %v444 = vunpack.c.l.b16 %v396
      %v445 = vunpack.c.l.b16 %v397
      %v446 = vpack.c.b16 %v431, %v430
      %v447 = vpack.c.b16 %v433, %v432
      %v448 = vpack.c.b16 %v435, %v434
      %v449 = vpack.c.b16 %v437, %v436
      %v450 = vpack.c.b16 %v439, %v438
      %v451 = vpack.c.b16 %v441, %v440
      %v452 = vpack.c.b16 %v443, %v442
      %v453 = vpack.c.b16 %v445, %v444
      %462 = vmatprep.subr.bf16.mxu0 0
      %463 = vmatpush1.bf16.msra.mxu0 %v446
      %464 = vmatprep.subr.bf16.mxu0 0
      %465 = vmatpush1.bf16.msra.mxu0 %v447
      %466 = vmatprep.subr.bf16.mxu0 0
      %467 = vmatpush1.bf16.msra.mxu0 %v448
      %468 = vmatprep.subr.bf16.mxu0 0
      %469 = vmatpush1.bf16.msra.mxu0 %v449
      %470 = vmatprep.subr.bf16.mxu0 0
      %471 = vmatpush1.bf16.msra.mxu0 %v450
      %472 = vmatprep.subr.bf16.mxu0 0
      %473 = vmatpush1.bf16.msra.mxu0 %v451
      %474 = vmatprep.subr.bf16.mxu0 0
      %475 = vmatpush1.bf16.msra.mxu0 %v452
      %476 = vmatprep.subr.bf16.mxu0 0
      %477 = vmatpush1.bf16.msra.mxu0 %v453
      %478 = vmatprep.subr.bf16.mxu0 0
      %479 = vmatpush1.bf16.msra.mxu0 0
      %480 = vmatprep.subr.bf16.mxu0 0
      %481 = vmatpush1.bf16.msra.mxu0 0
      %482 = vmatprep.subr.bf16.mxu0 0
      %483 = vmatpush1.bf16.msra.mxu0 0
      %484 = vmatprep.subr.bf16.mxu0 0
      %485 = vmatpush1.bf16.msra.mxu0 0
      %486 = vmatprep.subr.bf16.mxu0 0
      %487 = vmatpush1.bf16.msra.mxu0 0
      %488 = vmatprep.subr.bf16.mxu0 0
      %489 = vmatpush1.bf16.msra.mxu0 0
      %490 = vmatprep.subr.bf16.mxu0 0
      %491 = vmatpush1.bf16.msra.mxu0 0
      %492 = vmatprep.subr.bf16.mxu0 0
      %493 = vmatpush1.bf16.msra.mxu0 0
      %494 = vmatprep.mubr.bf16.mxu0 0
      %495 = vmatmul.mubr.bf16.gmra.mrb[0].mxu0 %v406
      %v496 = vpop.f32.mrb[0].mxu0
      %v497 = vadd.f32 0.0, %v496
      %v498 = vpop.f32.mrb[0].mxu0
      %v499 = vpop.f32.mrb[0].mxu0
      %v500 = vadd.f32 0.0, %v499
      %v501 = vpop.f32.mrb[0].mxu0
      %502 = vmatprep.mubr.bf16.mxu0 0
      %503 = vmatmul.mubr.bf16.gmra.mrb[0].mxu0 %v407
      %v504 = vpop.f32.mrb[0].mxu0
      %v505 = vadd.f32 0.0, %v504
      %v506 = vpop.f32.mrb[0].mxu0
      %v507 = vpop.f32.mrb[0].mxu0
      %v508 = vadd.f32 0.0, %v507
      %v509 = vpop.f32.mrb[0].mxu0
      %510 = vmatprep.mubr.bf16.mxu0 0
      %511 = vmatmul.mubr.bf16.gmra.mrb[0].mxu0 %v408
      %v512 = vpop.f32.mrb[0].mxu0
      %v513 = vadd.f32 0.0, %v512
      %v514 = vpop.f32.mrb[0].mxu0
      %v515 = vpop.f32.mrb[0].mxu0
      %v516 = vadd.f32 0.0, %v515
      %v517 = vpop.f32.mrb[0].mxu0
      %518 = vmatprep.mubr.bf16.mxu0 0
      %519 = vmatmul.mubr.bf16.gmra.mrb[0].mxu0 %v409
      %v520 = vpop.f32.mrb[0].mxu0
      %v521 = vadd.f32 0.0, %v520
      %v522 = vpop.f32.mrb[0].mxu0
      %v523 = vpop.f32.mrb[0].mxu0
      %v524 = vadd.f32 0.0, %v523
      %v525 = vpop.f32.mrb[0].mxu0
      %526 = vdwg.mxu0
      %v535 = vunpack.c.l.b16 %v235
      %v536 = vunpack.c.l.b16 %v236
      %v537 = vunpack.c.l.b16 %v237
      %v538 = vunpack.c.l.b16 %v238
      %v539 = vunpack.c.l.b16 %v239
      %v540 = vunpack.c.l.b16 %v240
      %v541 = vunpack.c.l.b16 %v241
      %v542 = vunpack.c.l.b16 %v242
      %v543 = vpack.c.b16 %v536, %v535
      %v544 = vpack.c.b16 %v538, %v537
      %v545 = vpack.c.b16 %v540, %v539
      %v546 = vpack.c.b16 %v542, %v541
      %v567 = vunpack.c.l.b16 %v243
      %v568 = vunpack.c.l.b16 %v244
      %v569 = vunpack.c.l.b16 %v245
      %v570 = vunpack.c.l.b16 %v246
      %v571 = vunpack.c.l.b16 %v247
      %v572 = vunpack.c.l.b16 %v248
      %v573 = vunpack.c.l.b16 %v249
      %v574 = vunpack.c.l.b16 %v250
      %v575 = vunpack.c.l.b16 %v251
      %v576 = vunpack.c.l.b16 %v252
      %v577 = vunpack.c.l.b16 %v253
      %v578 = vunpack.c.l.b16 %v254
      %v579 = vunpack.c.l.b16 %v255
      %v580 = vunpack.c.l.b16 %v256
      %v581 = vunpack.c.l.b16 %v257
      %v582 = vunpack.c.l.b16 %v258
      %v583 = vpack.c.b16 %v568, %v567
      %v584 = vpack.c.b16 %v570, %v569
      %v585 = vpack.c.b16 %v572, %v571
      %v586 = vpack.c.b16 %v574, %v573
      %v587 = vpack.c.b16 %v576, %v575
      %v588 = vpack.c.b16 %v578, %v577
      %v589 = vpack.c.b16 %v580, %v579
      %v590 = vpack.c.b16 %v582, %v581
      %599 = vmatprep.subr.bf16.mxu0 0
      %600 = vmatpush1.bf16.msra.mxu0 %v583
      %601 = vmatprep.subr.bf16.mxu0 0
      %602 = vmatpush1.bf16.msra.mxu0 %v584
      %603 = vmatprep.subr.bf16.mxu0 0
      %604 = vmatpush1.bf16.msra.mxu0 %v585
      %605 = vmatprep.subr.bf16.mxu0 0
      %606 = vmatpush1.bf16.msra.mxu0 %v586
      %607 = vmatprep.subr.bf16.mxu0 0
      %608 = vmatpush1.bf16.msra.mxu0 %v587
      %609 = vmatprep.subr.bf16.mxu0 0
      %610 = vmatpush1.bf16.msra.mxu0 %v588
      %611 = vmatprep.subr.bf16.mxu0 0
      %612 = vmatpush1.bf16.msra.mxu0 %v589
      %613 = vmatprep.subr.bf16.mxu0 0
      %614 = vmatpush1.bf16.msra.mxu0 %v590
      %615 = vmatprep.subr.bf16.mxu0 0
      %616 = vmatpush1.bf16.msra.mxu0 0
      %617 = vmatprep.subr.bf16.mxu0 0
      %618 = vmatpush1.bf16.msra.mxu0 0
      %619 = vmatprep.subr.bf16.mxu0 0
      %620 = vmatpush1.bf16.msra.mxu0 0
      %621 = vmatprep.subr.bf16.mxu0 0
      %622 = vmatpush1.bf16.msra.mxu0 0
      %623 = vmatprep.subr.bf16.mxu0 0
      %624 = vmatpush1.bf16.msra.mxu0 0
      %625 = vmatprep.subr.bf16.mxu0 0
      %626 = vmatpush1.bf16.msra.mxu0 0
      %627 = vmatprep.subr.bf16.mxu0 0
      %628 = vmatpush1.bf16.msra.mxu0 0
      %629 = vmatprep.subr.bf16.mxu0 0
      %630 = vmatpush1.bf16.msra.mxu0 0
      %631 = vmatprep.mubr.bf16.mxu0 0
      %632 = vmatmul.mubr.bf16.gmra.mrb[0].mxu0 %v543
      %v633 = vpop.f32.mrb[0].mxu0
      %v634 = vadd.f32 %v497, %v633
      %v635 = vpop.f32.mrb[0].mxu0
      %v636 = vpop.f32.mrb[0].mxu0
      %v637 = vadd.f32 %v500, %v636
      %v638 = vpop.f32.mrb[0].mxu0
      %639 = vmatprep.mubr.bf16.mxu0 0
      %640 = vmatmul.mubr.bf16.gmra.mrb[0].mxu0 %v544
      %v641 = vpop.f32.mrb[0].mxu0
      %v642 = vadd.f32 %v505, %v641
      %v643 = vpop.f32.mrb[0].mxu0
      %v644 = vpop.f32.mrb[0].mxu0
      %v645 = vadd.f32 %v508, %v644
      %v646 = vpop.f32.mrb[0].mxu0
      %647 = vmatprep.mubr.bf16.mxu0 0
      %648 = vmatmul.mubr.bf16.gmra.mrb[0].mxu0 %v545
      %v649 = vpop.f32.mrb[0].mxu0
      %v650 = vadd.f32 %v513, %v649
      %v651 = vpop.f32.mrb[0].mxu0
      %v652 = vpop.f32.mrb[0].mxu0
      %v653 = vadd.f32 %v516, %v652
      %v654 = vpop.f32.mrb[0].mxu0
      %655 = vmatprep.mubr.bf16.mxu0 0
      %656 = vmatmul.mubr.bf16.gmra.mrb[0].mxu0 %v546
      %v657 = vpop.f32.mrb[0].mxu0
      %v658 = vadd.f32 %v521, %v657
      %v659 = vpop.f32.mrb[0].mxu0
      %v660 = vpop.f32.mrb[0].mxu0
      %v661 = vadd.f32 %v524, %v660
      %v662 = vpop.f32.mrb[0].mxu0
      %663 = vdwg.mxu0
      %v664 = vld [vmem:[%s211] sm:$0xe]
      %v665 = vld [vmem:[%s211 + $0x8] sm:$0xe]
      %v666 = vld [vmem:[%s211 + $0x10] sm:$0xe]
      %v667 = vld [vmem:[%s211 + $0x18] sm:$0xe]
      %v668 = vld [vmem:[%s211 + $0x20] sm:$0xe]
      %v669 = vld [vmem:[%s211 + $0x28] sm:$0xe]
      %v670 = vld [vmem:[%s211 + $0x30] sm:$0xe]
      %v671 = vld [vmem:[%s211 + $0x38] sm:$0xe]
      %vm688 = vcmask 1042432
      %vm689 = vcmask 1046532
      %vm690 = vmor %vm688, %vm689
      %v691 = vrot.slane %v664, 5
      %v692 = vrot.slane %v691, 4
      %v693 = vrot.slane %v259, 5
      %v694 = vsel %vm690, %v692, %v693
      %v695 = vrot.slane %v665, 5
      %v696 = vrot.slane %v695, 4
      %v697 = vrot.slane %v260, 5
      %v698 = vsel %vm690, %v696, %v697
      %v699 = vrot.slane %v666, 5
      %v700 = vrot.slane %v699, 4
      %v701 = vrot.slane %v261, 5
      %v702 = vsel %vm690, %v700, %v701
      %v703 = vrot.slane %v667, 5
      %v704 = vrot.slane %v703, 4
      %v705 = vrot.slane %v262, 5
      %v706 = vsel %vm690, %v704, %v705
      %v707 = vrot.slane %v668, 5
      %v708 = vrot.slane %v707, 4
      %v709 = vrot.slane %v263, 5
      %v710 = vsel %vm690, %v708, %v709
      %v711 = vrot.slane %v669, 5
      %v712 = vrot.slane %v711, 4
      %v713 = vrot.slane %v264, 5
      %v714 = vsel %vm690, %v712, %v713
      %v715 = vrot.slane %v670, 5
      %v716 = vrot.slane %v715, 4
      %v717 = vrot.slane %v265, 5
      %v718 = vsel %vm690, %v716, %v717
      %v719 = vrot.slane %v671, 5
      %v720 = vrot.slane %v719, 4
      %v721 = vrot.slane %v266, 5
      %v722 = vsel %vm690, %v720, %v721
      %v723 = vld [vmem:[%s216 + $0x80] sm:$0xf]
      %v724 = vld [vmem:[%s216 + $0x84] sm:$0xf]
      %v725 = vld [vmem:[%s216 + $0x88] sm:$0xf]
      %v726 = vld [vmem:[%s216 + $0x8c] sm:$0xf]
      %v727 = vld [vmem:[%s216 + $0x90] sm:$0xf]
      %v728 = vld [vmem:[%s216 + $0x94] sm:$0xf]
      %v729 = vld [vmem:[%s216 + $0x98] sm:$0xf]
      %v730 = vld [vmem:[%s216 + $0x9c] sm:$0xf]
      %v731 = vld [vmem:[%s216 + $0xa0] sm:$0xf]
      %v732 = vld [vmem:[%s216 + $0xa4] sm:$0xf]
      %v733 = vld [vmem:[%s216 + $0xa8] sm:$0xf]
      %v734 = vld [vmem:[%s216 + $0xac] sm:$0xf]
      %v735 = vld [vmem:[%s216 + $0xb0] sm:$0xf]
      %v736 = vld [vmem:[%s216 + $0xb4] sm:$0xf]
      %v737 = vld [vmem:[%s216 + $0xb8] sm:$0xf]
      %v738 = vld [vmem:[%s216 + $0xbc] sm:$0xf]
      %v739 = vunpack.c.l.b16 %v694
      %v740 = vunpack.c.l.b16 %v698
      %v741 = vunpack.c.l.b16 %v702
      %v742 = vunpack.c.l.b16 %v706
      %v743 = vunpack.c.l.b16 %v710
      %v744 = vunpack.c.l.b16 %v714
      %v745 = vunpack.c.l.b16 %v718
      %v746 = vunpack.c.l.b16 %v722
      %v747 = vpack.c.b16 %v740, %v739
      %v748 = vpack.c.b16 %v742, %v741
      %v749 = vpack.c.b16 %v744, %v743
      %v750 = vpack.c.b16 %v746, %v745
      %v771 = vunpack.c.l.b16 %v723
      %v772 = vunpack.c.l.b16 %v724
      %v773 = vunpack.c.l.b16 %v725
      %v774 = vunpack.c.l.b16 %v726
      %v775 = vunpack.c.l.b16 %v727
      %v776 = vunpack.c.l.b16 %v728
      %v777 = vunpack.c.l.b16 %v729
      %v778 = vunpack.c.l.b16 %v730
      %v779 = vunpack.c.l.b16 %v731
      %v780 = vunpack.c.l.b16 %v732
      %v781 = vunpack.c.l.b16 %v733
      %v782 = vunpack.c.l.b16 %v734
      %v783 = vunpack.c.l.b16 %v735
      %v784 = vunpack.c.l.b16 %v736
      %v785 = vunpack.c.l.b16 %v737
      %v786 = vunpack.c.l.b16 %v738
      %v787 = vpack.c.b16 %v772, %v771
      %v788 = vpack.c.b16 %v774, %v773
      %v789 = vpack.c.b16 %v776, %v775
      %v790 = vpack.c.b16 %v778, %v777
      %v791 = vpack.c.b16 %v780, %v779
      %v792 = vpack.c.b16 %v782, %v781
      %v793 = vpack.c.b16 %v784, %v783
      %v794 = vpack.c.b16 %v786, %v785
      %803 = vmatprep.subr.bf16.mxu0 0
      %804 = vmatpush1.bf16.msra.mxu0 %v787
      %805 = vmatprep.subr.bf16.mxu0 0
      %806 = vmatpush1.bf16.msra.mxu0 %v788
      %807 = vmatprep.subr.bf16.mxu0 0
      %808 = vmatpush1.bf16.msra.mxu0 %v789
      %809 = vmatprep.subr.bf16.mxu0 0
      %810 = vmatpush1.bf16.msra.mxu0 %v790
      %811 = vmatprep.subr.bf16.mxu0 0
      %812 = vmatpush1.bf16.msra.mxu0 %v791
      %813 = vmatprep.subr.bf16.mxu0 0
      %814 = vmatpush1.bf16.msra.mxu0 %v792
      %815 = vmatprep.subr.bf16.mxu0 0
      %816 = vmatpush1.bf16.msra.mxu0 %v793
      %817 = vmatprep.subr.bf16.mxu0 0
      %818 = vmatpush1.bf16.msra.mxu0 %v794
      %819 = vmatprep.subr.bf16.mxu0 0
      %820 = vmatpush1.bf16.msra.mxu0 0
      %821 = vmatprep.subr.bf16.mxu0 0
      %822 = vmatpush1.bf16.msra.mxu0 0
      %823 = vmatprep.subr.bf16.mxu0 0
      %824 = vmatpush1.bf16.msra.mxu0 0
      %825 = vmatprep.subr.bf16.mxu0 0
      %826 = vmatpush1.bf16.msra.mxu0 0
      %827 = vmatprep.subr.bf16.mxu0 0
      %828 = vmatpush1.bf16.msra.mxu0 0
      %829 = vmatprep.subr.bf16.mxu0 0
      %830 = vmatpush1.bf16.msra.mxu0 0
      %831 = vmatprep.subr.bf16.mxu0 0
      %832 = vmatpush1.bf16.msra.mxu0 0
      %833 = vmatprep.subr.bf16.mxu0 0
      %834 = vmatpush1.bf16.msra.mxu0 0
      %835 = vmatprep.mubr.bf16.mxu0 0
      %836 = vmatmul.mubr.bf16.gmra.mrb[0].mxu0 %v747
      %v837 = vpop.f32.mrb[0].mxu0
      %v838 = vadd.f32 0.0, %v837
      %v839 = vpop.f32.mrb[0].mxu0
      %v840 = vpop.f32.mrb[0].mxu0
      %v841 = vadd.f32 0.0, %v840
      %v842 = vpop.f32.mrb[0].mxu0
      %843 = vmatprep.mubr.bf16.mxu0 0
      %844 = vmatmul.mubr.bf16.gmra.mrb[0].mxu0 %v748
      %v845 = vpop.f32.mrb[0].mxu0
      %v846 = vadd.f32 0.0, %v845
      %v847 = vpop.f32.mrb[0].mxu0
      %v848 = vpop.f32.mrb[0].mxu0
      %v849 = vadd.f32 0.0, %v848
      %v850 = vpop.f32.mrb[0].mxu0
      %851 = vmatprep.mubr.bf16.mxu0 0
      %852 = vmatmul.mubr.bf16.gmra.mrb[0].mxu0 %v749
      %v853 = vpop.f32.mrb[0].mxu0
      %v854 = vadd.f32 0.0, %v853
      %v855 = vpop.f32.mrb[0].mxu0
      %v856 = vpop.f32.mrb[0].mxu0
      %v857 = vadd.f32 0.0, %v856
      %v858 = vpop.f32.mrb[0].mxu0
      %859 = vmatprep.mubr.bf16.mxu0 0
      %860 = vmatmul.mubr.bf16.gmra.mrb[0].mxu0 %v750
      %v861 = vpop.f32.mrb[0].mxu0
      %v862 = vadd.f32 0.0, %v861
      %v863 = vpop.f32.mrb[0].mxu0
      %v864 = vpop.f32.mrb[0].mxu0
      %v865 = vadd.f32 0.0, %v864
      %v866 = vpop.f32.mrb[0].mxu0
      %867 = vdwg.mxu0
      %v868 = vadd.f32 %v634, %v838
      %v869 = vadd.f32 %v637, %v841
      %v870 = vadd.f32 %v642, %v846
      %v871 = vadd.f32 %v645, %v849
      %v872 = vadd.f32 %v650, %v854
      %v873 = vadd.f32 %v653, %v857
      %v874 = vadd.f32 %v658, %v862
      %v875 = vadd.f32 %v661, %v865
      %s876 = scalar_lea.vmem %s211, 8
      %v877 = vld [vmem:[%s876] sm:$0xf]
      %v878 = vld [vmem:[%s876 + $0x8] sm:$0xf]
      %v879 = vld [vmem:[%s876 + $0x10] sm:$0xf]
      %v880 = vld [vmem:[%s876 + $0x18] sm:$0xf]
      %v881 = vld [vmem:[%s876 + $0x20] sm:$0xf]
      %v882 = vld [vmem:[%s876 + $0x28] sm:$0xf]
      %v883 = vld [vmem:[%s876 + $0x30] sm:$0xf]
      %v884 = vld [vmem:[%s876 + $0x38] sm:$0xf]
      %v885 = vld [vmem:[%s216 + $0xc0] sm:$0xf]
      %v886 = vld [vmem:[%s216 + $0xc4] sm:$0xf]
      %v887 = vld [vmem:[%s216 + $0xc8] sm:$0xf]
      %v888 = vld [vmem:[%s216 + $0xcc] sm:$0xf]
      %v889 = vld [vmem:[%s216 + $0xd0] sm:$0xf]
      %v890 = vld [vmem:[%s216 + $0xd4] sm:$0xf]
      %v891 = vld [vmem:[%s216 + $0xd8] sm:$0xf]
      %v892 = vld [vmem:[%s216 + $0xdc] sm:$0xf]
      %v893 = vld [vmem:[%s216 + $0xe0] sm:$0xf]
      %v894 = vld [vmem:[%s216 + $0xe4] sm:$0xf]
      %v895 = vld [vmem:[%s216 + $0xe8] sm:$0xf]
      %v896 = vld [vmem:[%s216 + $0xec] sm:$0xf]
      %v897 = vld [vmem:[%s216 + $0xf0] sm:$0xf]
      %v898 = vld [vmem:[%s216 + $0xf4] sm:$0xf]
      %v899 = vld [vmem:[%s216 + $0xf8] sm:$0xf]
      %v900 = vld [vmem:[%s216 + $0xfc] sm:$0xf]
      %v909 = vunpack.c.l.b16 %v877
      %v910 = vunpack.c.l.b16 %v878
      %v911 = vunpack.c.l.b16 %v879
      %v912 = vunpack.c.l.b16 %v880
      %v913 = vunpack.c.l.b16 %v881
      %v914 = vunpack.c.l.b16 %v882
      %v915 = vunpack.c.l.b16 %v883
      %v916 = vunpack.c.l.b16 %v884
      %v917 = vpack.c.b16 %v910, %v909
      %v918 = vpack.c.b16 %v912, %v911
      %v919 = vpack.c.b16 %v914, %v913
      %v920 = vpack.c.b16 %v916, %v915
      %v941 = vunpack.c.l.b16 %v885
      %v942 = vunpack.c.l.b16 %v886
      %v943 = vunpack.c.l.b16 %v887
      %v944 = vunpack.c.l.b16 %v888
      %v945 = vunpack.c.l.b16 %v889
      %v946 = vunpack.c.l.b16 %v890
      %v947 = vunpack.c.l.b16 %v891
      %v948 = vunpack.c.l.b16 %v892
      %v949 = vunpack.c.l.b16 %v893
      %v950 = vunpack.c.l.b16 %v894
      %v951 = vunpack.c.l.b16 %v895
      %v952 = vunpack.c.l.b16 %v896
      %v953 = vunpack.c.l.b16 %v897
      %v954 = vunpack.c.l.b16 %v898
      %v955 = vunpack.c.l.b16 %v899
      %v956 = vunpack.c.l.b16 %v900
      %v957 = vpack.c.b16 %v942, %v941
      %v958 = vpack.c.b16 %v944, %v943
      %v959 = vpack.c.b16 %v946, %v945
      %v960 = vpack.c.b16 %v948, %v947
      %v961 = vpack.c.b16 %v950, %v949
      %v962 = vpack.c.b16 %v952, %v951
      %v963 = vpack.c.b16 %v954, %v953
      %v964 = vpack.c.b16 %v956, %v955
      %973 = vmatprep.subr.bf16.mxu0 0
      %974 = vmatpush1.bf16.msra.mxu0 %v957
      %975 = vmatprep.subr.bf16.mxu0 0
      %976 = vmatpush1.bf16.msra.mxu0 %v958
      %977 = vmatprep.subr.bf16.mxu0 0
      %978 = vmatpush1.bf16.msra.mxu0 %v959
      %979 = vmatprep.subr.bf16.mxu0 0
      %980 = vmatpush1.bf16.msra.mxu0 %v960
      %981 = vmatprep.subr.bf16.mxu0 0
      %982 = vmatpush1.bf16.msra.mxu0 %v961
      %983 = vmatprep.subr.bf16.mxu0 0
      %984 = vmatpush1.bf16.msra.mxu0 %v962
      %985 = vmatprep.subr.bf16.mxu0 0
      %986 = vmatpush1.bf16.msra.mxu0 %v963
      %987 = vmatprep.subr.bf16.mxu0 0
      %988 = vmatpush1.bf16.msra.mxu0 %v964
      %989 = vmatprep.subr.bf16.mxu0 0
      %990 = vmatpush1.bf16.msra.mxu0 0
      %991 = vmatprep.subr.bf16.mxu0 0
      %992 = vmatpush1.bf16.msra.mxu0 0
      %993 = vmatprep.subr.bf16.mxu0 0
      %994 = vmatpush1.bf16.msra.mxu0 0
      %995 = vmatprep.subr.bf16.mxu0 0
      %996 = vmatpush1.bf16.msra.mxu0 0
      %997 = vmatprep.subr.bf16.mxu0 0
      %998 = vmatpush1.bf16.msra.mxu0 0
      %999 = vmatprep.subr.bf16.mxu0 0
      %1000 = vmatpush1.bf16.msra.mxu0 0
      %1001 = vmatprep.subr.bf16.mxu0 0
      %1002 = vmatpush1.bf16.msra.mxu0 0
      %1003 = vmatprep.subr.bf16.mxu0 0
      %1004 = vmatpush1.bf16.msra.mxu0 0
      %1005 = vmatprep.mubr.bf16.mxu0 0
      %1006 = vmatmul.mubr.bf16.gmra.mrb[0].mxu0 %v917
      %v1007 = vpop.f32.mrb[0].mxu0
      %v1008 = vadd.f32 0.0, %v1007
      %v1009 = vpop.f32.mrb[0].mxu0
      %v1010 = vpop.f32.mrb[0].mxu0
      %v1011 = vadd.f32 0.0, %v1010
      %v1012 = vpop.f32.mrb[0].mxu0
      %1013 = vmatprep.mubr.bf16.mxu0 0
      %1014 = vmatmul.mubr.bf16.gmra.mrb[0].mxu0 %v918
      %v1015 = vpop.f32.mrb[0].mxu0
      %v1016 = vadd.f32 0.0, %v1015
      %v1017 = vpop.f32.mrb[0].mxu0
      %v1018 = vpop.f32.mrb[0].mxu0
      %v1019 = vadd.f32 0.0, %v1018
      %v1020 = vpop.f32.mrb[0].mxu0
      %1021 = vmatprep.mubr.bf16.mxu0 0
      %1022 = vmatmul.mubr.bf16.gmra.mrb[0].mxu0 %v919
      %v1023 = vpop.f32.mrb[0].mxu0
      %v1024 = vadd.f32 0.0, %v1023
      %v1025 = vpop.f32.mrb[0].mxu0
      %v1026 = vpop.f32.mrb[0].mxu0
      %v1027 = vadd.f32 0.0, %v1026
      %v1028 = vpop.f32.mrb[0].mxu0
      %1029 = vmatprep.mubr.bf16.mxu0 0
      %1030 = vmatmul.mubr.bf16.gmra.mrb[0].mxu0 %v920
      %v1031 = vpop.f32.mrb[0].mxu0
      %v1032 = vadd.f32 0.0, %v1031
      %v1033 = vpop.f32.mrb[0].mxu0
      %v1034 = vpop.f32.mrb[0].mxu0
      %v1035 = vadd.f32 0.0, %v1034
      %v1036 = vpop.f32.mrb[0].mxu0
      %1037 = vdwg.mxu0
      %v1038 = vadd.f32 %v868, %v1008
      %v1039 = vadd.f32 %v869, %v1011
      %v1040 = vadd.f32 %v870, %v1016
      %v1041 = vadd.f32 %v871, %v1019
      %v1042 = vadd.f32 %v872, %v1024
      %v1043 = vadd.f32 %v873, %v1027
      %v1044 = vadd.f32 %v874, %v1032
      %v1045 = vadd.f32 %v875, %v1035
      %v1046 = vld [vmem:[%s876] sm:$0xf]
      %v1047 = vld [vmem:[%s876 + $0x4] sm:$0x1]
      %v1048 = vld [vmem:[%s876 + $0x8] sm:$0xf]
      %v1049 = vld [vmem:[%s876 + $0xc] sm:$0x1]
      %v1050 = vld [vmem:[%s876 + $0x10] sm:$0xf]
      %v1051 = vld [vmem:[%s876 + $0x14] sm:$0x1]
      %v1052 = vld [vmem:[%s876 + $0x18] sm:$0xf]
      %v1053 = vld [vmem:[%s876 + $0x1c] sm:$0x1]
      %v1054 = vld [vmem:[%s876 + $0x20] sm:$0xf]
      %v1055 = vld [vmem:[%s876 + $0x24] sm:$0x1]
      %v1056 = vld [vmem:[%s876 + $0x28] sm:$0xf]
      %v1057 = vld [vmem:[%s876 + $0x2c] sm:$0x1]
      %v1058 = vld [vmem:[%s876 + $0x30] sm:$0xf]
      %v1059 = vld [vmem:[%s876 + $0x34] sm:$0x1]
      %v1060 = vld [vmem:[%s876 + $0x38] sm:$0xf]
      %v1061 = vld [vmem:[%s876 + $0x3c] sm:$0x1]
      %v1063 = vshrl.u32 %v1046, 16
      %v1065 = vrot.slane %v1063, 4
      %v1066 = vshll.u32 %v1046, 16
      %v1068 = vrot.slane %v1066, 5
      %v1069 = vor.u32 %v1065, %v1068
      %v1070 = vrot.slane %v1069, 4
      %v1072 = vshll.u32 %v1047, 16
      %v1074 = vrot.slane %v1072, 5
      %v1075 = vsel %vm269, %v1070, %v1074
      %v1077 = vshrl.u32 %v1048, 16
      %v1079 = vrot.slane %v1077, 4
      %v1080 = vshll.u32 %v1048, 16
      %v1082 = vrot.slane %v1080, 5
      %v1083 = vor.u32 %v1079, %v1082
      %v1084 = vrot.slane %v1083, 4
      %v1086 = vshll.u32 %v1049, 16
      %v1088 = vrot.slane %v1086, 5
      %v1089 = vsel %vm269, %v1084, %v1088
      %v1091 = vshrl.u32 %v1050, 16
      %v1093 = vrot.slane %v1091, 4
      %v1094 = vshll.u32 %v1050, 16
      %v1096 = vrot.slane %v1094, 5
      %v1097 = vor.u32 %v1093, %v1096
      %v1098 = vrot.slane %v1097, 4
      %v1100 = vshll.u32 %v1051, 16
      %v1102 = vrot.slane %v1100, 5
      %v1103 = vsel %vm269, %v1098, %v1102
      %v1105 = vshrl.u32 %v1052, 16
      %v1107 = vrot.slane %v1105, 4
      %v1108 = vshll.u32 %v1052, 16
      %v1110 = vrot.slane %v1108, 5
      %v1111 = vor.u32 %v1107, %v1110
      %v1112 = vrot.slane %v1111, 4
      %v1114 = vshll.u32 %v1053, 16
      %v1116 = vrot.slane %v1114, 5
      %v1117 = vsel %vm269, %v1112, %v1116
      %v1119 = vshrl.u32 %v1054, 16
      %v1121 = vrot.slane %v1119, 4
      %v1122 = vshll.u32 %v1054, 16
      %v1124 = vrot.slane %v1122, 5
      %v1125 = vor.u32 %v1121, %v1124
      %v1126 = vrot.slane %v1125, 4
      %v1128 = vshll.u32 %v1055, 16
      %v1130 = vrot.slane %v1128, 5
      %v1131 = vsel %vm269, %v1126, %v1130
      %v1133 = vshrl.u32 %v1056, 16
      %v1135 = vrot.slane %v1133, 4
      %v1136 = vshll.u32 %v1056, 16
      %v1138 = vrot.slane %v1136, 5
      %v1139 = vor.u32 %v1135, %v1138
      %v1140 = vrot.slane %v1139, 4
      %v1142 = vshll.u32 %v1057, 16
      %v1144 = vrot.slane %v1142, 5
      %v1145 = vsel %vm269, %v1140, %v1144
      %v1147 = vshrl.u32 %v1058, 16
      %v1149 = vrot.slane %v1147, 4
      %v1150 = vshll.u32 %v1058, 16
      %v1152 = vrot.slane %v1150, 5
      %v1153 = vor.u32 %v1149, %v1152
      %v1154 = vrot.slane %v1153, 4
      %v1156 = vshll.u32 %v1059, 16
      %v1158 = vrot.slane %v1156, 5
      %v1159 = vsel %vm269, %v1154, %v1158
      %v1161 = vshrl.u32 %v1060, 16
      %v1163 = vrot.slane %v1161, 4
      %v1164 = vshll.u32 %v1060, 16
      %v1166 = vrot.slane %v1164, 5
      %v1167 = vor.u32 %v1163, %v1166
      %v1168 = vrot.slane %v1167, 4
      %v1170 = vshll.u32 %v1061, 16
      %v1172 = vrot.slane %v1170, 5
      %v1173 = vsel %vm269, %v1168, %v1172
      %v1174 = vld [vmem:[%s216 + $0x100] sm:$0xf]
      %v1175 = vld [vmem:[%s216 + $0x104] sm:$0xf]
      %v1176 = vld [vmem:[%s216 + $0x108] sm:$0xf]
      %v1177 = vld [vmem:[%s216 + $0x10c] sm:$0xf]
      %v1178 = vld [vmem:[%s216 + $0x110] sm:$0xf]
      %v1179 = vld [vmem:[%s216 + $0x114] sm:$0xf]
      %v1180 = vld [vmem:[%s216 + $0x118] sm:$0xf]
      %v1181 = vld [vmem:[%s216 + $0x11c] sm:$0xf]
      %v1182 = vld [vmem:[%s216 + $0x120] sm:$0xf]
      %v1183 = vld [vmem:[%s216 + $0x124] sm:$0xf]
      %v1184 = vld [vmem:[%s216 + $0x128] sm:$0xf]
      %v1185 = vld [vmem:[%s216 + $0x12c] sm:$0xf]
      %v1186 = vld [vmem:[%s216 + $0x130] sm:$0xf]
      %v1187 = vld [vmem:[%s216 + $0x134] sm:$0xf]
      %v1188 = vld [vmem:[%s216 + $0x138] sm:$0xf]
      %v1189 = vld [vmem:[%s216 + $0x13c] sm:$0xf]
      %v1190 = vunpack.c.l.b16 %v1075
      %v1191 = vunpack.c.l.b16 %v1089
      %v1192 = vunpack.c.l.b16 %v1103
      %v1193 = vunpack.c.l.b16 %v1117
      %v1194 = vunpack.c.l.b16 %v1131
      %v1195 = vunpack.c.l.b16 %v1145
      %v1196 = vunpack.c.l.b16 %v1159
      %v1197 = vunpack.c.l.b16 %v1173
      %v1198 = vpack.c.b16 %v1191, %v1190
      %v1199 = vpack.c.b16 %v1193, %v1192
      %v1200 = vpack.c.b16 %v1195, %v1194
      %v1201 = vpack.c.b16 %v1197, %v1196
      %v1222 = vunpack.c.l.b16 %v1174
      %v1223 = vunpack.c.l.b16 %v1175
      %v1224 = vunpack.c.l.b16 %v1176
      %v1225 = vunpack.c.l.b16 %v1177
      %v1226 = vunpack.c.l.b16 %v1178
      %v1227 = vunpack.c.l.b16 %v1179
      %v1228 = vunpack.c.l.b16 %v1180
      %v1229 = vunpack.c.l.b16 %v1181
      %v1230 = vunpack.c.l.b16 %v1182
      %v1231 = vunpack.c.l.b16 %v1183
      %v1232 = vunpack.c.l.b16 %v1184
      %v1233 = vunpack.c.l.b16 %v1185
      %v1234 = vunpack.c.l.b16 %v1186
      %v1235 = vunpack.c.l.b16 %v1187
      %v1236 = vunpack.c.l.b16 %v1188
      %v1237 = vunpack.c.l.b16 %v1189
      %v1238 = vpack.c.b16 %v1223, %v1222
      %v1239 = vpack.c.b16 %v1225, %v1224
      %v1240 = vpack.c.b16 %v1227, %v1226
      %v1241 = vpack.c.b16 %v1229, %v1228
      %v1242 = vpack.c.b16 %v1231, %v1230
      %v1243 = vpack.c.b16 %v1233, %v1232
      %v1244 = vpack.c.b16 %v1235, %v1234
      %v1245 = vpack.c.b16 %v1237, %v1236
      %1254 = vmatprep.subr.bf16.mxu0 0
      %1255 = vmatpush1.bf16.msra.mxu0 %v1238
      %1256 = vmatprep.subr.bf16.mxu0 0
      %1257 = vmatpush1.bf16.msra.mxu0 %v1239
      %1258 = vmatprep.subr.bf16.mxu0 0
      %1259 = vmatpush1.bf16.msra.mxu0 %v1240
      %1260 = vmatprep.subr.bf16.mxu0 0
      %1261 = vmatpush1.bf16.msra.mxu0 %v1241
      %1262 = vmatprep.subr.bf16.mxu0 0
      %1263 = vmatpush1.bf16.msra.mxu0 %v1242
      %1264 = vmatprep.subr.bf16.mxu0 0
      %1265 = vmatpush1.bf16.msra.mxu0 %v1243
      %1266 = vmatprep.subr.bf16.mxu0 0
      %1267 = vmatpush1.bf16.msra.mxu0 %v1244
      %1268 = vmatprep.subr.bf16.mxu0 0
      %1269 = vmatpush1.bf16.msra.mxu0 %v1245
      %1270 = vmatprep.subr.bf16.mxu0 0
      %1271 = vmatpush1.bf16.msra.mxu0 0
      %1272 = vmatprep.subr.bf16.mxu0 0
      %1273 = vmatpush1.bf16.msra.mxu0 0
      %1274 = vmatprep.subr.bf16.mxu0 0
      %1275 = vmatpush1.bf16.msra.mxu0 0
      %1276 = vmatprep.subr.bf16.mxu0 0
      %1277 = vmatpush1.bf16.msra.mxu0 0
      %1278 = vmatprep.subr.bf16.mxu0 0
      %1279 = vmatpush1.bf16.msra.mxu0 0
      %1280 = vmatprep.subr.bf16.mxu0 0
      %1281 = vmatpush1.bf16.msra.mxu0 0
      %1282 = vmatprep.subr.bf16.mxu0 0
      %1283 = vmatpush1.bf16.msra.mxu0 0
      %1284 = vmatprep.subr.bf16.mxu0 0
      %1285 = vmatpush1.bf16.msra.mxu0 0
      %1286 = vmatprep.mubr.bf16.mxu0 0
      %1287 = vmatmul.mubr.bf16.gmra.mrb[0].mxu0 %v1198
      %v1288 = vpop.f32.mrb[0].mxu0
      %v1289 = vadd.f32 0.0, %v1288
      %v1290 = vpop.f32.mrb[0].mxu0
      %v1291 = vpop.f32.mrb[0].mxu0
      %v1292 = vadd.f32 0.0, %v1291
      %v1293 = vpop.f32.mrb[0].mxu0
      %1294 = vmatprep.mubr.bf16.mxu0 0
      %1295 = vmatmul.mubr.bf16.gmra.mrb[0].mxu0 %v1199
      %v1296 = vpop.f32.mrb[0].mxu0
      %v1297 = vadd.f32 0.0, %v1296
      %v1298 = vpop.f32.mrb[0].mxu0
      %v1299 = vpop.f32.mrb[0].mxu0
      %v1300 = vadd.f32 0.0, %v1299
      %v1301 = vpop.f32.mrb[0].mxu0
      %1302 = vmatprep.mubr.bf16.mxu0 0
      %1303 = vmatmul.mubr.bf16.gmra.mrb[0].mxu0 %v1200
      %v1304 = vpop.f32.mrb[0].mxu0
      %v1305 = vadd.f32 0.0, %v1304
      %v1306 = vpop.f32.mrb[0].mxu0
      %v1307 = vpop.f32.mrb[0].mxu0
      %v1308 = vadd.f32 0.0, %v1307
      %v1309 = vpop.f32.mrb[0].mxu0
      %1310 = vmatprep.mubr.bf16.mxu0 0
      %1311 = vmatmul.mubr.bf16.gmra.mrb[0].mxu0 %v1201
      %v1312 = vpop.f32.mrb[0].mxu0
      %v1313 = vadd.f32 0.0, %v1312
      %v1314 = vpop.f32.mrb[0].mxu0
      %v1315 = vpop.f32.mrb[0].mxu0
      %v1316 = vadd.f32 0.0, %v1315
      %v1317 = vpop.f32.mrb[0].mxu0
      %1318 = vdwg.mxu0
      %v1319 = vadd.f32 %v1038, %v1289
      %v1320 = vadd.f32 %v1039, %v1292
      %v1321 = vadd.f32 %v1040, %v1297
      %v1322 = vadd.f32 %v1041, %v1300
      %v1323 = vadd.f32 %v1042, %v1305
      %v1324 = vadd.f32 %v1043, %v1308
      %v1325 = vadd.f32 %v1044, %v1313
      %v1326 = vadd.f32 %v1045, %v1316
      %v1327 = vld [vmem:[%s876] sm:$0xe]
      %v1328 = vld [vmem:[%s876 + $0x8] sm:$0xe]
      %v1329 = vld [vmem:[%s876 + $0x10] sm:$0xe]
      %v1330 = vld [vmem:[%s876 + $0x18] sm:$0xe]
      %v1331 = vld [vmem:[%s876 + $0x20] sm:$0xe]
      %v1332 = vld [vmem:[%s876 + $0x28] sm:$0xe]
      %v1333 = vld [vmem:[%s876 + $0x30] sm:$0xe]
      %v1334 = vld [vmem:[%s876 + $0x38] sm:$0xe]
      %v1351 = vrot.slane %v1327, 5
      %v1352 = vrot.slane %v1351, 4
      %v1353 = vrot.slane %v1047, 5
      %v1354 = vsel %vm690, %v1352, %v1353
      %v1355 = vrot.slane %v1328, 5
      %v1356 = vrot.slane %v1355, 4
      %v1357 = vrot.slane %v1049, 5
      %v1358 = vsel %vm690, %v1356, %v1357
      %v1359 = vrot.slane %v1329, 5
      %v1360 = vrot.slane %v1359, 4
      %v1361 = vrot.slane %v1051, 5
      %v1362 = vsel %vm690, %v1360, %v1361
      %v1363 = vrot.slane %v1330, 5
      %v1364 = vrot.slane %v1363, 4
      %v1365 = vrot.slane %v1053, 5
      %v1366 = vsel %vm690, %v1364, %v1365
      %v1367 = vrot.slane %v1331, 5
      %v1368 = vrot.slane %v1367, 4
      %v1369 = vrot.slane %v1055, 5
      %v1370 = vsel %vm690, %v1368, %v1369
      %v1371 = vrot.slane %v1332, 5
      %v1372 = vrot.slane %v1371, 4
      %v1373 = vrot.slane %v1057, 5
      %v1374 = vsel %vm690, %v1372, %v1373
      %v1375 = vrot.slane %v1333, 5
      %v1376 = vrot.slane %v1375, 4
      %v1377 = vrot.slane %v1059, 5
      %v1378 = vsel %vm690, %v1376, %v1377
      %v1379 = vrot.slane %v1334, 5
      %v1380 = vrot.slane %v1379, 4
      %v1381 = vrot.slane %v1061, 5
      %v1382 = vsel %vm690, %v1380, %v1381
      %v1383 = vld [vmem:[%s216 + $0x140] sm:$0xf]
      %v1384 = vld [vmem:[%s216 + $0x144] sm:$0xf]
      %v1385 = vld [vmem:[%s216 + $0x148] sm:$0xf]
      %v1386 = vld [vmem:[%s216 + $0x14c] sm:$0xf]
      %v1387 = vld [vmem:[%s216 + $0x150] sm:$0xf]
      %v1388 = vld [vmem:[%s216 + $0x154] sm:$0xf]
      %v1389 = vld [vmem:[%s216 + $0x158] sm:$0xf]
      %v1390 = vld [vmem:[%s216 + $0x15c] sm:$0xf]
      %v1391 = vld [vmem:[%s216 + $0x160] sm:$0xf]
      %v1392 = vld [vmem:[%s216 + $0x164] sm:$0xf]
      %v1393 = vld [vmem:[%s216 + $0x168] sm:$0xf]
      %v1394 = vld [vmem:[%s216 + $0x16c] sm:$0xf]
      %v1395 = vld [vmem:[%s216 + $0x170] sm:$0xf]
      %v1396 = vld [vmem:[%s216 + $0x174] sm:$0xf]
      %v1397 = vld [vmem:[%s216 + $0x178] sm:$0xf]
      %v1398 = vld [vmem:[%s216 + $0x17c] sm:$0xf]
      %v1399 = vunpack.c.l.b16 %v1354
      %v1400 = vunpack.c.l.b16 %v1358
      %v1401 = vunpack.c.l.b16 %v1362
      %v1402 = vunpack.c.l.b16 %v1366
      %v1403 = vunpack.c.l.b16 %v1370
      %v1404 = vunpack.c.l.b16 %v1374
      %v1405 = vunpack.c.l.b16 %v1378
      %v1406 = vunpack.c.l.b16 %v1382
      %v1407 = vpack.c.b16 %v1400, %v1399
      %v1408 = vpack.c.b16 %v1402, %v1401
      %v1409 = vpack.c.b16 %v1404, %v1403
      %v1410 = vpack.c.b16 %v1406, %v1405
      %v1431 = vunpack.c.l.b16 %v1383
      %v1432 = vunpack.c.l.b16 %v1384
      %v1433 = vunpack.c.l.b16 %v1385
      %v1434 = vunpack.c.l.b16 %v1386
      %v1435 = vunpack.c.l.b16 %v1387
      %v1436 = vunpack.c.l.b16 %v1388
      %v1437 = vunpack.c.l.b16 %v1389
      %v1438 = vunpack.c.l.b16 %v1390
      %v1439 = vunpack.c.l.b16 %v1391
      %v1440 = vunpack.c.l.b16 %v1392
      %v1441 = vunpack.c.l.b16 %v1393
      %v1442 = vunpack.c.l.b16 %v1394
      %v1443 = vunpack.c.l.b16 %v1395
      %v1444 = vunpack.c.l.b16 %v1396
      %v1445 = vunpack.c.l.b16 %v1397
      %v1446 = vunpack.c.l.b16 %v1398
      %v1447 = vpack.c.b16 %v1432, %v1431
      %v1448 = vpack.c.b16 %v1434, %v1433
      %v1449 = vpack.c.b16 %v1436, %v1435
      %v1450 = vpack.c.b16 %v1438, %v1437
      %v1451 = vpack.c.b16 %v1440, %v1439
      %v1452 = vpack.c.b16 %v1442, %v1441
      %v1453 = vpack.c.b16 %v1444, %v1443
      %v1454 = vpack.c.b16 %v1446, %v1445
      %1463 = vmatprep.subr.bf16.mxu0 0
      %1464 = vmatpush1.bf16.msra.mxu0 %v1447
      %1465 = vmatprep.subr.bf16.mxu0 0
      %1466 = vmatpush1.bf16.msra.mxu0 %v1448
      %1467 = vmatprep.subr.bf16.mxu0 0
      %1468 = vmatpush1.bf16.msra.mxu0 %v1449
      %1469 = vmatprep.subr.bf16.mxu0 0
      %1470 = vmatpush1.bf16.msra.mxu0 %v1450
      %1471 = vmatprep.subr.bf16.mxu0 0
      %1472 = vmatpush1.bf16.msra.mxu0 %v1451
      %1473 = vmatprep.subr.bf16.mxu0 0
      %1474 = vmatpush1.bf16.msra.mxu0 %v1452
      %1475 = vmatprep.subr.bf16.mxu0 0
      %1476 = vmatpush1.bf16.msra.mxu0 %v1453
      %1477 = vmatprep.subr.bf16.mxu0 0
      %1478 = vmatpush1.bf16.msra.mxu0 %v1454
      %1479 = vmatprep.subr.bf16.mxu0 0
      %1480 = vmatpush1.bf16.msra.mxu0 0
      %1481 = vmatprep.subr.bf16.mxu0 0
      %1482 = vmatpush1.bf16.msra.mxu0 0
      %1483 = vmatprep.subr.bf16.mxu0 0
      %1484 = vmatpush1.bf16.msra.mxu0 0
      %1485 = vmatprep.subr.bf16.mxu0 0
      %1486 = vmatpush1.bf16.msra.mxu0 0
      %1487 = vmatprep.subr.bf16.mxu0 0
      %1488 = vmatpush1.bf16.msra.mxu0 0
      %1489 = vmatprep.subr.bf16.mxu0 0
      %1490 = vmatpush1.bf16.msra.mxu0 0
      %1491 = vmatprep.subr.bf16.mxu0 0
      %1492 = vmatpush1.bf16.msra.mxu0 0
      %1493 = vmatprep.subr.bf16.mxu0 0
      %1494 = vmatpush1.bf16.msra.mxu0 0
      %1495 = vmatprep.mubr.bf16.mxu0 0
      %1496 = vmatmul.mubr.bf16.gmra.mrb[0].mxu0 %v1407
      %v1497 = vpop.f32.mrb[0].mxu0
      %v1498 = vadd.f32 0.0, %v1497
      %v1499 = vpop.f32.mrb[0].mxu0
      %v1500 = vpop.f32.mrb[0].mxu0
      %v1501 = vadd.f32 0.0, %v1500
      %v1502 = vpop.f32.mrb[0].mxu0
      %1503 = vmatprep.mubr.bf16.mxu0 0
      %1504 = vmatmul.mubr.bf16.gmra.mrb[0].mxu0 %v1408
      %v1505 = vpop.f32.mrb[0].mxu0
      %v1506 = vadd.f32 0.0, %v1505
      %v1507 = vpop.f32.mrb[0].mxu0
      %v1508 = vpop.f32.mrb[0].mxu0
      %v1509 = vadd.f32 0.0, %v1508
      %v1510 = vpop.f32.mrb[0].mxu0
      %1511 = vmatprep.mubr.bf16.mxu0 0
      %1512 = vmatmul.mubr.bf16.gmra.mrb[0].mxu0 %v1409
      %v1513 = vpop.f32.mrb[0].mxu0
      %v1514 = vadd.f32 0.0, %v1513
      %v1515 = vpop.f32.mrb[0].mxu0
      %v1516 = vpop.f32.mrb[0].mxu0
      %v1517 = vadd.f32 0.0, %v1516
      %v1518 = vpop.f32.mrb[0].mxu0
      %1519 = vmatprep.mubr.bf16.mxu0 0
      %1520 = vmatmul.mubr.bf16.gmra.mrb[0].mxu0 %v1410
      %v1521 = vpop.f32.mrb[0].mxu0
      %v1522 = vadd.f32 0.0, %v1521
      %v1523 = vpop.f32.mrb[0].mxu0
      %v1524 = vpop.f32.mrb[0].mxu0
      %v1525 = vadd.f32 0.0, %v1524
      %v1526 = vpop.f32.mrb[0].mxu0
      %1527 = vdwg.mxu0
      %v1528 = vadd.f32 %v1319, %v1498
      %v1529 = vadd.f32 %v1320, %v1501
      %v1530 = vadd.f32 %v1321, %v1506
      %v1531 = vadd.f32 %v1322, %v1509
      %v1532 = vadd.f32 %v1323, %v1514
      %v1533 = vadd.f32 %v1324, %v1517
      %v1534 = vadd.f32 %v1325, %v1522
      %v1535 = vadd.f32 %v1326, %v1525
      %s1536 = scalar_lea.vmem %s211, 16
      %v1537 = vld [vmem:[%s1536] sm:$0xf]
      %v1538 = vld [vmem:[%s1536 + $0x8] sm:$0xf]
      %v1539 = vld [vmem:[%s1536 + $0x10] sm:$0xf]
      %v1540 = vld [vmem:[%s1536 + $0x18] sm:$0xf]
      %v1541 = vld [vmem:[%s1536 + $0x20] sm:$0xf]
      %v1542 = vld [vmem:[%s1536 + $0x28] sm:$0xf]
      %v1543 = vld [vmem:[%s1536 + $0x30] sm:$0xf]
      %v1544 = vld [vmem:[%s1536 + $0x38] sm:$0xf]
      %v1545 = vld [vmem:[%s216 + $0x180] sm:$0xf]
      %v1546 = vld [vmem:[%s216 + $0x184] sm:$0xf]
      %v1547 = vld [vmem:[%s216 + $0x188] sm:$0xf]
      %v1548 = vld [vmem:[%s216 + $0x18c] sm:$0xf]
      %v1549 = vld [vmem:[%s216 + $0x190] sm:$0xf]
      %v1550 = vld [vmem:[%s216 + $0x194] sm:$0xf]
      %v1551 = vld [vmem:[%s216 + $0x198] sm:$0xf]
      %v1552 = vld [vmem:[%s216 + $0x19c] sm:$0xf]
      %v1553 = vld [vmem:[%s216 + $0x1a0] sm:$0xf]
      %v1554 = vld [vmem:[%s216 + $0x1a4] sm:$0xf]
      %v1555 = vld [vmem:[%s216 + $0x1a8] sm:$0xf]
      %v1556 = vld [vmem:[%s216 + $0x1ac] sm:$0xf]
      %v1557 = vld [vmem:[%s216 + $0x1b0] sm:$0xf]
      %v1558 = vld [vmem:[%s216 + $0x1b4] sm:$0xf]
      %v1559 = vld [vmem:[%s216 + $0x1b8] sm:$0xf]
      %v1560 = vld [vmem:[%s216 + $0x1bc] sm:$0xf]
      %v1569 = vunpack.c.l.b16 %v1537
      %v1570 = vunpack.c.l.b16 %v1538
      %v1571 = vunpack.c.l.b16 %v1539
      %v1572 = vunpack.c.l.b16 %v1540
      %v1573 = vunpack.c.l.b16 %v1541
      %v1574 = vunpack.c.l.b16 %v1542
      %v1575 = vunpack.c.l.b16 %v1543
      %v1576 = vunpack.c.l.b16 %v1544
      %v1577 = vpack.c.b16 %v1570, %v1569
      %v1578 = vpack.c.b16 %v1572, %v1571
      %v1579 = vpack.c.b16 %v1574, %v1573
      %v1580 = vpack.c.b16 %v1576, %v1575
      %v1601 = vunpack.c.l.b16 %v1545
      %v1602 = vunpack.c.l.b16 %v1546
      %v1603 = vunpack.c.l.b16 %v1547
      %v1604 = vunpack.c.l.b16 %v1548
      %v1605 = vunpack.c.l.b16 %v1549
      %v1606 = vunpack.c.l.b16 %v1550
      %v1607 = vunpack.c.l.b16 %v1551
      %v1608 = vunpack.c.l.b16 %v1552
      %v1609 = vunpack.c.l.b16 %v1553
      %v1610 = vunpack.c.l.b16 %v1554
      %v1611 = vunpack.c.l.b16 %v1555
      %v1612 = vunpack.c.l.b16 %v1556
      %v1613 = vunpack.c.l.b16 %v1557
      %v1614 = vunpack.c.l.b16 %v1558
      %v1615 = vunpack.c.l.b16 %v1559
      %v1616 = vunpack.c.l.b16 %v1560
      %v1617 = vpack.c.b16 %v1602, %v1601
      %v1618 = vpack.c.b16 %v1604, %v1603
      %v1619 = vpack.c.b16 %v1606, %v1605
      %v1620 = vpack.c.b16 %v1608, %v1607
      %v1621 = vpack.c.b16 %v1610, %v1609
      %v1622 = vpack.c.b16 %v1612, %v1611
      %v1623 = vpack.c.b16 %v1614, %v1613
      %v1624 = vpack.c.b16 %v1616, %v1615
      %1633 = vmatprep.subr.bf16.mxu0 0
      %1634 = vmatpush1.bf16.msra.mxu0 %v1617
      %1635 = vmatprep.subr.bf16.mxu0 0
      %1636 = vmatpush1.bf16.msra.mxu0 %v1618
      %1637 = vmatprep.subr.bf16.mxu0 0
      %1638 = vmatpush1.bf16.msra.mxu0 %v1619
      %1639 = vmatprep.subr.bf16.mxu0 0
      %1640 = vmatpush1.bf16.msra.mxu0 %v1620
      %1641 = vmatprep.subr.bf16.mxu0 0
      %1642 = vmatpush1.bf16.msra.mxu0 %v1621
      %1643 = vmatprep.subr.bf16.mxu0 0
      %1644 = vmatpush1.bf16.msra.mxu0 %v1622
      %1645 = vmatprep.subr.bf16.mxu0 0
      %1646 = vmatpush1.bf16.msra.mxu0 %v1623
      %1647 = vmatprep.subr.bf16.mxu0 0
      %1648 = vmatpush1.bf16.msra.mxu0 %v1624
      %1649 = vmatprep.subr.bf16.mxu0 0
      %1650 = vmatpush1.bf16.msra.mxu0 0
      %1651 = vmatprep.subr.bf16.mxu0 0
      %1652 = vmatpush1.bf16.msra.mxu0 0
      %1653 = vmatprep.subr.bf16.mxu0 0
      %1654 = vmatpush1.bf16.msra.mxu0 0
      %1655 = vmatprep.subr.bf16.mxu0 0
      %1656 = vmatpush1.bf16.msra.mxu0 0
      %1657 = vmatprep.subr.bf16.mxu0 0
      %1658 = vmatpush1.bf16.msra.mxu0 0
      %1659 = vmatprep.subr.bf16.mxu0 0
      %1660 = vmatpush1.bf16.msra.mxu0 0
      %1661 = vmatprep.subr.bf16.mxu0 0
      %1662 = vmatpush1.bf16.msra.mxu0 0
      %1663 = vmatprep.subr.bf16.mxu0 0
      %1664 = vmatpush1.bf16.msra.mxu0 0
      %1665 = vmatprep.mubr.bf16.mxu0 0
      %1666 = vmatmul.mubr.bf16.gmra.mrb[0].mxu0 %v1577
      %v1667 = vpop.f32.mrb[0].mxu0
      %v1668 = vadd.f32 0.0, %v1667
      %v1669 = vpop.f32.mrb[0].mxu0
      %v1670 = vpop.f32.mrb[0].mxu0
      %v1671 = vadd.f32 0.0, %v1670
      %v1672 = vpop.f32.mrb[0].mxu0
      %1673 = vmatprep.mubr.bf16.mxu0 0
      %1674 = vmatmul.mubr.bf16.gmra.mrb[0].mxu0 %v1578
      %v1675 = vpop.f32.mrb[0].mxu0
      %v1676 = vadd.f32 0.0, %v1675
      %v1677 = vpop.f32.mrb[0].mxu0
      %v1678 = vpop.f32.mrb[0].mxu0
      %v1679 = vadd.f32 0.0, %v1678
      %v1680 = vpop.f32.mrb[0].mxu0
      %1681 = vmatprep.mubr.bf16.mxu0 0
      %1682 = vmatmul.mubr.bf16.gmra.mrb[0].mxu0 %v1579
      %v1683 = vpop.f32.mrb[0].mxu0
      %v1684 = vadd.f32 0.0, %v1683
      %v1685 = vpop.f32.mrb[0].mxu0
      %v1686 = vpop.f32.mrb[0].mxu0
      %v1687 = vadd.f32 0.0, %v1686
      %v1688 = vpop.f32.mrb[0].mxu0
      %1689 = vmatprep.mubr.bf16.mxu0 0
      %1690 = vmatmul.mubr.bf16.gmra.mrb[0].mxu0 %v1580
      %v1691 = vpop.f32.mrb[0].mxu0
      %v1692 = vadd.f32 0.0, %v1691
      %v1693 = vpop.f32.mrb[0].mxu0
      %v1694 = vpop.f32.mrb[0].mxu0
      %v1695 = vadd.f32 0.0, %v1694
      %v1696 = vpop.f32.mrb[0].mxu0
      %1697 = vdwg.mxu0
      %v1698 = vadd.f32 %v1528, %v1668
      %v1699 = vadd.f32 %v1529, %v1671
      %v1700 = vadd.f32 %v1530, %v1676
      %v1701 = vadd.f32 %v1531, %v1679
      %v1702 = vadd.f32 %v1532, %v1684
      %v1703 = vadd.f32 %v1533, %v1687
      %v1704 = vadd.f32 %v1534, %v1692
      %v1705 = vadd.f32 %v1535, %v1695
      %v1706 = vld [vmem:[%s1536] sm:$0xf]
      %v1707 = vld [vmem:[%s1536 + $0x4] sm:$0x1]
      %v1708 = vld [vmem:[%s1536 + $0x8] sm:$0xf]
      %v1709 = vld [vmem:[%s1536 + $0xc] sm:$0x1]
      %v1710 = vld [vmem:[%s1536 + $0x10] sm:$0xf]
      %v1711 = vld [vmem:[%s1536 + $0x14] sm:$0x1]
      %v1712 = vld [vmem:[%s1536 + $0x18] sm:$0xf]
      %v1713 = vld [vmem:[%s1536 + $0x1c] sm:$0x1]
      %v1714 = vld [vmem:[%s1536 + $0x20] sm:$0xf]
      %v1715 = vld [vmem:[%s1536 + $0x24] sm:$0x1]
      %v1716 = vld [vmem:[%s1536 + $0x28] sm:$0xf]
      %v1717 = vld [vmem:[%s1536 + $0x2c] sm:$0x1]
      %v1718 = vld [vmem:[%s1536 + $0x30] sm:$0xf]
      %v1719 = vld [vmem:[%s1536 + $0x34] sm:$0x1]
      %v1720 = vld [vmem:[%s1536 + $0x38] sm:$0xf]
      %v1721 = vld [vmem:[%s1536 + $0x3c] sm:$0x1]
      %v1723 = vshrl.u32 %v1706, 16
      %v1725 = vrot.slane %v1723, 4
      %v1726 = vshll.u32 %v1706, 16
      %v1728 = vrot.slane %v1726, 5
      %v1729 = vor.u32 %v1725, %v1728
      %v1730 = vrot.slane %v1729, 4
      %v1732 = vshll.u32 %v1707, 16
      %v1734 = vrot.slane %v1732, 5
      %v1735 = vsel %vm269, %v1730, %v1734
      %v1737 = vshrl.u32 %v1708, 16
      %v1739 = vrot.slane %v1737, 4
      %v1740 = vshll.u32 %v1708, 16
      %v1742 = vrot.slane %v1740, 5
      %v1743 = vor.u32 %v1739, %v1742
      %v1744 = vrot.slane %v1743, 4
      %v1746 = vshll.u32 %v1709, 16
      %v1748 = vrot.slane %v1746, 5
      %v1749 = vsel %vm269, %v1744, %v1748
      %v1751 = vshrl.u32 %v1710, 16
      %v1753 = vrot.slane %v1751, 4
      %v1754 = vshll.u32 %v1710, 16
      %v1756 = vrot.slane %v1754, 5
      %v1757 = vor.u32 %v1753, %v1756
      %v1758 = vrot.slane %v1757, 4
      %v1760 = vshll.u32 %v1711, 16
      %v1762 = vrot.slane %v1760, 5
      %v1763 = vsel %vm269, %v1758, %v1762
      %v1765 = vshrl.u32 %v1712, 16
      %v1767 = vrot.slane %v1765, 4
      %v1768 = vshll.u32 %v1712, 16
      %v1770 = vrot.slane %v1768, 5
      %v1771 = vor.u32 %v1767, %v1770
      %v1772 = vrot.slane %v1771, 4
      %v1774 = vshll.u32 %v1713, 16
      %v1776 = vrot.slane %v1774, 5
      %v1777 = vsel %vm269, %v1772, %v1776
      %v1779 = vshrl.u32 %v1714, 16
      %v1781 = vrot.slane %v1779, 4
      %v1782 = vshll.u32 %v1714, 16
      %v1784 = vrot.slane %v1782, 5
      %v1785 = vor.u32 %v1781, %v1784
      %v1786 = vrot.slane %v1785, 4
      %v1788 = vshll.u32 %v1715, 16
      %v1790 = vrot.slane %v1788, 5
      %v1791 = vsel %vm269, %v1786, %v1790
      %v1793 = vshrl.u32 %v1716, 16
      %v1795 = vrot.slane %v1793, 4
      %v1796 = vshll.u32 %v1716, 16
      %v1798 = vrot.slane %v1796, 5
      %v1799 = vor.u32 %v1795, %v1798
      %v1800 = vrot.slane %v1799, 4
      %v1802 = vshll.u32 %v1717, 16
      %v1804 = vrot.slane %v1802, 5
      %v1805 = vsel %vm269, %v1800, %v1804
      %v1807 = vshrl.u32 %v1718, 16
      %v1809 = vrot.slane %v1807, 4
      %v1810 = vshll.u32 %v1718, 16
      %v1812 = vrot.slane %v1810, 5
      %v1813 = vor.u32 %v1809, %v1812
      %v1814 = vrot.slane %v1813, 4
      %v1816 = vshll.u32 %v1719, 16
      %v1818 = vrot.slane %v1816, 5
      %v1819 = vsel %vm269, %v1814, %v1818
      %v1821 = vshrl.u32 %v1720, 16
      %v1823 = vrot.slane %v1821, 4
      %v1824 = vshll.u32 %v1720, 16
      %v1826 = vrot.slane %v1824, 5
      %v1827 = vor.u32 %v1823, %v1826
      %v1828 = vrot.slane %v1827, 4
      %v1830 = vshll.u32 %v1721, 16
      %v1832 = vrot.slane %v1830, 5
      %v1833 = vsel %vm269, %v1828, %v1832
      %v1834 = vld [vmem:[%s216 + $0x1c0] sm:$0xf]
      %v1835 = vld [vmem:[%s216 + $0x1c4] sm:$0xf]
      %v1836 = vld [vmem:[%s216 + $0x1c8] sm:$0xf]
      %v1837 = vld [vmem:[%s216 + $0x1cc] sm:$0xf]
      %v1838 = vld [vmem:[%s216 + $0x1d0] sm:$0xf]
      %v1839 = vld [vmem:[%s216 + $0x1d4] sm:$0xf]
      %v1840 = vld [vmem:[%s216 + $0x1d8] sm:$0xf]
      %v1841 = vld [vmem:[%s216 + $0x1dc] sm:$0xf]
      %v1842 = vld [vmem:[%s216 + $0x1e0] sm:$0xf]
      %v1843 = vld [vmem:[%s216 + $0x1e4] sm:$0xf]
      %v1844 = vld [vmem:[%s216 + $0x1e8] sm:$0xf]
      %v1845 = vld [vmem:[%s216 + $0x1ec] sm:$0xf]
      %v1846 = vld [vmem:[%s216 + $0x1f0] sm:$0xf]
      %v1847 = vld [vmem:[%s216 + $0x1f4] sm:$0xf]
      %v1848 = vld [vmem:[%s216 + $0x1f8] sm:$0xf]
      %v1849 = vld [vmem:[%s216 + $0x1fc] sm:$0xf]
      %v1850 = vunpack.c.l.b16 %v1735
      %v1851 = vunpack.c.l.b16 %v1749
      %v1852 = vunpack.c.l.b16 %v1763
      %v1853 = vunpack.c.l.b16 %v1777
      %v1854 = vunpack.c.l.b16 %v1791
      %v1855 = vunpack.c.l.b16 %v1805
      %v1856 = vunpack.c.l.b16 %v1819
      %v1857 = vunpack.c.l.b16 %v1833
      %v1858 = vpack.c.b16 %v1851, %v1850
      %v1859 = vpack.c.b16 %v1853, %v1852
      %v1860 = vpack.c.b16 %v1855, %v1854
      %v1861 = vpack.c.b16 %v1857, %v1856
      %v1882 = vunpack.c.l.b16 %v1834
      %v1883 = vunpack.c.l.b16 %v1835
      %v1884 = vunpack.c.l.b16 %v1836
      %v1885 = vunpack.c.l.b16 %v1837
      %v1886 = vunpack.c.l.b16 %v1838
      %v1887 = vunpack.c.l.b16 %v1839
      %v1888 = vunpack.c.l.b16 %v1840
      %v1889 = vunpack.c.l.b16 %v1841
      %v1890 = vunpack.c.l.b16 %v1842
      %v1891 = vunpack.c.l.b16 %v1843
      %v1892 = vunpack.c.l.b16 %v1844
      %v1893 = vunpack.c.l.b16 %v1845
      %v1894 = vunpack.c.l.b16 %v1846
      %v1895 = vunpack.c.l.b16 %v1847
      %v1896 = vunpack.c.l.b16 %v1848
      %v1897 = vunpack.c.l.b16 %v1849
      %v1898 = vpack.c.b16 %v1883, %v1882
      %v1899 = vpack.c.b16 %v1885, %v1884
      %v1900 = vpack.c.b16 %v1887, %v1886
      %v1901 = vpack.c.b16 %v1889, %v1888
      %v1902 = vpack.c.b16 %v1891, %v1890
      %v1903 = vpack.c.b16 %v1893, %v1892
      %v1904 = vpack.c.b16 %v1895, %v1894
      %v1905 = vpack.c.b16 %v1897, %v1896
      %1914 = vmatprep.subr.bf16.mxu0 0
      %1915 = vmatpush1.bf16.msra.mxu0 %v1898
      %1916 = vmatprep.subr.bf16.mxu0 0
      %1917 = vmatpush1.bf16.msra.mxu0 %v1899
      %1918 = vmatprep.subr.bf16.mxu0 0
      %1919 = vmatpush1.bf16.msra.mxu0 %v1900
      %1920 = vmatprep.subr.bf16.mxu0 0
      %1921 = vmatpush1.bf16.msra.mxu0 %v1901
      %1922 = vmatprep.subr.bf16.mxu0 0
      %1923 = vmatpush1.bf16.msra.mxu0 %v1902
      %1924 = vmatprep.subr.bf16.mxu0 0
      %1925 = vmatpush1.bf16.msra.mxu0 %v1903
      %1926 = vmatprep.subr.bf16.mxu0 0
      %1927 = vmatpush1.bf16.msra.mxu0 %v1904
      %1928 = vmatprep.subr.bf16.mxu0 0
      %1929 = vmatpush1.bf16.msra.mxu0 %v1905
      %1930 = vmatprep.subr.bf16.mxu0 0
      %1931 = vmatpush1.bf16.msra.mxu0 0
      %1932 = vmatprep.subr.bf16.mxu0 0
      %1933 = vmatpush1.bf16.msra.mxu0 0
      %1934 = vmatprep.subr.bf16.mxu0 0
      %1935 = vmatpush1.bf16.msra.mxu0 0
      %1936 = vmatprep.subr.bf16.mxu0 0
      %1937 = vmatpush1.bf16.msra.mxu0 0
      %1938 = vmatprep.subr.bf16.mxu0 0
      %1939 = vmatpush1.bf16.msra.mxu0 0
      %1940 = vmatprep.subr.bf16.mxu0 0
      %1941 = vmatpush1.bf16.msra.mxu0 0
      %1942 = vmatprep.subr.bf16.mxu0 0
      %1943 = vmatpush1.bf16.msra.mxu0 0
      %1944 = vmatprep.subr.bf16.mxu0 0
      %1945 = vmatpush1.bf16.msra.mxu0 0
      %1946 = vmatprep.mubr.bf16.mxu0 0
      %1947 = vmatmul.mubr.bf16.gmra.mrb[0].mxu0 %v1858
      %v1948 = vpop.f32.mrb[0].mxu0
      %v1949 = vadd.f32 0.0, %v1948
      %v1950 = vpop.f32.mrb[0].mxu0
      %v1951 = vpop.f32.mrb[0].mxu0
      %v1952 = vadd.f32 0.0, %v1951
      %v1953 = vpop.f32.mrb[0].mxu0
      %1954 = vmatprep.mubr.bf16.mxu0 0
      %1955 = vmatmul.mubr.bf16.gmra.mrb[0].mxu0 %v1859
      %v1956 = vpop.f32.mrb[0].mxu0
      %v1957 = vadd.f32 0.0, %v1956
      %v1958 = vpop.f32.mrb[0].mxu0
      %v1959 = vpop.f32.mrb[0].mxu0
      %v1960 = vadd.f32 0.0, %v1959
      %v1961 = vpop.f32.mrb[0].mxu0
      %1962 = vmatprep.mubr.bf16.mxu0 0
      %1963 = vmatmul.mubr.bf16.gmra.mrb[0].mxu0 %v1860
      %v1964 = vpop.f32.mrb[0].mxu0
      %v1965 = vadd.f32 0.0, %v1964
      %v1966 = vpop.f32.mrb[0].mxu0
      %v1967 = vpop.f32.mrb[0].mxu0
      %v1968 = vadd.f32 0.0, %v1967
      %v1969 = vpop.f32.mrb[0].mxu0
      %1970 = vmatprep.mubr.bf16.mxu0 0
      %1971 = vmatmul.mubr.bf16.gmra.mrb[0].mxu0 %v1861
      %v1972 = vpop.f32.mrb[0].mxu0
      %v1973 = vadd.f32 0.0, %v1972
      %v1974 = vpop.f32.mrb[0].mxu0
      %v1975 = vpop.f32.mrb[0].mxu0
      %v1976 = vadd.f32 0.0, %v1975
      %v1977 = vpop.f32.mrb[0].mxu0
      %1978 = vdwg.mxu0
      %v1979 = vadd.f32 %v1698, %v1949
      %v1980 = vadd.f32 %v1699, %v1952
      %v1981 = vadd.f32 %v1700, %v1957
      %v1982 = vadd.f32 %v1701, %v1960
      %v1983 = vadd.f32 %v1702, %v1965
      %v1984 = vadd.f32 %v1703, %v1968
      %v1985 = vadd.f32 %v1704, %v1973
      %v1986 = vadd.f32 %v1705, %v1976
      %v1987 = vld [vmem:[%s1536] sm:$0xe]
      %v1988 = vld [vmem:[%s1536 + $0x8] sm:$0xe]
      %v1989 = vld [vmem:[%s1536 + $0x10] sm:$0xe]
      %v1990 = vld [vmem:[%s1536 + $0x18] sm:$0xe]
      %v1991 = vld [vmem:[%s1536 + $0x20] sm:$0xe]
      %v1992 = vld [vmem:[%s1536 + $0x28] sm:$0xe]
      %v1993 = vld [vmem:[%s1536 + $0x30] sm:$0xe]
      %v1994 = vld [vmem:[%s1536 + $0x38] sm:$0xe]
      %v2011 = vrot.slane %v1987, 5
      %v2012 = vrot.slane %v2011, 4
      %v2013 = vrot.slane %v1707, 5
      %v2014 = vsel %vm690, %v2012, %v2013
      %v2015 = vrot.slane %v1988, 5
      %v2016 = vrot.slane %v2015, 4
      %v2017 = vrot.slane %v1709, 5
      %v2018 = vsel %vm690, %v2016, %v2017
      %v2019 = vrot.slane %v1989, 5
      %v2020 = vrot.slane %v2019, 4
      %v2021 = vrot.slane %v1711, 5
      %v2022 = vsel %vm690, %v2020, %v2021
      %v2023 = vrot.slane %v1990, 5
      %v2024 = vrot.slane %v2023, 4
      %v2025 = vrot.slane %v1713, 5
      %v2026 = vsel %vm690, %v2024, %v2025
      %v2027 = vrot.slane %v1991, 5
      %v2028 = vrot.slane %v2027, 4
      %v2029 = vrot.slane %v1715, 5
      %v2030 = vsel %vm690, %v2028, %v2029
      %v2031 = vrot.slane %v1992, 5
      %v2032 = vrot.slane %v2031, 4
      %v2033 = vrot.slane %v1717, 5
      %v2034 = vsel %vm690, %v2032, %v2033
      %v2035 = vrot.slane %v1993, 5
      %v2036 = vrot.slane %v2035, 4
      %v2037 = vrot.slane %v1719, 5
      %v2038 = vsel %vm690, %v2036, %v2037
      %v2039 = vrot.slane %v1994, 5
      %v2040 = vrot.slane %v2039, 4
      %v2041 = vrot.slane %v1721, 5
      %v2042 = vsel %vm690, %v2040, %v2041
      %v2043 = vld [vmem:[%s216 + $0x200] sm:$0xf]
      %v2044 = vld [vmem:[%s216 + $0x204] sm:$0xf]
      %v2045 = vld [vmem:[%s216 + $0x208] sm:$0xf]
      %v2046 = vld [vmem:[%s216 + $0x20c] sm:$0xf]
      %v2047 = vld [vmem:[%s216 + $0x210] sm:$0xf]
      %v2048 = vld [vmem:[%s216 + $0x214] sm:$0xf]
      %v2049 = vld [vmem:[%s216 + $0x218] sm:$0xf]
      %v2050 = vld [vmem:[%s216 + $0x21c] sm:$0xf]
      %v2051 = vld [vmem:[%s216 + $0x220] sm:$0xf]
      %v2052 = vld [vmem:[%s216 + $0x224] sm:$0xf]
      %v2053 = vld [vmem:[%s216 + $0x228] sm:$0xf]
      %v2054 = vld [vmem:[%s216 + $0x22c] sm:$0xf]
      %v2055 = vld [vmem:[%s216 + $0x230] sm:$0xf]
      %v2056 = vld [vmem:[%s216 + $0x234] sm:$0xf]
      %v2057 = vld [vmem:[%s216 + $0x238] sm:$0xf]
      %v2058 = vld [vmem:[%s216 + $0x23c] sm:$0xf]
      %v2059 = vunpack.c.l.b16 %v2014
      %v2060 = vunpack.c.l.b16 %v2018
      %v2061 = vunpack.c.l.b16 %v2022
      %v2062 = vunpack.c.l.b16 %v2026
      %v2063 = vunpack.c.l.b16 %v2030
      %v2064 = vunpack.c.l.b16 %v2034
      %v2065 = vunpack.c.l.b16 %v2038
      %v2066 = vunpack.c.l.b16 %v2042
      %v2067 = vpack.c.b16 %v2060, %v2059
      %v2068 = vpack.c.b16 %v2062, %v2061
      %v2069 = vpack.c.b16 %v2064, %v2063
      %v2070 = vpack.c.b16 %v2066, %v2065
      %v2091 = vunpack.c.l.b16 %v2043
      %v2092 = vunpack.c.l.b16 %v2044
      %v2093 = vunpack.c.l.b16 %v2045
      %v2094 = vunpack.c.l.b16 %v2046
      %v2095 = vunpack.c.l.b16 %v2047
      %v2096 = vunpack.c.l.b16 %v2048
      %v2097 = vunpack.c.l.b16 %v2049
      %v2098 = vunpack.c.l.b16 %v2050
      %v2099 = vunpack.c.l.b16 %v2051
      %v2100 = vunpack.c.l.b16 %v2052
      %v2101 = vunpack.c.l.b16 %v2053
      %v2102 = vunpack.c.l.b16 %v2054
      %v2103 = vunpack.c.l.b16 %v2055
      %v2104 = vunpack.c.l.b16 %v2056
      %v2105 = vunpack.c.l.b16 %v2057
      %v2106 = vunpack.c.l.b16 %v2058
      %v2107 = vpack.c.b16 %v2092, %v2091
      %v2108 = vpack.c.b16 %v2094, %v2093
      %v2109 = vpack.c.b16 %v2096, %v2095
      %v2110 = vpack.c.b16 %v2098, %v2097
      %v2111 = vpack.c.b16 %v2100, %v2099
      %v2112 = vpack.c.b16 %v2102, %v2101
      %v2113 = vpack.c.b16 %v2104, %v2103
      %v2114 = vpack.c.b16 %v2106, %v2105
      %2123 = vmatprep.subr.bf16.mxu0 0
      %2124 = vmatpush1.bf16.msra.mxu0 %v2107
      %2125 = vmatprep.subr.bf16.mxu0 0
      %2126 = vmatpush1.bf16.msra.mxu0 %v2108
      %2127 = vmatprep.subr.bf16.mxu0 0
      %2128 = vmatpush1.bf16.msra.mxu0 %v2109
      %2129 = vmatprep.subr.bf16.mxu0 0
      %2130 = vmatpush1.bf16.msra.mxu0 %v2110
      %2131 = vmatprep.subr.bf16.mxu0 0
      %2132 = vmatpush1.bf16.msra.mxu0 %v2111
      %2133 = vmatprep.subr.bf16.mxu0 0
      %2134 = vmatpush1.bf16.msra.mxu0 %v2112
      %2135 = vmatprep.subr.bf16.mxu0 0
      %2136 = vmatpush1.bf16.msra.mxu0 %v2113
      %2137 = vmatprep.subr.bf16.mxu0 0
      %2138 = vmatpush1.bf16.msra.mxu0 %v2114
      %2139 = vmatprep.subr.bf16.mxu0 0
      %2140 = vmatpush1.bf16.msra.mxu0 0
      %2141 = vmatprep.subr.bf16.mxu0 0
      %2142 = vmatpush1.bf16.msra.mxu0 0
      %2143 = vmatprep.subr.bf16.mxu0 0
      %2144 = vmatpush1.bf16.msra.mxu0 0
      %2145 = vmatprep.subr.bf16.mxu0 0
      %2146 = vmatpush1.bf16.msra.mxu0 0
      %2147 = vmatprep.subr.bf16.mxu0 0
      %2148 = vmatpush1.bf16.msra.mxu0 0
      %2149 = vmatprep.subr.bf16.mxu0 0
      %2150 = vmatpush1.bf16.msra.mxu0 0
      %2151 = vmatprep.subr.bf16.mxu0 0
      %2152 = vmatpush1.bf16.msra.mxu0 0
      %2153 = vmatprep.subr.bf16.mxu0 0
      %2154 = vmatpush1.bf16.msra.mxu0 0
      %2155 = vmatprep.mubr.bf16.mxu0 0
      %2156 = vmatmul.mubr.bf16.gmra.mrb[0].mxu0 %v2067
      %v2157 = vpop.f32.mrb[0].mxu0
      %v2158 = vadd.f32 0.0, %v2157
      %v2159 = vpop.f32.mrb[0].mxu0
      %v2160 = vpop.f32.mrb[0].mxu0
      %v2161 = vadd.f32 0.0, %v2160
      %v2162 = vpop.f32.mrb[0].mxu0
      %2163 = vmatprep.mubr.bf16.mxu0 0
      %2164 = vmatmul.mubr.bf16.gmra.mrb[0].mxu0 %v2068
      %v2165 = vpop.f32.mrb[0].mxu0
      %v2166 = vadd.f32 0.0, %v2165
      %v2167 = vpop.f32.mrb[0].mxu0
      %v2168 = vpop.f32.mrb[0].mxu0
      %v2169 = vadd.f32 0.0, %v2168
      %v2170 = vpop.f32.mrb[0].mxu0
      %2171 = vmatprep.mubr.bf16.mxu0 0
      %2172 = vmatmul.mubr.bf16.gmra.mrb[0].mxu0 %v2069
      %v2173 = vpop.f32.mrb[0].mxu0
      %v2174 = vadd.f32 0.0, %v2173
      %v2175 = vpop.f32.mrb[0].mxu0
      %v2176 = vpop.f32.mrb[0].mxu0
      %v2177 = vadd.f32 0.0, %v2176
      %v2178 = vpop.f32.mrb[0].mxu0
      %2179 = vmatprep.mubr.bf16.mxu0 0
      %2180 = vmatmul.mubr.bf16.gmra.mrb[0].mxu0 %v2070
      %v2181 = vpop.f32.mrb[0].mxu0
      %v2182 = vadd.f32 0.0, %v2181
      %v2183 = vpop.f32.mrb[0].mxu0
      %v2184 = vpop.f32.mrb[0].mxu0
      %v2185 = vadd.f32 0.0, %v2184
      %v2186 = vpop.f32.mrb[0].mxu0
      %2187 = vdwg.mxu0
      %v2188 = vadd.f32 %v1979, %v2158
      %v2189 = vadd.f32 %v1980, %v2161
      %v2190 = vadd.f32 %v1981, %v2166
      %v2191 = vadd.f32 %v1982, %v2169
      %v2192 = vadd.f32 %v1983, %v2174
      %v2193 = vadd.f32 %v1984, %v2177
      %v2194 = vadd.f32 %v1985, %v2182
      %v2195 = vadd.f32 %v1986, %v2185
      %2196 = vst [vmem:[%s225] sm:$0xff] %v2188
      %2197 = vst [vmem:[%s225 + $0x8] sm:$0xff] %v2189
      %2198 = vst [vmem:[%s225 + $0x10] sm:$0xff] %v2190
      %2199 = vst [vmem:[%s225 + $0x18] sm:$0xff] %v2191
      %2200 = vst [vmem:[%s225 + $0x20] sm:$0xff] %v2192
      %2201 = vst [vmem:[%s225 + $0x28] sm:$0xff] %v2193
      %2202 = vst [vmem:[%s225 + $0x30] sm:$0xff] %v2194
      %2203 = vst [vmem:[%s225 + $0x38] sm:$0xff] %v2195
      %v2204 = vadd.f32 %v2188, %v2189
      %v2205 = vadd.f32 %v2204, %v2190
      %v2206 = vadd.f32 %v2205, %v2191
      %v2207 = vadd.f32 %v2206, %v2192
      %v2208 = vadd.f32 %v2207, %v2193
      %v2209 = vadd.f32 %v2208, %v2194
      %v2210 = vadd.f32 %v2209, %v2195
      %v2211 = vrot.slane %v2210, 4
      %v2212 = vadd.f32 %v2210, %v2211
      %v2213 = vrot.slane %v2212, 2
      %v2214 = vadd.f32 %v2212, %v2213
      %v2215 = vrot.slane %v2214, 1
      %v2216 = vadd.f32 %v2214, %v2215
      %2217 = vst [vmem:[%s233] sm:$0x1] %v2216
      %v2218 = vmul.f32 %v2188, %v2188
      %v2219 = vmul.f32 %v2189, %v2189
      %v2220 = vmul.f32 %v2190, %v2190
      %v2221 = vmul.f32 %v2191, %v2191
      %v2222 = vmul.f32 %v2192, %v2192
      %v2223 = vmul.f32 %v2193, %v2193
      %v2224 = vmul.f32 %v2194, %v2194
      %v2225 = vmul.f32 %v2195, %v2195
      %v2226 = vadd.f32 %v2218, %v2219
      %v2227 = vadd.f32 %v2226, %v2220
      %v2228 = vadd.f32 %v2227, %v2221
      %v2229 = vadd.f32 %v2228, %v2222
      %v2230 = vadd.f32 %v2229, %v2223
      %v2231 = vadd.f32 %v2230, %v2224
      %v2232 = vadd.f32 %v2231, %v2225
      %v2233 = vrot.slane %v2232, 4
      %v2234 = vadd.f32 %v2232, %v2233
      %v2235 = vrot.slane %v2234, 2
      %v2236 = vadd.f32 %v2234, %v2235
      %v2237 = vrot.slane %v2236, 1
      %v2238 = vadd.f32 %v2236, %v2237
      %2239 = vst [vmem:[%s233 + $0x1] sm:$0x1] %v2238
      %p2240 = scmp.lt.s32.totalorder %s20, 0
      %s2241 = scalar_select %p2240, %s20, 0
      %p2242 = scmp.lt.s32.totalorder %s19, 1
      %s2243 = scalar_select %p2242, %s19, 1
      %s2244 = smul.addr %s2243, 8
      %s2245 = smul.addr %s2241, 16
      %s2246 = sadd.s32 %s2244, %s2245
      %s2247 = smul.addr %s2246, 8
      %s2248 = scalar_lea.vmem %s2, %s2247
      %p2249 = scmp.lt.s32.totalorder %s20, 0
      %s2250 = scalar_select %p2249, %s20, 0
      %p2251 = scmp.lt.s32.totalorder %s19, 1
      %s2252 = scalar_select %p2251, %s19, 1
      %s2253 = smul.addr %s2250, 2
      %s2254 = sadd.s32 %s2252, %s2253
      %s2255 = smul.addr %s2254, 2
      %s2256 = scalar_lea.vmem %s3, %s2255
      // Predicated region
      $region29: #{inv_res_block_forward.4} parent=27 // pred_check
        %p2257 = pneg %p99
      $region30: #{inv_res_block_forward.4} parent=27 // pred_check_branch
        %2259 = sbr.rel (%p2257) target = $region32
      $region31: #{inv_res_block_forward.4} parent=27 // pred_region
        _
      $region32: #{inv_res_block_forward.4} parent=27 // pred_fallthru
        _
      // Predicated region
      $region33: #{inv_res_block_forward.4} parent=27 // pred_check
        %p2260 = pneg %p127
      $region34: #{inv_res_block_forward.4} parent=27 // pred_check_branch
        %2262 = sbr.rel (%p2260) target = $region36
      $region35: #{inv_res_block_forward.4} parent=27 // pred_region
        _
      $region36: #{inv_res_block_forward.4} parent=27 // pred_fallthru
        _
    $region28: #{inv_res_block_forward.4} parent=5 // pred_fallthru
      _
    %p2263 = scmp.le.s32.totalorder 2, %s10
    // Predicated region
    $region37: #{inv_res_block_forward.4} parent=5 // pred_check
      %p2264 = pneg %p2263
    $region38: #{inv_res_block_forward.4} parent=5 // pred_check_branch
      %2266 = sbr.rel (%p2264) target = $region40
    $region39: #{inv_res_block_forward.4} parent=5 // pred_region
      %s2267 = ssub.s32 %s10, 2
      // Predicated region
      $region41: #{inv_res_block_forward.4} parent=39 // pred_check
        %p2268 = pneg %p105
      $region42: #{inv_res_block_forward.4} parent=39 // pred_check_branch
        %2270 = sbr.rel (%p2268) target = $region44
      $region43: #{inv_res_block_forward.4} parent=39 // pred_region
        %p2271 = scmp.lt.s32.totalorder %s22, 0
        %s2272 = scalar_select %p2271, %s22, 0
        %p2273 = scmp.lt.s32.totalorder %s21, 1
        %s2274 = scalar_select %p2273, %s21, 1
        %s2275 = smul.addr %s2274, 8
        %s2276 = smul.addr %s2272, 16
        %s2277 = sadd.s32 %s2275, %s2276
        %s2278 = smul.addr %s2277, 8
        %s2279 = scalar_lea.vmem %s2, %s2278
      $region44: #{inv_res_block_forward.4} parent=39 // pred_fallthru
        _
      // Predicated region
      $region45: #{inv_res_block_forward.4} parent=39 // pred_check
        %p2280 = pneg %p133
      $region46: #{inv_res_block_forward.4} parent=39 // pred_check_branch
        %2282 = sbr.rel (%p2280) target = $region48
      $region47: #{inv_res_block_forward.4} parent=39 // pred_region
        %p2283 = scmp.lt.s32.totalorder %s22, 0
        %s2284 = scalar_select %p2283, %s22, 0
        %p2285 = scmp.lt.s32.totalorder %s21, 1
        %s2286 = scalar_select %p2285, %s21, 1
        %s2287 = smul.addr %s2284, 2
        %s2288 = sadd.s32 %s2286, %s2287
        %s2289 = smul.addr %s2288, 2
        %s2290 = scalar_lea.vmem %s3, %s2289
      $region48: #{inv_res_block_forward.4} parent=39 // pred_fallthru
        _
    $region40: #{inv_res_block_forward.4} parent=5 // pred_fallthru
      _
  $region6: #{inv_res_block_forward.4} parent=0 // loop_footer
    %s14 = sadd.s32 1, %s10
  $region7: #{inv_res_block_forward.4} parent=0 // loop_footer_branch
    %9 = sbr.rel target = $region3
  $region8: #{inv_res_block_forward.4} parent=0 // loop_exit
    _

// kernel: inv_res_block_forward.6
$region0: #{inv_res_block_forward.6}
  #allocation0 [shape = 'u32[]', space=smem, size = 0x4, offset = 0x4, fixed_abs, tag = 'smem constant byte address 0x4 - core index']
  #allocation1 [shape = 'u32[144,128]{1,0:T(1,128)}', space=vmem, size = 0x12000, scoped, tag = 'internal scratch']
  %s0 = inlined_call_operand.vmem [shape: bf16[2,9,9,128], index: 0, kind: input, shape index: {}]
  %s1 = inlined_call_operand.vmem [shape: bf16[4,512,128], index: 1, kind: input, shape index: {}]
  %s2 = inlined_call_operand.vmem [shape: f32[4,2,64,128], index: 2, kind: output, shape index: {0}]
  %s3 = inlined_call_operand.vmem [shape: f32[4,2,2,128], index: 3, kind: output, shape index: {1}]
  %4 = xla_tuple %s2, %s3
  %s5 = sld [smem:[#allocation0]]
  $region49: #{inv_res_block_forward.6} parent=0
    _
  %s7 = ssub.s32 1, %s5
  %s8 = scalar_select 0, %s7, %s5
  loop: start=0, step=1, limit=10
  $region2: #{inv_res_block_forward.6} parent=0 // loop_pre_header
    _
  $region3: #{inv_res_block_forward.6} parent=0 // loop_header
    %s10 = sphi 0, %s14
    %p11 = scmp.ge.s32.totalorder %s10, 10
    %s17 = sphi 0, %s29
    %s18 = sphi 0, %s25
    %s19 = sphi 0, %s17
    %s20 = sphi 0, %s18
    %s21 = sphi 0, %s19
    %s22 = sphi 0, %s20
    %s32 = sphi 0, %s34
    %s35 = sphi 0, %s32
    %s36 = sphi 0, %s35
    %s52 = sphi 0, %s36
    %s58 = sphi 0, %s60
    %s61 = sphi 0, %s58
    %s62 = sphi 0, %s61
    %s78 = sphi 0, %s62
    %s86 = sphi 0, %s88
    %s89 = sphi 0, %s86
    %s90 = sphi 0, %s89
    %s106 = sphi 0, %s90
    %s114 = sphi 0, %s116
    %s117 = sphi 0, %s114
    %s118 = sphi 0, %s117
    %s134 = sphi 0, %s118
  $region4: #{inv_res_block_forward.6} parent=0 // loop_header_branch
    %13 = sbr.rel (%p11) target = $region8
  $region5: #{inv_res_block_forward.6} parent=0 // loop_body
    %s15 = ssub.s32 %s10, 1
    %s16 = ssub.s32 %s10, 2
    %s23 = sadd.s32 1, %s18
    %p24 = scmp.ge.s32.totalorder %s23, 4
    %s25 = scalar_select %p24, 0, %s23
    %s26 = sadd.s32 1, %s17
    %s27 = scalar_select %p24, %s26, %s17
    %p28 = scmp.ge.s32.totalorder %s27, 2
    %s29 = scalar_select %p28, 0, %s27
    %s30 = ssub.s32 %s17, %s29
    %p31 = scmp.eq.s32.totalorder %s30, 0
    %s33 = sadd.s32 %s32, 1
    %s34 = scalar_select %p31, %s32, %s33
    %p37 = pneg %p31
    %p38 = scmp.eq.s32.totalorder %s10, 7
    %p39 = por %p37, %p38
    %p40 = scmp.ne.s32.totalorder %s32, %s35
    %p41 = scmp.eq.s32.totalorder %s10, 0
    %p42 = por %p40, %p41
    %p43 = scmp.ne.s32.totalorder %s32, %s35
    %p44 = scmp.eq.s32.totalorder %s15, 7
    %p45 = por %p43, %p44
    %p46 = scmp.ne.s32.totalorder %s35, %s36
    %p47 = scmp.eq.s32.totalorder %s15, 0
    %p48 = por %p46, %p47
    %p49 = scmp.ne.s32.totalorder %s35, %s36
    %p50 = scmp.eq.s32.totalorder %s16, 7
    %p51 = por %p49, %p50
    %p53 = scmp.ne.s32.totalorder %s36, %s52
    %p54 = scmp.eq.s32.totalorder %s16, 0
    %p55 = por %p53, %p54
    %s56 = ssub.s32 %s18, %s25
    %p57 = scmp.eq.s32.totalorder %s56, 0
    %s59 = sadd.s32 %s58, 1
    %s60 = scalar_select %p57, %s58, %s59
    %p63 = pneg %p57
    %p64 = scmp.eq.s32.totalorder %s10, 7
    %p65 = por %p63, %p64
    %p66 = scmp.ne.s32.totalorder %s58, %s61
    %p67 = scmp.eq.s32.totalorder %s10, 0
    %p68 = por %p66, %p67
    %p69 = scmp.ne.s32.totalorder %s58, %s61
    %p70 = scmp.eq.s32.totalorder %s15, 7
    %p71 = por %p69, %p70
    %p72 = scmp.ne.s32.totalorder %s61, %s62
    %p73 = scmp.eq.s32.totalorder %s15, 0
    %p74 = por %p72, %p73
    %p75 = scmp.ne.s32.totalorder %s61, %s62
    %p76 = scmp.eq.s32.totalorder %s16, 7
    %p77 = por %p75, %p76
    %p79 = scmp.ne.s32.totalorder %s62, %s78
    %p80 = scmp.eq.s32.totalorder %s16, 0
    %p81 = por %p79, %p80
    %s82 = ssub.s32 %s18, %s25
    %s83 = ssub.s32 %s17, %s29
    %s84 = sor.u32 %s82, %s83
    %p85 = scmp.eq.s32.totalorder %s84, 0
    %s87 = sadd.s32 %s86, 1
    %s88 = scalar_select %p85, %s86, %s87
    %p91 = pneg %p85
    %p92 = scmp.eq.s32.totalorder %s10, 7
    %p93 = por %p91, %p92
    %p94 = scmp.ne.s32.totalorder %s86, %s89
    %p95 = scmp.eq.s32.totalorder %s10, 0
    %p96 = por %p94, %p95
    %p97 = scmp.ne.s32.totalorder %s86, %s89
    %p98 = scmp.eq.s32.totalorder %s15, 7
    %p99 = por %p97, %p98
    %p100 = scmp.ne.s32.totalorder %s89, %s90
    %p101 = scmp.eq.s32.totalorder %s15, 0
    %p102 = por %p100, %p101
    %p103 = scmp.ne.s32.totalorder %s89, %s90
    %p104 = scmp.eq.s32.totalorder %s16, 7
    %p105 = por %p103, %p104
    %p107 = scmp.ne.s32.totalorder %s90, %s106
    %p108 = scmp.eq.s32.totalorder %s16, 0
    %p109 = por %p107, %p108
    %s110 = ssub.s32 %s18, %s25
    %s111 = ssub.s32 %s17, %s29
    %s112 = sor.u32 %s110, %s111
    %p113 = scmp.eq.s32.totalorder %s112, 0
    %s115 = sadd.s32 %s114, 1
    %s116 = scalar_select %p113, %s114, %s115
    %p119 = pneg %p113
    %p120 = scmp.eq.s32.totalorder %s10, 7
    %p121 = por %p119, %p120
    %p122 = scmp.ne.s32.totalorder %s114, %s117
    %p123 = scmp.eq.s32.totalorder %s10, 0
    %p124 = por %p122, %p123
    %p125 = scmp.ne.s32.totalorder %s114, %s117
    %p126 = scmp.eq.s32.totalorder %s15, 7
    %p127 = por %p125, %p126
    %p128 = scmp.ne.s32.totalorder %s117, %s118
    %p129 = scmp.eq.s32.totalorder %s15, 0
    %p130 = por %p128, %p129
    %p131 = scmp.ne.s32.totalorder %s117, %s118
    %p132 = scmp.eq.s32.totalorder %s16, 7
    %p133 = por %p131, %p132
    %p135 = scmp.ne.s32.totalorder %s118, %s134
    %p136 = scmp.eq.s32.totalorder %s16, 0
    %p137 = por %p135, %p136
    %p138 = scmp.le.s32.totalorder 1, %s10
    %p139 = scmp.lt.s32.totalorder %s10, 9
    %p140 = pnand %p138, %p139
    %p141 = pneg %p140
    // Predicated region
    $region9: #{inv_res_block_forward.6} parent=5 // pred_check
      _
    $region10: #{inv_res_block_forward.6} parent=5 // pred_check_branch
      %143 = sbr.rel (%p140) target = $region12
    $region11: #{inv_res_block_forward.6} parent=5 // pred_region
      %s144 = ssub.s32 %s10, 1
    $region12: #{inv_res_block_forward.6} parent=5 // pred_fallthru
      _
    %p145 = scmp.lt.s32.totalorder %s10, 8
    // Predicated region
    $region13: #{inv_res_block_forward.6} parent=5 // pred_check
      %p146 = pneg %p145
    $region14: #{inv_res_block_forward.6} parent=5 // pred_check_branch
      %148 = sbr.rel (%p146) target = $region16
    $region15: #{inv_res_block_forward.6} parent=5 // pred_region
      // Predicated region
      $region17: #{inv_res_block_forward.6} parent=15 // pred_check
        %p149 = pneg %p42
      $region18: #{inv_res_block_forward.6} parent=15 // pred_check_branch
        %151 = sbr.rel (%p149) target = $region20
      $region19: #{inv_res_block_forward.6} parent=15 // pred_region
        %p152 = scmp.lt.s32.totalorder %s17, 1
        %s153 = scalar_select %p152, %s17, 1
        %s154 = smul.addr %s153, 18
        %s155 = smul.addr %s154, 4
        %s156 = scalar_lea.vmem %s0, %s155
      $region20: #{inv_res_block_forward.6} parent=15 // pred_fallthru
        _
      // Predicated region
      $region21: #{inv_res_block_forward.6} parent=15 // pred_check
        %p157 = pneg %p68
      $region22: #{inv_res_block_forward.6} parent=15 // pred_check_branch
        %159 = sbr.rel (%p157) target = $region24
      $region23: #{inv_res_block_forward.6} parent=15 // pred_region
        %p160 = scmp.lt.s32.totalorder %s18, 3
        %s161 = scalar_select %p160, %s18, 3
        %s162 = smul.addr %s161, 64
        %s163 = smul.addr %s162, 4
        %s164 = scalar_lea.vmem %s1, %s163
      $region24: #{inv_res_block_forward.6} parent=15 // pred_fallthru
        _
    $region16: #{inv_res_block_forward.6} parent=5 // pred_fallthru
      _
    %p165 = scmp.le.s32.totalorder 1, %s10
    %p166 = scmp.lt.s32.totalorder %s10, 9
    %p167 = pnand %p165, %p166
    %p168 = pneg %p167
    // Predicated region
    $region25: #{inv_res_block_forward.6} parent=5 // pred_check
      _
    $region26: #{inv_res_block_forward.6} parent=5 // pred_check_branch
      %170 = sbr.rel (%p167) target = $region28
    $region27: #{inv_res_block_forward.6} parent=5 // pred_region
      %s171 = ssub.s32 %s10, 1
      %p172 = scmp.lt.s32.totalorder %s19, 1
      %s173 = scalar_select %p172, %s19, 1
      %s174 = smul.addr %s173, 18
      %s175 = smul.addr %s174, 4
      %s176 = scalar_lea.vmem %s0, %s175
      %p177 = pneg %p48
      %p178 = pneg %p45
      %p179 = scmp.lt.s32.totalorder %s20, 3
      %s180 = scalar_select %p179, %s20, 3
      %s181 = smul.addr %s180, 64
      %s182 = smul.addr %s181, 4
      %s183 = scalar_lea.vmem %s1, %s182
      %p184 = pneg %p74
      %p185 = pneg %p71
      %p186 = pneg %p102
      %p187 = pneg %p99
      %p188 = scmp.lt.s32.totalorder %s20, 3
      %s189 = scalar_select %p188, %s20, 3
      %p190 = scmp.lt.s32.totalorder %s19, 1
      %s191 = scalar_select %p190, %s19, 1
      %s192 = smul.addr %s191, 8
      %s193 = smul.addr %s189, 16
      %s194 = sadd.s32 %s192, %s193
      %s195 = smul.addr %s194, 8
      %s196 = scalar_lea.vmem %s2, %s195
      %p197 = pneg %p130
      %p198 = pneg %p127
      %p199 = scmp.lt.s32.totalorder %s20, 3
      %s200 = scalar_select %p199, %s20, 3
      %p201 = scmp.lt.s32.totalorder %s19, 1
      %s202 = scalar_select %p201, %s19, 1
      %s203 = smul.addr %s200, 2
      %s204 = sadd.s32 %s202, %s203
      %s205 = smul.addr %s204, 2
      %s206 = scalar_lea.vmem %s3, %s205
      %p207 = scmp.lt.s32.totalorder %s19, 1
      %s208 = scalar_select %p207, %s19, 1
      %s209 = smul.addr %s208, 18
      %s210 = smul.addr %s209, 4
      %s211 = scalar_lea.vmem %s0, %s210
      %p212 = scmp.lt.s32.totalorder %s20, 3
      %s213 = scalar_select %p212, %s20, 3
      %s214 = smul.addr %s213, 64
      %s215 = smul.addr %s214, 4
      %s216 = scalar_lea.vmem %s1, %s215
      %p217 = scmp.lt.s32.totalorder %s20, 3
      %s218 = scalar_select %p217, %s20, 3
      %p219 = scmp.lt.s32.totalorder %s19, 1
      %s220 = scalar_select %p219, %s19, 1
      %s221 = smul.addr %s220, 8
      %s222 = smul.addr %s218, 16
      %s223 = sadd.s32 %s221, %s222
      %s224 = smul.addr %s223, 8
      %s225 = scalar_lea.vmem %s2, %s224
      %p226 = scmp.lt.s32.totalorder %s20, 3
      %s227 = scalar_select %p226, %s20, 3
      %p228 = scmp.lt.s32.totalorder %s19, 1
      %s229 = scalar_select %p228, %s19, 1
      %s230 = smul.addr %s227, 2
      %s231 = sadd.s32 %s229, %s230
      %s232 = smul.addr %s231, 2
      %s233 = scalar_lea.vmem %s3, %s232
      %v235 = vld [vmem:[%s211] sm:$0xf]
      %v236 = vld [vmem:[%s211 + $0x8] sm:$0xf]
      %v237 = vld [vmem:[%s211 + $0x10] sm:$0xf]
      %v238 = vld [vmem:[%s211 + $0x18] sm:$0xf]
      %v239 = vld [vmem:[%s211 + $0x20] sm:$0xf]
      %v240 = vld [vmem:[%s211 + $0x28] sm:$0xf]
      %v241 = vld [vmem:[%s211 + $0x30] sm:$0xf]
      %v242 = vld [vmem:[%s211 + $0x38] sm:$0xf]
      %v243 = vld [vmem:[%s216] sm:$0xf]
      %v244 = vld [vmem:[%s216 + $0x4] sm:$0xf]
      %v245 = vld [vmem:[%s216 + $0x8] sm:$0xf]
      %v246 = vld [vmem:[%s216 + $0xc] sm:$0xf]
      %v247 = vld [vmem:[%s216 + $0x10] sm:$0xf]
      %v248 = vld [vmem:[%s216 + $0x14] sm:$0xf]
      %v249 = vld [vmem:[%s216 + $0x18] sm:$0xf]
      %v250 = vld [vmem:[%s216 + $0x1c] sm:$0xf]
      %v251 = vld [vmem:[%s216 + $0x20] sm:$0xf]
      %v252 = vld [vmem:[%s216 + $0x24] sm:$0xf]
      %v253 = vld [vmem:[%s216 + $0x28] sm:$0xf]
      %v254 = vld [vmem:[%s216 + $0x2c] sm:$0xf]
      %v255 = vld [vmem:[%s216 + $0x30] sm:$0xf]
      %v256 = vld [vmem:[%s216 + $0x34] sm:$0xf]
      %v257 = vld [vmem:[%s216 + $0x38] sm:$0xf]
      %v258 = vld [vmem:[%s216 + $0x3c] sm:$0xf]
      %v259 = vld [vmem:[%s211 + $0x4] sm:$0x1]
      %v260 = vld [vmem:[%s211 + $0xc] sm:$0x1]
      %v261 = vld [vmem:[%s211 + $0x14] sm:$0x1]
      %v262 = vld [vmem:[%s211 + $0x1c] sm:$0x1]
      %v263 = vld [vmem:[%s211 + $0x24] sm:$0x1]
      %v264 = vld [vmem:[%s211 + $0x2c] sm:$0x1]
      %v265 = vld [vmem:[%s211 + $0x34] sm:$0x1]
      %v266 = vld [vmem:[%s211 + $0x3c] sm:$0x1]
      %vm267 = vsmask.f32 3328
      %vm268 = vsmask.f32 7440
      %vm269 = vmor %vm267, %vm268
      %v271 = vshrl.u32 %v235, 16
      %v273 = vrot.slane %v271, 4
      %v274 = vshll.u32 %v235, 16
      %v276 = vrot.slane %v274, 5
      %v277 = vor.u32 %v273, %v276
      %v278 = vrot.slane %v277, 4
      %v280 = vshll.u32 %v259, 16
      %v282 = vrot.slane %v280, 5
      %v283 = vsel %vm269, %v278, %v282
      %v285 = vshrl.u32 %v236, 16
      %v287 = vrot.slane %v285, 4
      %v288 = vshll.u32 %v236, 16
      %v290 = vrot.slane %v288, 5
      %v291 = vor.u32 %v287, %v290
      %v292 = vrot.slane %v291, 4
      %v294 = vshll.u32 %v260, 16
      %v296 = vrot.slane %v294, 5
      %v297 = vsel %vm269, %v292, %v296
      %v299 = vshrl.u32 %v237, 16
      %v301 = vrot.slane %v299, 4
      %v302 = vshll.u32 %v237, 16
      %v304 = vrot.slane %v302, 5
      %v305 = vor.u32 %v301, %v304
      %v306 = vrot.slane %v305, 4
      %v308 = vshll.u32 %v261, 16
      %v310 = vrot.slane %v308, 5
      %v311 = vsel %vm269, %v306, %v310
      %v313 = vshrl.u32 %v238, 16
      %v315 = vrot.slane %v313, 4
      %v316 = vshll.u32 %v238, 16
      %v318 = vrot.slane %v316, 5
      %v319 = vor.u32 %v315, %v318
      %v320 = vrot.slane %v319, 4
      %v322 = vshll.u32 %v262, 16
      %v324 = vrot.slane %v322, 5
      %v325 = vsel %vm269, %v320, %v324
      %v327 = vshrl.u32 %v239, 16
      %v329 = vrot.slane %v327, 4
      %v330 = vshll.u32 %v239, 16
      %v332 = vrot.slane %v330, 5
      %v333 = vor.u32 %v329, %v332
      %v334 = vrot.slane %v333, 4
      %v336 = vshll.u32 %v263, 16
      %v338 = vrot.slane %v336, 5
      %v339 = vsel %vm269, %v334, %v338
      %v341 = vshrl.u32 %v240, 16
      %v343 = vrot.slane %v341, 4
      %v344 = vshll.u32 %v240, 16
      %v346 = vrot.slane %v344, 5
      %v347 = vor.u32 %v343, %v346
      %v348 = vrot.slane %v347, 4
      %v350 = vshll.u32 %v264, 16
      %v352 = vrot.slane %v350, 5
      %v353 = vsel %vm269, %v348, %v352
      %v355 = vshrl.u32 %v241, 16
      %v357 = vrot.slane %v355, 4
      %v358 = vshll.u32 %v241, 16
      %v360 = vrot.slane %v358, 5
      %v361 = vor.u32 %v357, %v360
      %v362 = vrot.slane %v361, 4
      %v364 = vshll.u32 %v265, 16
      %v366 = vrot.slane %v364, 5
      %v367 = vsel %vm269, %v362, %v366
      %v369 = vshrl.u32 %v242, 16
      %v371 = vrot.slane %v369, 4
      %v372 = vshll.u32 %v242, 16
      %v374 = vrot.slane %v372, 5
      %v375 = vor.u32 %v371, %v374
      %v376 = vrot.slane %v375, 4
      %v378 = vshll.u32 %v266, 16
      %v380 = vrot.slane %v378, 5
      %v381 = vsel %vm269, %v376, %v380
      %v382 = vld [vmem:[%s216 + $0x40] sm:$0xf]
      %v383 = vld [vmem:[%s216 + $0x44] sm:$0xf]
      %v384 = vld [vmem:[%s216 + $0x48] sm:$0xf]
      %v385 = vld [vmem:[%s216 + $0x4c] sm:$0xf]
      %v386 = vld [vmem:[%s216 + $0x50] sm:$0xf]
      %v387 = vld [vmem:[%s216 + $0x54] sm:$0xf]
      %v388 = vld [vmem:[%s216 + $0x58] sm:$0xf]
      %v389 = vld [vmem:[%s216 + $0x5c] sm:$0xf]
      %v390 = vld [vmem:[%s216 + $0x60] sm:$0xf]
      %v391 = vld [vmem:[%s216 + $0x64] sm:$0xf]
      %v392 = vld [vmem:[%s216 + $0x68] sm:$0xf]
      %v393 = vld [vmem:[%s216 + $0x6c] sm:$0xf]
      %v394 = vld [vmem:[%s216 + $0x70] sm:$0xf]
      %v395 = vld [vmem:[%s216 + $0x74] sm:$0xf]
      %v396 = vld [vmem:[%s216 + $0x78] sm:$0xf]
      %v397 = vld [vmem:[%s216 + $0x7c] sm:$0xf]
      %v398 = vunpack.c.l.b16 %v283
      %v399 = vunpack.c.l.b16 %v297
      %v400 = vunpack.c.l.b16 %v311
      %v401 = vunpack.c.l.b16 %v325
      %v402 = vunpack.c.l.b16 %v339
      %v403 = vunpack.c.l.b16 %v353
      %v404 = vunpack.c.l.b16 %v367
      %v405 = vunpack.c.l.b16 %v381
      %v406 = vpack.c.b16 %v399, %v398
      %v407 = vpack.c.b16 %v401, %v400
      %v408 = vpack.c.b16 %v403, %v402
      %v409 = vpack.c.b16 %v405, %v404
      %v430 = vunpack.c.l.b16 %v382
      %v431 = vunpack.c.l.b16 %v383
      %v432 = vunpack.c.l.b16 %v384
      %v433 = vunpack.c.l.b16 %v385
      %v434 = vunpack.c.l.b16 %v386
      %v435 = vunpack.c.l.b16 %v387
      %v436 = vunpack.c.l.b16 %v388
      %v437 = vunpack.c.l.b16 %v389
      %v438 = vunpack.c.l.b16 %v390
      %v439 = vunpack.c.l.b16 %v391
      %v440 = vunpack.c.l.b16 %v392
      %v441 = vunpack.c.l.b16 %v393
      %v442 = vunpack.c.l.b16 %v394
      %v443 = vunpack.c.l.b16 %v395
      %v444 = vunpack.c.l.b16 %v396
      %v445 = vunpack.c.l.b16 %v397
      %v446 = vpack.c.b16 %v431, %v430
      %v447 = vpack.c.b16 %v433, %v432
      %v448 = vpack.c.b16 %v435, %v434
      %v449 = vpack.c.b16 %v437, %v436
      %v450 = vpack.c.b16 %v439, %v438
      %v451 = vpack.c.b16 %v441, %v440
      %v452 = vpack.c.b16 %v443, %v442
      %v453 = vpack.c.b16 %v445, %v444
      %462 = vmatprep.subr.bf16.mxu0 0
      %463 = vmatpush1.bf16.msra.mxu0 %v446
      %464 = vmatprep.subr.bf16.mxu0 0
      %465 = vmatpush1.bf16.msra.mxu0 %v447
      %466 = vmatprep.subr.bf16.mxu0 0
      %467 = vmatpush1.bf16.msra.mxu0 %v448
      %468 = vmatprep.subr.bf16.mxu0 0
      %469 = vmatpush1.bf16.msra.mxu0 %v449
      %470 = vmatprep.subr.bf16.mxu0 0
      %471 = vmatpush1.bf16.msra.mxu0 %v450
      %472 = vmatprep.subr.bf16.mxu0 0
      %473 = vmatpush1.bf16.msra.mxu0 %v451
      %474 = vmatprep.subr.bf16.mxu0 0
      %475 = vmatpush1.bf16.msra.mxu0 %v452
      %476 = vmatprep.subr.bf16.mxu0 0
      %477 = vmatpush1.bf16.msra.mxu0 %v453
      %478 = vmatprep.subr.bf16.mxu0 0
      %479 = vmatpush1.bf16.msra.mxu0 0
      %480 = vmatprep.subr.bf16.mxu0 0
      %481 = vmatpush1.bf16.msra.mxu0 0
      %482 = vmatprep.subr.bf16.mxu0 0
      %483 = vmatpush1.bf16.msra.mxu0 0
      %484 = vmatprep.subr.bf16.mxu0 0
      %485 = vmatpush1.bf16.msra.mxu0 0
      %486 = vmatprep.subr.bf16.mxu0 0
      %487 = vmatpush1.bf16.msra.mxu0 0
      %488 = vmatprep.subr.bf16.mxu0 0
      %489 = vmatpush1.bf16.msra.mxu0 0
      %490 = vmatprep.subr.bf16.mxu0 0
      %491 = vmatpush1.bf16.msra.mxu0 0
      %492 = vmatprep.subr.bf16.mxu0 0
      %493 = vmatpush1.bf16.msra.mxu0 0
      %494 = vmatprep.mubr.bf16.mxu0 0
      %495 = vmatmul.mubr.bf16.gmra.mrb[0].mxu0 %v406
      %v496 = vpop.f32.mrb[0].mxu0
      %v497 = vadd.f32 0.0, %v496
      %v498 = vpop.f32.mrb[0].mxu0
      %v499 = vpop.f32.mrb[0].mxu0
      %v500 = vadd.f32 0.0, %v499
      %v501 = vpop.f32.mrb[0].mxu0
      %502 = vmatprep.mubr.bf16.mxu0 0
      %503 = vmatmul.mubr.bf16.gmra.mrb[0].mxu0 %v407
      %v504 = vpop.f32.mrb[0].mxu0
      %v505 = vadd.f32 0.0, %v504
      %v506 = vpop.f32.mrb[0].mxu0
      %v507 = vpop.f32.mrb[0].mxu0
      %v508 = vadd.f32 0.0, %v507
      %v509 = vpop.f32.mrb[0].mxu0
      %510 = vmatprep.mubr.bf16.mxu0 0
      %511 = vmatmul.mubr.bf16.gmra.mrb[0].mxu0 %v408
      %v512 = vpop.f32.mrb[0].mxu0
      %v513 = vadd.f32 0.0, %v512
      %v514 = vpop.f32.mrb[0].mxu0
      %v515 = vpop.f32.mrb[0].mxu0
      %v516 = vadd.f32 0.0, %v515
      %v517 = vpop.f32.mrb[0].mxu0
      %518 = vmatprep.mubr.bf16.mxu0 0
      %519 = vmatmul.mubr.bf16.gmra.mrb[0].mxu0 %v409
      %v520 = vpop.f32.mrb[0].mxu0
      %v521 = vadd.f32 0.0, %v520
      %v522 = vpop.f32.mrb[0].mxu0
      %v523 = vpop.f32.mrb[0].mxu0
      %v524 = vadd.f32 0.0, %v523
      %v525 = vpop.f32.mrb[0].mxu0
      %526 = vdwg.mxu0
      %v535 = vunpack.c.l.b16 %v235
      %v536 = vunpack.c.l.b16 %v236
      %v537 = vunpack.c.l.b16 %v237
      %v538 = vunpack.c.l.b16 %v238
      %v539 = vunpack.c.l.b16 %v239
      %v540 = vunpack.c.l.b16 %v240
      %v541 = vunpack.c.l.b16 %v241
      %v542 = vunpack.c.l.b16 %v242
      %v543 = vpack.c.b16 %v536, %v535
      %v544 = vpack.c.b16 %v538, %v537
      %v545 = vpack.c.b16 %v540, %v539
      %v546 = vpack.c.b16 %v542, %v541
      %v567 = vunpack.c.l.b16 %v243
      %v568 = vunpack.c.l.b16 %v244
      %v569 = vunpack.c.l.b16 %v245
      %v570 = vunpack.c.l.b16 %v246
      %v571 = vunpack.c.l.b16 %v247
      %v572 = vunpack.c.l.b16 %v248
      %v573 = vunpack.c.l.b16 %v249
      %v574 = vunpack.c.l.b16 %v250
      %v575 = vunpack.c.l.b16 %v251
      %v576 = vunpack.c.l.b16 %v252
      %v577 = vunpack.c.l.b16 %v253
      %v578 = vunpack.c.l.b16 %v254
      %v579 = vunpack.c.l.b16 %v255
      %v580 = vunpack.c.l.b16 %v256
      %v581 = vunpack.c.l.b16 %v257
      %v582 = vunpack.c.l.b16 %v258
      %v583 = vpack.c.b16 %v568, %v567
      %v584 = vpack.c.b16 %v570, %v569
      %v585 = vpack.c.b16 %v572, %v571
      %v586 = vpack.c.b16 %v574, %v573
      %v587 = vpack.c.b16 %v576, %v575
      %v588 = vpack.c.b16 %v578, %v577
      %v589 = vpack.c.b16 %v580, %v579
      %v590 = vpack.c.b16 %v582, %v581
      %599 = vmatprep.subr.bf16.mxu0 0
      %600 = vmatpush1.bf16.msra.mxu0 %v583
      %601 = vmatprep.subr.bf16.mxu0 0
      %602 = vmatpush1.bf16.msra.mxu0 %v584
      %603 = vmatprep.subr.bf16.mxu0 0
      %604 = vmatpush1.bf16.msra.mxu0 %v585
      %605 = vmatprep.subr.bf16.mxu0 0
      %606 = vmatpush1.bf16.msra.mxu0 %v586
      %607 = vmatprep.subr.bf16.mxu0 0
      %608 = vmatpush1.bf16.msra.mxu0 %v587
      %609 = vmatprep.subr.bf16.mxu0 0
      %610 = vmatpush1.bf16.msra.mxu0 %v588
      %611 = vmatprep.subr.bf16.mxu0 0
      %612 = vmatpush1.bf16.msra.mxu0 %v589
      %613 = vmatprep.subr.bf16.mxu0 0
      %614 = vmatpush1.bf16.msra.mxu0 %v590
      %615 = vmatprep.subr.bf16.mxu0 0
      %616 = vmatpush1.bf16.msra.mxu0 0
      %617 = vmatprep.subr.bf16.mxu0 0
      %618 = vmatpush1.bf16.msra.mxu0 0
      %619 = vmatprep.subr.bf16.mxu0 0
      %620 = vmatpush1.bf16.msra.mxu0 0
      %621 = vmatprep.subr.bf16.mxu0 0
      %622 = vmatpush1.bf16.msra.mxu0 0
      %623 = vmatprep.subr.bf16.mxu0 0
      %624 = vmatpush1.bf16.msra.mxu0 0
      %625 = vmatprep.subr.bf16.mxu0 0
      %626 = vmatpush1.bf16.msra.mxu0 0
      %627 = vmatprep.subr.bf16.mxu0 0
      %628 = vmatpush1.bf16.msra.mxu0 0
      %629 = vmatprep.subr.bf16.mxu0 0
      %630 = vmatpush1.bf16.msra.mxu0 0
      %631 = vmatprep.mubr.bf16.mxu0 0
      %632 = vmatmul.mubr.bf16.gmra.mrb[0].mxu0 %v543
      %v633 = vpop.f32.mrb[0].mxu0
      %v634 = vadd.f32 %v497, %v633
      %v635 = vpop.f32.mrb[0].mxu0
      %v636 = vpop.f32.mrb[0].mxu0
      %v637 = vadd.f32 %v500, %v636
      %v638 = vpop.f32.mrb[0].mxu0
      %639 = vmatprep.mubr.bf16.mxu0 0
      %640 = vmatmul.mubr.bf16.gmra.mrb[0].mxu0 %v544
      %v641 = vpop.f32.mrb[0].mxu0
      %v642 = vadd.f32 %v505, %v641
      %v643 = vpop.f32.mrb[0].mxu0
      %v644 = vpop.f32.mrb[0].mxu0
      %v645 = vadd.f32 %v508, %v644
      %v646 = vpop.f32.mrb[0].mxu0
      %647 = vmatprep.mubr.bf16.mxu0 0
      %648 = vmatmul.mubr.bf16.gmra.mrb[0].mxu0 %v545
      %v649 = vpop.f32.mrb[0].mxu0
      %v650 = vadd.f32 %v513, %v649
      %v651 = vpop.f32.mrb[0].mxu0
      %v652 = vpop.f32.mrb[0].mxu0
      %v653 = vadd.f32 %v516, %v652
      %v654 = vpop.f32.mrb[0].mxu0
      %655 = vmatprep.mubr.bf16.mxu0 0
      %656 = vmatmul.mubr.bf16.gmra.mrb[0].mxu0 %v546
      %v657 = vpop.f32.mrb[0].mxu0
      %v658 = vadd.f32 %v521, %v657
      %v659 = vpop.f32.mrb[0].mxu0
      %v660 = vpop.f32.mrb[0].mxu0
      %v661 = vadd.f32 %v524, %v660
      %v662 = vpop.f32.mrb[0].mxu0
      %663 = vdwg.mxu0
      %s664 = scalar_lea.vmem %s211, 8
      %v665 = vld [vmem:[%s664] sm:$0xf]
      %v666 = vld [vmem:[%s664 + $0x8] sm:$0xf]
      %v667 = vld [vmem:[%s664 + $0x10] sm:$0xf]
      %v668 = vld [vmem:[%s664 + $0x18] sm:$0xf]
      %v669 = vld [vmem:[%s664 + $0x20] sm:$0xf]
      %v670 = vld [vmem:[%s664 + $0x28] sm:$0xf]
      %v671 = vld [vmem:[%s664 + $0x30] sm:$0xf]
      %v672 = vld [vmem:[%s664 + $0x38] sm:$0xf]
      %v673 = vld [vmem:[%s216 + $0x80] sm:$0xf]
      %v674 = vld [vmem:[%s216 + $0x84] sm:$0xf]
      %v675 = vld [vmem:[%s216 + $0x88] sm:$0xf]
      %v676 = vld [vmem:[%s216 + $0x8c] sm:$0xf]
      %v677 = vld [vmem:[%s216 + $0x90] sm:$0xf]
      %v678 = vld [vmem:[%s216 + $0x94] sm:$0xf]
      %v679 = vld [vmem:[%s216 + $0x98] sm:$0xf]
      %v680 = vld [vmem:[%s216 + $0x9c] sm:$0xf]
      %v681 = vld [vmem:[%s216 + $0xa0] sm:$0xf]
      %v682 = vld [vmem:[%s216 + $0xa4] sm:$0xf]
      %v683 = vld [vmem:[%s216 + $0xa8] sm:$0xf]
      %v684 = vld [vmem:[%s216 + $0xac] sm:$0xf]
      %v685 = vld [vmem:[%s216 + $0xb0] sm:$0xf]
      %v686 = vld [vmem:[%s216 + $0xb4] sm:$0xf]
      %v687 = vld [vmem:[%s216 + $0xb8] sm:$0xf]
      %v688 = vld [vmem:[%s216 + $0xbc] sm:$0xf]
      %v697 = vunpack.c.l.b16 %v665
      %v698 = vunpack.c.l.b16 %v666
      %v699 = vunpack.c.l.b16 %v667
      %v700 = vunpack.c.l.b16 %v668
      %v701 = vunpack.c.l.b16 %v669
      %v702 = vunpack.c.l.b16 %v670
      %v703 = vunpack.c.l.b16 %v671
      %v704 = vunpack.c.l.b16 %v672
      %v705 = vpack.c.b16 %v698, %v697
      %v706 = vpack.c.b16 %v700, %v699
      %v707 = vpack.c.b16 %v702, %v701
      %v708 = vpack.c.b16 %v704, %v703
      %v729 = vunpack.c.l.b16 %v673
      %v730 = vunpack.c.l.b16 %v674
      %v731 = vunpack.c.l.b16 %v675
      %v732 = vunpack.c.l.b16 %v676
      %v733 = vunpack.c.l.b16 %v677
      %v734 = vunpack.c.l.b16 %v678
      %v735 = vunpack.c.l.b16 %v679
      %v736 = vunpack.c.l.b16 %v680
      %v737 = vunpack.c.l.b16 %v681
      %v738 = vunpack.c.l.b16 %v682
      %v739 = vunpack.c.l.b16 %v683
      %v740 = vunpack.c.l.b16 %v684
      %v741 = vunpack.c.l.b16 %v685
      %v742 = vunpack.c.l.b16 %v686
      %v743 = vunpack.c.l.b16 %v687
      %v744 = vunpack.c.l.b16 %v688
      %v745 = vpack.c.b16 %v730, %v729
      %v746 = vpack.c.b16 %v732, %v731
      %v747 = vpack.c.b16 %v734, %v733
      %v748 = vpack.c.b16 %v736, %v735
      %v749 = vpack.c.b16 %v738, %v737
      %v750 = vpack.c.b16 %v740, %v739
      %v751 = vpack.c.b16 %v742, %v741
      %v752 = vpack.c.b16 %v744, %v743
      %761 = vmatprep.subr.bf16.mxu0 0
      %762 = vmatpush1.bf16.msra.mxu0 %v745
      %763 = vmatprep.subr.bf16.mxu0 0
      %764 = vmatpush1.bf16.msra.mxu0 %v746
      %765 = vmatprep.subr.bf16.mxu0 0
      %766 = vmatpush1.bf16.msra.mxu0 %v747
      %767 = vmatprep.subr.bf16.mxu0 0
      %768 = vmatpush1.bf16.msra.mxu0 %v748
      %769 = vmatprep.subr.bf16.mxu0 0
      %770 = vmatpush1.bf16.msra.mxu0 %v749
      %771 = vmatprep.subr.bf16.mxu0 0
      %772 = vmatpush1.bf16.msra.mxu0 %v750
      %773 = vmatprep.subr.bf16.mxu0 0
      %774 = vmatpush1.bf16.msra.mxu0 %v751
      %775 = vmatprep.subr.bf16.mxu0 0
      %776 = vmatpush1.bf16.msra.mxu0 %v752
      %777 = vmatprep.subr.bf16.mxu0 0
      %778 = vmatpush1.bf16.msra.mxu0 0
      %779 = vmatprep.subr.bf16.mxu0 0
      %780 = vmatpush1.bf16.msra.mxu0 0
      %781 = vmatprep.subr.bf16.mxu0 0
      %782 = vmatpush1.bf16.msra.mxu0 0
      %783 = vmatprep.subr.bf16.mxu0 0
      %784 = vmatpush1.bf16.msra.mxu0 0
      %785 = vmatprep.subr.bf16.mxu0 0
      %786 = vmatpush1.bf16.msra.mxu0 0
      %787 = vmatprep.subr.bf16.mxu0 0
      %788 = vmatpush1.bf16.msra.mxu0 0
      %789 = vmatprep.subr.bf16.mxu0 0
      %790 = vmatpush1.bf16.msra.mxu0 0
      %791 = vmatprep.subr.bf16.mxu0 0
      %792 = vmatpush1.bf16.msra.mxu0 0
      %793 = vmatprep.mubr.bf16.mxu0 0
      %794 = vmatmul.mubr.bf16.gmra.mrb[0].mxu0 %v705
      %v795 = vpop.f32.mrb[0].mxu0
      %v796 = vadd.f32 0.0, %v795
      %v797 = vpop.f32.mrb[0].mxu0
      %v798 = vpop.f32.mrb[0].mxu0
      %v799 = vadd.f32 0.0, %v798
      %v800 = vpop.f32.mrb[0].mxu0
      %801 = vmatprep.mubr.bf16.mxu0 0
      %802 = vmatmul.mubr.bf16.gmra.mrb[0].mxu0 %v706
      %v803 = vpop.f32.mrb[0].mxu0
      %v804 = vadd.f32 0.0, %v803
      %v805 = vpop.f32.mrb[0].mxu0
      %v806 = vpop.f32.mrb[0].mxu0
      %v807 = vadd.f32 0.0, %v806
      %v808 = vpop.f32.mrb[0].mxu0
      %809 = vmatprep.mubr.bf16.mxu0 0
      %810 = vmatmul.mubr.bf16.gmra.mrb[0].mxu0 %v707
      %v811 = vpop.f32.mrb[0].mxu0
      %v812 = vadd.f32 0.0, %v811
      %v813 = vpop.f32.mrb[0].mxu0
      %v814 = vpop.f32.mrb[0].mxu0
      %v815 = vadd.f32 0.0, %v814
      %v816 = vpop.f32.mrb[0].mxu0
      %817 = vmatprep.mubr.bf16.mxu0 0
      %818 = vmatmul.mubr.bf16.gmra.mrb[0].mxu0 %v708
      %v819 = vpop.f32.mrb[0].mxu0
      %v820 = vadd.f32 0.0, %v819
      %v821 = vpop.f32.mrb[0].mxu0
      %v822 = vpop.f32.mrb[0].mxu0
      %v823 = vadd.f32 0.0, %v822
      %v824 = vpop.f32.mrb[0].mxu0
      %825 = vdwg.mxu0
      %v826 = vadd.f32 %v634, %v796
      %v827 = vadd.f32 %v637, %v799
      %v828 = vadd.f32 %v642, %v804
      %v829 = vadd.f32 %v645, %v807
      %v830 = vadd.f32 %v650, %v812
      %v831 = vadd.f32 %v653, %v815
      %v832 = vadd.f32 %v658, %v820
      %v833 = vadd.f32 %v661, %v823
      %v834 = vld [vmem:[%s664] sm:$0xf]
      %v835 = vld [vmem:[%s664 + $0x4] sm:$0x1]
      %v836 = vld [vmem:[%s664 + $0x8] sm:$0xf]
      %v837 = vld [vmem:[%s664 + $0xc] sm:$0x1]
      %v838 = vld [vmem:[%s664 + $0x10] sm:$0xf]
      %v839 = vld [vmem:[%s664 + $0x14] sm:$0x1]
      %v840 = vld [vmem:[%s664 + $0x18] sm:$0xf]
      %v841 = vld [vmem:[%s664 + $0x1c] sm:$0x1]
      %v842 = vld [vmem:[%s664 + $0x20] sm:$0xf]
      %v843 = vld [vmem:[%s664 + $0x24] sm:$0x1]
      %v844 = vld [vmem:[%s664 + $0x28] sm:$0xf]
      %v845 = vld [vmem:[%s664 + $0x2c] sm:$0x1]
      %v846 = vld [vmem:[%s664 + $0x30] sm:$0xf]
      %v847 = vld [vmem:[%s664 + $0x34] sm:$0x1]
      %v848 = vld [vmem:[%s664 + $0x38] sm:$0xf]
      %v849 = vld [vmem:[%s664 + $0x3c] sm:$0x1]
      %v851 = vshrl.u32 %v834, 16
      %v853 = vrot.slane %v851, 4
      %v854 = vshll.u32 %v834, 16
      %v856 = vrot.slane %v854, 5
      %v857 = vor.u32 %v853, %v856
      %v858 = vrot.slane %v857, 4
      %v860 = vshll.u32 %v835, 16
      %v862 = vrot.slane %v860, 5
      %v863 = vsel %vm269, %v858, %v862
      %v865 = vshrl.u32 %v836, 16
      %v867 = vrot.slane %v865, 4
      %v868 = vshll.u32 %v836, 16
      %v870 = vrot.slane %v868, 5
      %v871 = vor.u32 %v867, %v870
      %v872 = vrot.slane %v871, 4
      %v874 = vshll.u32 %v837, 16
      %v876 = vrot.slane %v874, 5
      %v877 = vsel %vm269, %v872, %v876
      %v879 = vshrl.u32 %v838, 16
      %v881 = vrot.slane %v879, 4
      %v882 = vshll.u32 %v838, 16
      %v884 = vrot.slane %v882, 5
      %v885 = vor.u32 %v881, %v884
      %v886 = vrot.slane %v885, 4
      %v888 = vshll.u32 %v839, 16
      %v890 = vrot.slane %v888, 5
      %v891 = vsel %vm269, %v886, %v890
      %v893 = vshrl.u32 %v840, 16
      %v895 = vrot.slane %v893, 4
      %v896 = vshll.u32 %v840, 16
      %v898 = vrot.slane %v896, 5
      %v899 = vor.u32 %v895, %v898
      %v900 = vrot.slane %v899, 4
      %v902 = vshll.u32 %v841, 16
      %v904 = vrot.slane %v902, 5
      %v905 = vsel %vm269, %v900, %v904
      %v907 = vshrl.u32 %v842, 16
      %v909 = vrot.slane %v907, 4
      %v910 = vshll.u32 %v842, 16
      %v912 = vrot.slane %v910, 5
      %v913 = vor.u32 %v909, %v912
      %v914 = vrot.slane %v913, 4
      %v916 = vshll.u32 %v843, 16
      %v918 = vrot.slane %v916, 5
      %v919 = vsel %vm269, %v914, %v918
      %v921 = vshrl.u32 %v844, 16
      %v923 = vrot.slane %v921, 4
      %v924 = vshll.u32 %v844, 16
      %v926 = vrot.slane %v924, 5
      %v927 = vor.u32 %v923, %v926
      %v928 = vrot.slane %v927, 4
      %v930 = vshll.u32 %v845, 16
      %v932 = vrot.slane %v930, 5
      %v933 = vsel %vm269, %v928, %v932
      %v935 = vshrl.u32 %v846, 16
      %v937 = vrot.slane %v935, 4
      %v938 = vshll.u32 %v846, 16
      %v940 = vrot.slane %v938, 5
      %v941 = vor.u32 %v937, %v940
      %v942 = vrot.slane %v941, 4
      %v944 = vshll.u32 %v847, 16
      %v946 = vrot.slane %v944, 5
      %v947 = vsel %vm269, %v942, %v946
      %v949 = vshrl.u32 %v848, 16
      %v951 = vrot.slane %v949, 4
      %v952 = vshll.u32 %v848, 16
      %v954 = vrot.slane %v952, 5
      %v955 = vor.u32 %v951, %v954
      %v956 = vrot.slane %v955, 4
      %v958 = vshll.u32 %v849, 16
      %v960 = vrot.slane %v958, 5
      %v961 = vsel %vm269, %v956, %v960
      %v962 = vld [vmem:[%s216 + $0xc0] sm:$0xf]
      %v963 = vld [vmem:[%s216 + $0xc4] sm:$0xf]
      %v964 = vld [vmem:[%s216 + $0xc8] sm:$0xf]
      %v965 = vld [vmem:[%s216 + $0xcc] sm:$0xf]
      %v966 = vld [vmem:[%s216 + $0xd0] sm:$0xf]
      %v967 = vld [vmem:[%s216 + $0xd4] sm:$0xf]
      %v968 = vld [vmem:[%s216 + $0xd8] sm:$0xf]
      %v969 = vld [vmem:[%s216 + $0xdc] sm:$0xf]
      %v970 = vld [vmem:[%s216 + $0xe0] sm:$0xf]
      %v971 = vld [vmem:[%s216 + $0xe4] sm:$0xf]
      %v972 = vld [vmem:[%s216 + $0xe8] sm:$0xf]
      %v973 = vld [vmem:[%s216 + $0xec] sm:$0xf]
      %v974 = vld [vmem:[%s216 + $0xf0] sm:$0xf]
      %v975 = vld [vmem:[%s216 + $0xf4] sm:$0xf]
      %v976 = vld [vmem:[%s216 + $0xf8] sm:$0xf]
      %v977 = vld [vmem:[%s216 + $0xfc] sm:$0xf]
      %v978 = vunpack.c.l.b16 %v863
      %v979 = vunpack.c.l.b16 %v877
      %v980 = vunpack.c.l.b16 %v891
      %v981 = vunpack.c.l.b16 %v905
      %v982 = vunpack.c.l.b16 %v919
      %v983 = vunpack.c.l.b16 %v933
      %v984 = vunpack.c.l.b16 %v947
      %v985 = vunpack.c.l.b16 %v961
      %v986 = vpack.c.b16 %v979, %v978
      %v987 = vpack.c.b16 %v981, %v980
      %v988 = vpack.c.b16 %v983, %v982
      %v989 = vpack.c.b16 %v985, %v984
      %v1010 = vunpack.c.l.b16 %v962
      %v1011 = vunpack.c.l.b16 %v963
      %v1012 = vunpack.c.l.b16 %v964
      %v1013 = vunpack.c.l.b16 %v965
      %v1014 = vunpack.c.l.b16 %v966
      %v1015 = vunpack.c.l.b16 %v967
      %v1016 = vunpack.c.l.b16 %v968
      %v1017 = vunpack.c.l.b16 %v969
      %v1018 = vunpack.c.l.b16 %v970
      %v1019 = vunpack.c.l.b16 %v971
      %v1020 = vunpack.c.l.b16 %v972
      %v1021 = vunpack.c.l.b16 %v973
      %v1022 = vunpack.c.l.b16 %v974
      %v1023 = vunpack.c.l.b16 %v975
      %v1024 = vunpack.c.l.b16 %v976
      %v1025 = vunpack.c.l.b16 %v977
      %v1026 = vpack.c.b16 %v1011, %v1010
      %v1027 = vpack.c.b16 %v1013, %v1012
      %v1028 = vpack.c.b16 %v1015, %v1014
      %v1029 = vpack.c.b16 %v1017, %v1016
      %v1030 = vpack.c.b16 %v1019, %v1018
      %v1031 = vpack.c.b16 %v1021, %v1020
      %v1032 = vpack.c.b16 %v1023, %v1022
      %v1033 = vpack.c.b16 %v1025, %v1024
      %1042 = vmatprep.subr.bf16.mxu0 0
      %1043 = vmatpush1.bf16.msra.mxu0 %v1026
      %1044 = vmatprep.subr.bf16.mxu0 0
      %1045 = vmatpush1.bf16.msra.mxu0 %v1027
      %1046 = vmatprep.subr.bf16.mxu0 0
      %1047 = vmatpush1.bf16.msra.mxu0 %v1028
      %1048 = vmatprep.subr.bf16.mxu0 0
      %1049 = vmatpush1.bf16.msra.mxu0 %v1029
      %1050 = vmatprep.subr.bf16.mxu0 0
      %1051 = vmatpush1.bf16.msra.mxu0 %v1030
      %1052 = vmatprep.subr.bf16.mxu0 0
      %1053 = vmatpush1.bf16.msra.mxu0 %v1031
      %1054 = vmatprep.subr.bf16.mxu0 0
      %1055 = vmatpush1.bf16.msra.mxu0 %v1032
      %1056 = vmatprep.subr.bf16.mxu0 0
      %1057 = vmatpush1.bf16.msra.mxu0 %v1033
      %1058 = vmatprep.subr.bf16.mxu0 0
      %1059 = vmatpush1.bf16.msra.mxu0 0
      %1060 = vmatprep.subr.bf16.mxu0 0
      %1061 = vmatpush1.bf16.msra.mxu0 0
      %1062 = vmatprep.subr.bf16.mxu0 0
      %1063 = vmatpush1.bf16.msra.mxu0 0
      %1064 = vmatprep.subr.bf16.mxu0 0
      %1065 = vmatpush1.bf16.msra.mxu0 0
      %1066 = vmatprep.subr.bf16.mxu0 0
      %1067 = vmatpush1.bf16.msra.mxu0 0
      %1068 = vmatprep.subr.bf16.mxu0 0
      %1069 = vmatpush1.bf16.msra.mxu0 0
      %1070 = vmatprep.subr.bf16.mxu0 0
      %1071 = vmatpush1.bf16.msra.mxu0 0
      %1072 = vmatprep.subr.bf16.mxu0 0
      %1073 = vmatpush1.bf16.msra.mxu0 0
      %1074 = vmatprep.mubr.bf16.mxu0 0
      %1075 = vmatmul.mubr.bf16.gmra.mrb[0].mxu0 %v986
      %v1076 = vpop.f32.mrb[0].mxu0
      %v1077 = vadd.f32 0.0, %v1076
      %v1078 = vpop.f32.mrb[0].mxu0
      %v1079 = vpop.f32.mrb[0].mxu0
      %v1080 = vadd.f32 0.0, %v1079
      %v1081 = vpop.f32.mrb[0].mxu0
      %1082 = vmatprep.mubr.bf16.mxu0 0
      %1083 = vmatmul.mubr.bf16.gmra.mrb[0].mxu0 %v987
      %v1084 = vpop.f32.mrb[0].mxu0
      %v1085 = vadd.f32 0.0, %v1084
      %v1086 = vpop.f32.mrb[0].mxu0
      %v1087 = vpop.f32.mrb[0].mxu0
      %v1088 = vadd.f32 0.0, %v1087
      %v1089 = vpop.f32.mrb[0].mxu0
      %1090 = vmatprep.mubr.bf16.mxu0 0
      %1091 = vmatmul.mubr.bf16.gmra.mrb[0].mxu0 %v988
      %v1092 = vpop.f32.mrb[0].mxu0
      %v1093 = vadd.f32 0.0, %v1092
      %v1094 = vpop.f32.mrb[0].mxu0
      %v1095 = vpop.f32.mrb[0].mxu0
      %v1096 = vadd.f32 0.0, %v1095
      %v1097 = vpop.f32.mrb[0].mxu0
      %1098 = vmatprep.mubr.bf16.mxu0 0
      %1099 = vmatmul.mubr.bf16.gmra.mrb[0].mxu0 %v989
      %v1100 = vpop.f32.mrb[0].mxu0
      %v1101 = vadd.f32 0.0, %v1100
      %v1102 = vpop.f32.mrb[0].mxu0
      %v1103 = vpop.f32.mrb[0].mxu0
      %v1104 = vadd.f32 0.0, %v1103
      %v1105 = vpop.f32.mrb[0].mxu0
      %1106 = vdwg.mxu0
      %v1107 = vadd.f32 %v826, %v1077
      %v1108 = vadd.f32 %v827, %v1080
      %v1109 = vadd.f32 %v828, %v1085
      %v1110 = vadd.f32 %v829, %v1088
      %v1111 = vadd.f32 %v830, %v1093
      %v1112 = vadd.f32 %v831, %v1096
      %v1113 = vadd.f32 %v832, %v1101
      %v1114 = vadd.f32 %v833, %v1104
      %1115 = vst [vmem:[%s225] sm:$0xff] %v1107
      %1116 = vst [vmem:[%s225 + $0x8] sm:$0xff] %v1108
      %1117 = vst [vmem:[%s225 + $0x10] sm:$0xff] %v1109
      %1118 = vst [vmem:[%s225 + $0x18] sm:$0xff] %v1110
      %1119 = vst [vmem:[%s225 + $0x20] sm:$0xff] %v1111
      %1120 = vst [vmem:[%s225 + $0x28] sm:$0xff] %v1112
      %1121 = vst [vmem:[%s225 + $0x30] sm:$0xff] %v1113
      %1122 = vst [vmem:[%s225 + $0x38] sm:$0xff] %v1114
      %v1123 = vadd.f32 %v1107, %v1108
      %v1124 = vadd.f32 %v1123, %v1109
      %v1125 = vadd.f32 %v1124, %v1110
      %v1126 = vadd.f32 %v1125, %v1111
      %v1127 = vadd.f32 %v1126, %v1112
      %v1128 = vadd.f32 %v1127, %v1113
      %v1129 = vadd.f32 %v1128, %v1114
      %v1130 = vrot.slane %v1129, 4
      %v1131 = vadd.f32 %v1129, %v1130
      %v1132 = vrot.slane %v1131, 2
      %v1133 = vadd.f32 %v1131, %v1132
      %v1134 = vrot.slane %v1133, 1
      %v1135 = vadd.f32 %v1133, %v1134
      %1136 = vst [vmem:[%s233] sm:$0x1] %v1135
      %v1137 = vmul.f32 %v1107, %v1107
      %v1138 = vmul.f32 %v1108, %v1108
      %v1139 = vmul.f32 %v1109, %v1109
      %v1140 = vmul.f32 %v1110, %v1110
      %v1141 = vmul.f32 %v1111, %v1111
      %v1142 = vmul.f32 %v1112, %v1112
      %v1143 = vmul.f32 %v1113, %v1113
      %v1144 = vmul.f32 %v1114, %v1114
      %v1145 = vadd.f32 %v1137, %v1138
      %v1146 = vadd.f32 %v1145, %v1139
      %v1147 = vadd.f32 %v1146, %v1140
      %v1148 = vadd.f32 %v1147, %v1141
      %v1149 = vadd.f32 %v1148, %v1142
      %v1150 = vadd.f32 %v1149, %v1143
      %v1151 = vadd.f32 %v1150, %v1144
      %v1152 = vrot.slane %v1151, 4
      %v1153 = vadd.f32 %v1151, %v1152
      %v1154 = vrot.slane %v1153, 2
      %v1155 = vadd.f32 %v1153, %v1154
      %v1156 = vrot.slane %v1155, 1
      %v1157 = vadd.f32 %v1155, %v1156
      %1158 = vst [vmem:[%s233 + $0x1] sm:$0x1] %v1157
      %p1159 = scmp.lt.s32.totalorder %s20, 3
      %s1160 = scalar_select %p1159, %s20, 3
      %p1161 = scmp.lt.s32.totalorder %s19, 1
      %s1162 = scalar_select %p1161, %s19, 1
      %s1163 = smul.addr %s1162, 8
      %s1164 = smul.addr %s1160, 16
      %s1165 = sadd.s32 %s1163, %s1164
      %s1166 = smul.addr %s1165, 8
      %s1167 = scalar_lea.vmem %s2, %s1166
      %p1168 = scmp.lt.s32.totalorder %s20, 3
      %s1169 = scalar_select %p1168, %s20, 3
      %p1170 = scmp.lt.s32.totalorder %s19, 1
      %s1171 = scalar_select %p1170, %s19, 1
      %s1172 = smul.addr %s1169, 2
      %s1173 = sadd.s32 %s1171, %s1172
      %s1174 = smul.addr %s1173, 2
      %s1175 = scalar_lea.vmem %s3, %s1174
      // Predicated region
      $region29: #{inv_res_block_forward.6} parent=27 // pred_check
        %p1176 = pneg %p99
      $region30: #{inv_res_block_forward.6} parent=27 // pred_check_branch
        %1178 = sbr.rel (%p1176) target = $region32
      $region31: #{inv_res_block_forward.6} parent=27 // pred_region
        _
      $region32: #{inv_res_block_forward.6} parent=27 // pred_fallthru
        _
      // Predicated region
      $region33: #{inv_res_block_forward.6} parent=27 // pred_check
        %p1179 = pneg %p127
      $region34: #{inv_res_block_forward.6} parent=27 // pred_check_branch
        %1181 = sbr.rel (%p1179) target = $region36
      $region35: #{inv_res_block_forward.6} parent=27 // pred_region
        _
      $region36: #{inv_res_block_forward.6} parent=27 // pred_fallthru
        _
    $region28: #{inv_res_block_forward.6} parent=5 // pred_fallthru
      _
    %p1182 = scmp.le.s32.totalorder 2, %s10
    // Predicated region
    $region37: #{inv_res_block_forward.6} parent=5 // pred_check
      %p1183 = pneg %p1182
    $region38: #{inv_res_block_forward.6} parent=5 // pred_check_branch
      %1185 = sbr.rel (%p1183) target = $region40
    $region39: #{inv_res_block_forward.6} parent=5 // pred_region
      %s1186 = ssub.s32 %s10, 2
      // Predicated region
      $region41: #{inv_res_block_forward.6} parent=39 // pred_check
        %p1187 = pneg %p105
      $region42: #{inv_res_block_forward.6} parent=39 // pred_check_branch
        %1189 = sbr.rel (%p1187) target = $region44
      $region43: #{inv_res_block_forward.6} parent=39 // pred_region
        %p1190 = scmp.lt.s32.totalorder %s22, 3
        %s1191 = scalar_select %p1190, %s22, 3
        %p1192 = scmp.lt.s32.totalorder %s21, 1
        %s1193 = scalar_select %p1192, %s21, 1
        %s1194 = smul.addr %s1193, 8
        %s1195 = smul.addr %s1191, 16
        %s1196 = sadd.s32 %s1194, %s1195
        %s1197 = smul.addr %s1196, 8
        %s1198 = scalar_lea.vmem %s2, %s1197
      $region44: #{inv_res_block_forward.6} parent=39 // pred_fallthru
        _
      // Predicated region
      $region45: #{inv_res_block_forward.6} parent=39 // pred_check
        %p1199 = pneg %p133
      $region46: #{inv_res_block_forward.6} parent=39 // pred_check_branch
        %1201 = sbr.rel (%p1199) target = $region48
      $region47: #{inv_res_block_forward.6} parent=39 // pred_region
        %p1202 = scmp.lt.s32.totalorder %s22, 3
        %s1203 = scalar_select %p1202, %s22, 3
        %p1204 = scmp.lt.s32.totalorder %s21, 1
        %s1205 = scalar_select %p1204, %s21, 1
        %s1206 = smul.addr %s1203, 2
        %s1207 = sadd.s32 %s1205, %s1206
        %s1208 = smul.addr %s1207, 2
        %s1209 = scalar_lea.vmem %s3, %s1208
      $region48: #{inv_res_block_forward.6} parent=39 // pred_fallthru
        _
    $region40: #{inv_res_block_forward.6} parent=5 // pred_fallthru
      _
  $region6: #{inv_res_block_forward.6} parent=0 // loop_footer
    %s14 = sadd.s32 1, %s10
  $region7: #{inv_res_block_forward.6} parent=0 // loop_footer_branch
    %9 = sbr.rel target = $region3
  $region8: #{inv_res_block_forward.6} parent=0 // loop_exit
    _

// kernel: inv_res_block_forward.7
$region0: #{inv_res_block_forward.7}
  #allocation0 [shape = 'u32[]', space=smem, size = 0x4, offset = 0x4, fixed_abs, tag = 'smem constant byte address 0x4 - core index']
  #allocation1 [shape = 'u32[144,128]{1,0:T(1,128)}', space=vmem, size = 0x12000, scoped, tag = 'internal scratch']
  %s0 = inlined_call_operand.vmem [shape: f32[4,2,64,128], index: 0, kind: input, shape index: {}]
  %s1 = inlined_call_operand.vmem [shape: f32[1,128], index: 1, kind: input, shape index: {}]
  %s2 = inlined_call_operand.vmem [shape: f32[1,128], index: 2, kind: input, shape index: {}]
  %s3 = inlined_call_operand.vmem [shape: bf16[2,64,128], index: 3, kind: input, shape index: {}]
  %s4 = inlined_call_operand.vmem [shape: bf16[128,128], index: 4, kind: input, shape index: {}]
  %s5 = inlined_call_operand.vmem [shape: f32[1,128], index: 5, kind: input, shape index: {}]
  %s6 = inlined_call_operand.vmem [shape: f32[4,2,64,128], index: 6, kind: output, shape index: {}]
  %s7 = sld [smem:[#allocation0]]
  $region61: #{inv_res_block_forward.7} parent=0
    _
  %s9 = ssub.s32 1, %s7
  %s10 = scalar_select 0, %s9, %s7
  loop: start=0, step=1, limit=10
  $region2: #{inv_res_block_forward.7} parent=0 // loop_pre_header
    _
  $region3: #{inv_res_block_forward.7} parent=0 // loop_header
    %s12 = sphi 0, %s16
    %p13 = scmp.ge.s32.totalorder %s12, 10
    %s19 = sphi 0, %s31
    %s20 = sphi 0, %s27
    %s21 = sphi 0, %s19
    %s22 = sphi 0, %s20
    %s23 = sphi 0, %s21
    %s24 = sphi 0, %s22
    %s36 = sphi 0, %s38
    %s39 = sphi 0, %s36
    %s40 = sphi 0, %s39
    %s56 = sphi 0, %s40
    %s60 = sphi 0, %s60
    %s62 = sphi 0, %s60
    %s63 = sphi 0, %s62
    %s77 = sphi 0, %s63
    %s81 = sphi 0, %s81
    %s83 = sphi 0, %s81
    %s84 = sphi 0, %s83
    %s98 = sphi 0, %s84
    %s104 = sphi 0, %s106
    %s107 = sphi 0, %s104
    %s108 = sphi 0, %s107
    %s124 = sphi 0, %s108
    %s128 = sphi 0, %s128
    %s130 = sphi 0, %s128
    %s131 = sphi 0, %s130
    %s145 = sphi 0, %s131
    %s149 = sphi 0, %s149
    %s151 = sphi 0, %s149
    %s152 = sphi 0, %s151
    %s166 = sphi 0, %s152
    %s174 = sphi 0, %s176
    %s177 = sphi 0, %s174
    %s178 = sphi 0, %s177
    %s194 = sphi 0, %s178
  $region4: #{inv_res_block_forward.7} parent=0 // loop_header_branch
    %15 = sbr.rel (%p13) target = $region8
  $region5: #{inv_res_block_forward.7} parent=0 // loop_body
    %s17 = ssub.s32 %s12, 1
    %s18 = ssub.s32 %s12, 2
    %s25 = sadd.s32 1, %s20
    %p26 = scmp.ge.s32.totalorder %s25, 4
    %s27 = scalar_select %p26, 0, %s25
    %s28 = sadd.s32 1, %s19
    %s29 = scalar_select %p26, %s28, %s19
    %p30 = scmp.ge.s32.totalorder %s29, 2
    %s31 = scalar_select %p30, 0, %s29
    %s32 = ssub.s32 %s20, %s27
    %s33 = ssub.s32 %s19, %s31
    %s34 = sor.u32 %s32, %s33
    %p35 = scmp.eq.s32.totalorder %s34, 0
    %s37 = sadd.s32 %s36, 1
    %s38 = scalar_select %p35, %s36, %s37
    %p41 = pneg %p35
    %p42 = scmp.eq.s32.totalorder %s12, 7
    %p43 = por %p41, %p42
    %p44 = scmp.ne.s32.totalorder %s36, %s39
    %p45 = scmp.eq.s32.totalorder %s12, 0
    %p46 = por %p44, %p45
    %p47 = scmp.ne.s32.totalorder %s36, %s39
    %p48 = scmp.eq.s32.totalorder %s17, 7
    %p49 = por %p47, %p48
    %p50 = scmp.ne.s32.totalorder %s39, %s40
    %p51 = scmp.eq.s32.totalorder %s17, 0
    %p52 = por %p50, %p51
    %p53 = scmp.ne.s32.totalorder %s39, %s40
    %p54 = scmp.eq.s32.totalorder %s18, 7
    %p55 = por %p53, %p54
    %p57 = scmp.ne.s32.totalorder %s40, %s56
    %p58 = scmp.eq.s32.totalorder %s18, 0
    %p59 = por %p57, %p58
    %s61 = sadd.s32 %s60, 1
    %p64 = scmp.eq.s32.totalorder %s12, 7
    %p65 = scmp.ne.s32.totalorder %s60, %s62
    %p66 = scmp.eq.s32.totalorder %s12, 0
    %p67 = por %p65, %p66
    %p68 = scmp.ne.s32.totalorder %s60, %s62
    %p69 = scmp.eq.s32.totalorder %s17, 7
    %p70 = por %p68, %p69
    %p71 = scmp.ne.s32.totalorder %s62, %s63
    %p72 = scmp.eq.s32.totalorder %s17, 0
    %p73 = por %p71, %p72
    %p74 = scmp.ne.s32.totalorder %s62, %s63
    %p75 = scmp.eq.s32.totalorder %s18, 7
    %p76 = por %p74, %p75
    %p78 = scmp.ne.s32.totalorder %s63, %s77
    %p79 = scmp.eq.s32.totalorder %s18, 0
    %p80 = por %p78, %p79
    %s82 = sadd.s32 %s81, 1
    %p85 = scmp.eq.s32.totalorder %s12, 7
    %p86 = scmp.ne.s32.totalorder %s81, %s83
    %p87 = scmp.eq.s32.totalorder %s12, 0
    %p88 = por %p86, %p87
    %p89 = scmp.ne.s32.totalorder %s81, %s83
    %p90 = scmp.eq.s32.totalorder %s17, 7
    %p91 = por %p89, %p90
    %p92 = scmp.ne.s32.totalorder %s83, %s84
    %p93 = scmp.eq.s32.totalorder %s17, 0
    %p94 = por %p92, %p93
    %p95 = scmp.ne.s32.totalorder %s83, %s84
    %p96 = scmp.eq.s32.totalorder %s18, 7
    %p97 = por %p95, %p96
    %p99 = scmp.ne.s32.totalorder %s84, %s98
    %p100 = scmp.eq.s32.totalorder %s18, 0
    %p101 = por %p99, %p100
    %s102 = ssub.s32 %s19, %s31
    %p103 = scmp.eq.s32.totalorder %s102, 0
    %s105 = sadd.s32 %s104, 1
    %s106 = scalar_select %p103, %s104, %s105
    %p109 = pneg %p103
    %p110 = scmp.eq.s32.totalorder %s12, 7
    %p111 = por %p109, %p110
    %p112 = scmp.ne.s32.totalorder %s104, %s107
    %p113 = scmp.eq.s32.totalorder %s12, 0
    %p114 = por %p112, %p113
    %p115 = scmp.ne.s32.totalorder %s104, %s107
    %p116 = scmp.eq.s32.totalorder %s17, 7
    %p117 = por %p115, %p116
    %p118 = scmp.ne.s32.totalorder %s107, %s108
    %p119 = scmp.eq.s32.totalorder %s17, 0
    %p120 = por %p118, %p119
    %p121 = scmp.ne.s32.totalorder %s107, %s108
    %p122 = scmp.eq.s32.totalorder %s18, 7
    %p123 = por %p121, %p122
    %p125 = scmp.ne.s32.totalorder %s108, %s124
    %p126 = scmp.eq.s32.totalorder %s18, 0
    %p127 = por %p125, %p126
    %s129 = sadd.s32 %s128, 1
    %p132 = scmp.eq.s32.totalorder %s12, 7
    %p133 = scmp.ne.s32.totalorder %s128, %s130
    %p134 = scmp.eq.s32.totalorder %s12, 0
    %p135 = por %p133, %p134
    %p136 = scmp.ne.s32.totalorder %s128, %s130
    %p137 = scmp.eq.s32.totalorder %s17, 7
    %p138 = por %p136, %p137
    %p139 = scmp.ne.s32.totalorder %s130, %s131
    %p140 = scmp.eq.s32.totalorder %s17, 0
    %p141 = por %p139, %p140
    %p142 = scmp.ne.s32.totalorder %s130, %s131
    %p143 = scmp.eq.s32.totalorder %s18, 7
    %p144 = por %p142, %p143
    %p146 = scmp.ne.s32.totalorder %s131, %s145
    %p147 = scmp.eq.s32.totalorder %s18, 0
    %p148 = por %p146, %p147
    %s150 = sadd.s32 %s149, 1
    %p153 = scmp.eq.s32.totalorder %s12, 7
    %p154 = scmp.ne.s32.totalorder %s149, %s151
    %p155 = scmp.eq.s32.totalorder %s12, 0
    %p156 = por %p154, %p155
    %p157 = scmp.ne.s32.totalorder %s149, %s151
    %p158 = scmp.eq.s32.totalorder %s17, 7
    %p159 = por %p157, %p158
    %p160 = scmp.ne.s32.totalorder %s151, %s152
    %p161 = scmp.eq.s32.totalorder %s17, 0
    %p162 = por %p160, %p161
    %p163 = scmp.ne.s32.totalorder %s151, %s152
    %p164 = scmp.eq.s32.totalorder %s18, 7
    %p165 = por %p163, %p164
    %p167 = scmp.ne.s32.totalorder %s152, %s166
    %p168 = scmp.eq.s32.totalorder %s18, 0
    %p169 = por %p167, %p168
    %s170 = ssub.s32 %s20, %s27
    %s171 = ssub.s32 %s19, %s31
    %s172 = sor.u32 %s170, %s171
    %p173 = scmp.eq.s32.totalorder %s172, 0
    %s175 = sadd.s32 %s174, 1
    %s176 = scalar_select %p173, %s174, %s175
    %p179 = pneg %p173
    %p180 = scmp.eq.s32.totalorder %s12, 7
    %p181 = por %p179, %p180
    %p182 = scmp.ne.s32.totalorder %s174, %s177
    %p183 = scmp.eq.s32.totalorder %s12, 0
    %p184 = por %p182, %p183
    %p185 = scmp.ne.s32.totalorder %s174, %s177
    %p186 = scmp.eq.s32.totalorder %s17, 7
    %p187 = por %p185, %p186
    %p188 = scmp.ne.s32.totalorder %s177, %s178
    %p189 = scmp.eq.s32.totalorder %s17, 0
    %p190 = por %p188, %p189
    %p191 = scmp.ne.s32.totalorder %s177, %s178
    %p192 = scmp.eq.s32.totalorder %s18, 7
    %p193 = por %p191, %p192
    %p195 = scmp.ne.s32.totalorder %s178, %s194
    %p196 = scmp.eq.s32.totalorder %s18, 0
    %p197 = por %p195, %p196
    %p198 = scmp.le.s32.totalorder 1, %s12
    %p199 = scmp.lt.s32.totalorder %s12, 9
    %p200 = pnand %p198, %p199
    %p201 = pneg %p200
    // Predicated region
    $region9: #{inv_res_block_forward.7} parent=5 // pred_check
      _
    $region10: #{inv_res_block_forward.7} parent=5 // pred_check_branch
      %203 = sbr.rel (%p200) target = $region12
    $region11: #{inv_res_block_forward.7} parent=5 // pred_region
      %s204 = ssub.s32 %s12, 1
      // Predicated region
      $region13: #{inv_res_block_forward.7} parent=11 // pred_check
        %p205 = pneg %p73
      $region14: #{inv_res_block_forward.7} parent=11 // pred_check_branch
        %207 = sbr.rel (%p205) target = $region16
      $region15: #{inv_res_block_forward.7} parent=11 // pred_region
        _
      $region16: #{inv_res_block_forward.7} parent=11 // pred_fallthru
        _
      // Predicated region
      $region17: #{inv_res_block_forward.7} parent=11 // pred_check
        %p208 = pneg %p94
      $region18: #{inv_res_block_forward.7} parent=11 // pred_check_branch
        %210 = sbr.rel (%p208) target = $region20
      $region19: #{inv_res_block_forward.7} parent=11 // pred_region
        _
      $region20: #{inv_res_block_forward.7} parent=11 // pred_fallthru
        _
      // Predicated region
      $region21: #{inv_res_block_forward.7} parent=11 // pred_check
        %p211 = pneg %p141
      $region22: #{inv_res_block_forward.7} parent=11 // pred_check_branch
        %213 = sbr.rel (%p211) target = $region24
      $region23: #{inv_res_block_forward.7} parent=11 // pred_region
        _
      $region24: #{inv_res_block_forward.7} parent=11 // pred_fallthru
        _
      // Predicated region
      $region25: #{inv_res_block_forward.7} parent=11 // pred_check
        %p214 = pneg %p162
      $region26: #{inv_res_block_forward.7} parent=11 // pred_check_branch
        %216 = sbr.rel (%p214) target = $region28
      $region27: #{inv_res_block_forward.7} parent=11 // pred_region
        _
      $region28: #{inv_res_block_forward.7} parent=11 // pred_fallthru
        _
    $region12: #{inv_res_block_forward.7} parent=5 // pred_fallthru
      _
    %p217 = scmp.lt.s32.totalorder %s12, 8
    // Predicated region
    $region29: #{inv_res_block_forward.7} parent=5 // pred_check
      %p218 = pneg %p217
    $region30: #{inv_res_block_forward.7} parent=5 // pred_check_branch
      %220 = sbr.rel (%p218) target = $region32
    $region31: #{inv_res_block_forward.7} parent=5 // pred_region
      // Predicated region
      $region33: #{inv_res_block_forward.7} parent=31 // pred_check
        %p221 = pneg %p46
      $region34: #{inv_res_block_forward.7} parent=31 // pred_check_branch
        %223 = sbr.rel (%p221) target = $region36
      $region35: #{inv_res_block_forward.7} parent=31 // pred_region
        %p224 = scmp.lt.s32.totalorder %s20, 3
        %s225 = scalar_select %p224, %s20, 3
        %p226 = scmp.lt.s32.totalorder %s19, 1
        %s227 = scalar_select %p226, %s19, 1
        %s228 = smul.addr %s227, 8
        %s229 = smul.addr %s225, 16
        %s230 = sadd.s32 %s228, %s229
        %s231 = smul.addr %s230, 8
        %s232 = scalar_lea.vmem %s0, %s231
      $region36: #{inv_res_block_forward.7} parent=31 // pred_fallthru
        _
      // Predicated region
      $region37: #{inv_res_block_forward.7} parent=31 // pred_check
        %p233 = pneg %p114
      $region38: #{inv_res_block_forward.7} parent=31 // pred_check_branch
        %235 = sbr.rel (%p233) target = $region40
      $region39: #{inv_res_block_forward.7} parent=31 // pred_region
        %p236 = scmp.lt.s32.totalorder %s19, 1
        %s237 = scalar_select %p236, %s19, 1
        %s238 = smul.addr %s237, 8
        %s239 = smul.addr %s238, 4
        %s240 = scalar_lea.vmem %s3, %s239
      $region40: #{inv_res_block_forward.7} parent=31 // pred_fallthru
        _
    $region32: #{inv_res_block_forward.7} parent=5 // pred_fallthru
      _
    %p241 = scmp.le.s32.totalorder 1, %s12
    %p242 = scmp.lt.s32.totalorder %s12, 9
    %p243 = pnand %p241, %p242
    %p244 = pneg %p243
    // Predicated region
    $region41: #{inv_res_block_forward.7} parent=5 // pred_check
      _
    $region42: #{inv_res_block_forward.7} parent=5 // pred_check_branch
      %246 = sbr.rel (%p243) target = $region44
    $region43: #{inv_res_block_forward.7} parent=5 // pred_region
      %s247 = ssub.s32 %s12, 1
      %p248 = scmp.lt.s32.totalorder %s22, 3
      %s249 = scalar_select %p248, %s22, 3
      %p250 = scmp.lt.s32.totalorder %s21, 1
      %s251 = scalar_select %p250, %s21, 1
      %s252 = smul.addr %s251, 8
      %s253 = smul.addr %s249, 16
      %s254 = sadd.s32 %s252, %s253
      %s255 = smul.addr %s254, 8
      %s256 = scalar_lea.vmem %s0, %s255
      %p257 = pneg %p52
      %p258 = pneg %p49
      %p259 = pneg %p73
      %p260 = pneg %p70
      %p261 = pneg %p94
      %p262 = pneg %p91
      %p263 = scmp.lt.s32.totalorder %s21, 1
      %s264 = scalar_select %p263, %s21, 1
      %s265 = smul.addr %s264, 8
      %s266 = smul.addr %s265, 4
      %s267 = scalar_lea.vmem %s3, %s266
      %p268 = pneg %p120
      %p269 = pneg %p117
      %p270 = pneg %p141
      %p271 = pneg %p138
      %p272 = pneg %p162
      %p273 = pneg %p159
      %p274 = pneg %p190
      %p275 = pneg %p187
      %p276 = scmp.lt.s32.totalorder %s22, 3
      %s277 = scalar_select %p276, %s22, 3
      %p278 = scmp.lt.s32.totalorder %s21, 1
      %s279 = scalar_select %p278, %s21, 1
      %s280 = smul.addr %s279, 8
      %s281 = smul.addr %s277, 16
      %s282 = sadd.s32 %s280, %s281
      %s283 = smul.addr %s282, 8
      %s284 = scalar_lea.vmem %s6, %s283
      %p285 = scmp.lt.s32.totalorder %s22, 3
      %s286 = scalar_select %p285, %s22, 3
      %p287 = scmp.lt.s32.totalorder %s21, 1
      %s288 = scalar_select %p287, %s21, 1
      %s289 = smul.addr %s288, 8
      %s290 = smul.addr %s286, 16
      %s291 = sadd.s32 %s289, %s290
      %s292 = smul.addr %s291, 8
      %s293 = scalar_lea.vmem %s0, %s292
      %p294 = scmp.lt.s32.totalorder %s21, 1
      %s295 = scalar_select %p294, %s21, 1
      %s296 = smul.addr %s295, 8
      %s297 = smul.addr %s296, 4
      %s298 = scalar_lea.vmem %s3, %s297
      %p299 = scmp.lt.s32.totalorder %s22, 3
      %s300 = scalar_select %p299, %s22, 3
      %p301 = scmp.lt.s32.totalorder %s21, 1
      %s302 = scalar_select %p301, %s21, 1
      %s303 = smul.addr %s302, 8
      %s304 = smul.addr %s300, 16
      %s305 = sadd.s32 %s303, %s304
      %s306 = smul.addr %s305, 8
      %s307 = scalar_lea.vmem %s6, %s306
      %v309 = vld [vmem:[%s293] sm:$0xff]
      %v310 = vld [vmem:[%s293 + $0x8] sm:$0xff]
      %v311 = vld [vmem:[%s293 + $0x10] sm:$0xff]
      %v312 = vld [vmem:[%s293 + $0x18] sm:$0xff]
      %v313 = vld [vmem:[%s293 + $0x20] sm:$0xff]
      %v314 = vld [vmem:[%s293 + $0x28] sm:$0xff]
      %v315 = vld [vmem:[%s293 + $0x30] sm:$0xff]
      %v316 = vld [vmem:[%s293 + $0x38] sm:$0xff]
      %v317 = vld [vmem:[%s1] sm:$0x1]
      %v319 = vlaneseq
      %v320 = vshrl.u32 %v319, 7
      %v321 = vsub.s32 0, %v320
      %v322 = vrot.slane %v317, %v321
      %v324 = vmul.f32 %v309, %v322
      %v325 = vmul.f32 %v310, %v322
      %v326 = vmul.f32 %v311, %v322
      %v327 = vmul.f32 %v312, %v322
      %v328 = vmul.f32 %v313, %v322
      %v329 = vmul.f32 %v314, %v322
      %v330 = vmul.f32 %v315, %v322
      %v331 = vmul.f32 %v316, %v322
      %v332 = vld [vmem:[%s2] sm:$0x1]
      %v334 = vlaneseq
      %v335 = vshrl.u32 %v334, 7
      %v336 = vsub.s32 0, %v335
      %v337 = vrot.slane %v332, %v336
      %v339 = vadd.f32 %v324, %v337
      %v340 = vadd.f32 %v325, %v337
      %v341 = vadd.f32 %v326, %v337
      %v342 = vadd.f32 %v327, %v337
      %v343 = vadd.f32 %v328, %v337
      %v344 = vadd.f32 %v329, %v337
      %v345 = vadd.f32 %v330, %v337
      %v346 = vadd.f32 %v331, %v337
      %v347 = vmax.f32 %v339, 0.0
      %v348 = vmax.f32 %v340, 0.0
      %v349 = vmax.f32 %v341, 0.0
      %v350 = vmax.f32 %v342, 0.0
      %v351 = vmax.f32 %v343, 0.0
      %v352 = vmax.f32 %v344, 0.0
      %v353 = vmax.f32 %v345, 0.0
      %v354 = vmax.f32 %v346, 0.0
      %v355 = vld [vmem:[%s5] sm:$0x1]
      %v357 = vlaneseq
      %v358 = vshrl.u32 %v357, 7
      %v359 = vsub.s32 0, %v358
      %v360 = vrot.slane %v355, %v359
      %v362 = vadd.f32 %v347, %v360
      %v363 = vadd.f32 %v348, %v360
      %v364 = vadd.f32 %v349, %v360
      %v365 = vadd.f32 %v350, %v360
      %v366 = vadd.f32 %v351, %v360
      %v367 = vadd.f32 %v352, %v360
      %v368 = vadd.f32 %v353, %v360
      %v369 = vadd.f32 %v354, %v360
      %v370 = vmax.f32 %v362, 0.0
      %v371 = vmax.f32 %v363, 0.0
      %v372 = vmax.f32 %v364, 0.0
      %v373 = vmax.f32 %v365, 0.0
      %v374 = vmax.f32 %v366, 0.0
      %v375 = vmax.f32 %v367, 0.0
      %v376 = vmax.f32 %v368, 0.0
      %v377 = vmax.f32 %v369, 0.0
      %378 = vst [vmem:[%s307] sm:$0xff] %v370
      %379 = vst [vmem:[%s307 + $0x8] sm:$0xff] %v371
      %380 = vst [vmem:[%s307 + $0x10] sm:$0xff] %v372
      %381 = vst [vmem:[%s307 + $0x18] sm:$0xff] %v373
      %382 = vst [vmem:[%s307 + $0x20] sm:$0xff] %v374
      %383 = vst [vmem:[%s307 + $0x28] sm:$0xff] %v375
      %384 = vst [vmem:[%s307 + $0x30] sm:$0xff] %v376
      %385 = vst [vmem:[%s307 + $0x38] sm:$0xff] %v377
      %p386 = scmp.eq.s32.totalorder %s22, 0
      // Predicated region
      $region45: #{inv_res_block_forward.7} parent=43 // pred_check
        %p387 = pneg %p386
      $region46: #{inv_res_block_forward.7} parent=43 // pred_check_branch
        %389 = sbr.rel (%p387) target = $region48
      $region47: #{inv_res_block_forward.7} parent=43 // pred_region
        %v390 = vld [vmem:[%s298] sm:$0xf]
        %v391 = vld [vmem:[%s298 + $0x4] sm:$0xf]
        %v392 = vld [vmem:[%s298 + $0x8] sm:$0xf]
        %v393 = vld [vmem:[%s298 + $0xc] sm:$0xf]
        %v394 = vld [vmem:[%s298 + $0x10] sm:$0xf]
        %v395 = vld [vmem:[%s298 + $0x14] sm:$0xf]
        %v396 = vld [vmem:[%s298 + $0x18] sm:$0xf]
        %v397 = vld [vmem:[%s298 + $0x1c] sm:$0xf]
        %v398 = vld [vmem:[%s4] sm:$0xf]
        %v399 = vld [vmem:[%s4 + $0x4] sm:$0xf]
        %v400 = vld [vmem:[%s4 + $0x8] sm:$0xf]
        %v401 = vld [vmem:[%s4 + $0xc] sm:$0xf]
        %v402 = vld [vmem:[%s4 + $0x10] sm:$0xf]
        %v403 = vld [vmem:[%s4 + $0x14] sm:$0xf]
        %v404 = vld [vmem:[%s4 + $0x18] sm:$0xf]
        %v405 = vld [vmem:[%s4 + $0x1c] sm:$0xf]
        %v406 = vld [vmem:[%s4 + $0x20] sm:$0xf]
        %v407 = vld [vmem:[%s4 + $0x24] sm:$0xf]
        %v408 = vld [vmem:[%s4 + $0x28] sm:$0xf]
        %v409 = vld [vmem:[%s4 + $0x2c] sm:$0xf]
        %v410 = vld [vmem:[%s4 + $0x30] sm:$0xf]
        %v411 = vld [vmem:[%s4 + $0x34] sm:$0xf]
        %v412 = vld [vmem:[%s4 + $0x38] sm:$0xf]
        %v413 = vld [vmem:[%s4 + $0x3c] sm:$0xf]
        %v422 = vunpack.c.l.b16 %v390
        %v423 = vunpack.c.l.b16 %v391
        %v424 = vunpack.c.l.b16 %v392
        %v425 = vunpack.c.l.b16 %v393
        %v426 = vunpack.c.l.b16 %v394
        %v427 = vunpack.c.l.b16 %v395
        %v428 = vunpack.c.l.b16 %v396
        %v429 = vunpack.c.l.b16 %v397
        %v430 = vpack.c.b16 %v423, %v422
        %v431 = vpack.c.b16 %v425, %v424
        %v432 = vpack.c.b16 %v427, %v426
        %v433 = vpack.c.b16 %v429, %v428
        %v454 = vunpack.c.l.b16 %v398
        %v455 = vunpack.c.l.b16 %v399
        %v456 = vunpack.c.l.b16 %v400
        %v457 = vunpack.c.l.b16 %v401
        %v458 = vunpack.c.l.b16 %v402
        %v459 = vunpack.c.l.b16 %v403
        %v460 = vunpack.c.l.b16 %v404
        %v461 = vunpack.c.l.b16 %v405
        %v462 = vunpack.c.l.b16 %v406
        %v463 = vunpack.c.l.b16 %v407
        %v464 = vunpack.c.l.b16 %v408
        %v465 = vunpack.c.l.b16 %v409
        %v466 = vunpack.c.l.b16 %v410
        %v467 = vunpack.c.l.b16 %v411
        %v468 = vunpack.c.l.b16 %v412
        %v469 = vunpack.c.l.b16 %v413
        %v470 = vpack.c.b16 %v455, %v454
        %v471 = vpack.c.b16 %v457, %v456
        %v472 = vpack.c.b16 %v459, %v458
        %v473 = vpack.c.b16 %v461, %v460
        %v474 = vpack.c.b16 %v463, %v462
        %v475 = vpack.c.b16 %v465, %v464
        %v476 = vpack.c.b16 %v467, %v466
        %v477 = vpack.c.b16 %v469, %v468
        %486 = vmatprep.subr.bf16.mxu0 0
        %487 = vmatpush1.bf16.msra.mxu0 %v470
        %488 = vmatprep.subr.bf16.mxu0 0
        %489 = vmatpush1.bf16.msra.mxu0 %v471
        %490 = vmatprep.subr.bf16.mxu0 0
        %491 = vmatpush1.bf16.msra.mxu0 %v472
        %492 = vmatprep.subr.bf16.mxu0 0
        %493 = vmatpush1.bf16.msra.mxu0 %v473
        %494 = vmatprep.subr.bf16.mxu0 0
        %495 = vmatpush1.bf16.msra.mxu0 %v474
        %496 = vmatprep.subr.bf16.mxu0 0
        %497 = vmatpush1.bf16.msra.mxu0 %v475
        %498 = vmatprep.subr.bf16.mxu0 0
        %499 = vmatpush1.bf16.msra.mxu0 %v476
        %500 = vmatprep.subr.bf16.mxu0 0
        %501 = vmatpush1.bf16.msra.mxu0 %v477
        %502 = vmatprep.subr.bf16.mxu0 0
        %503 = vmatpush1.bf16.msra.mxu0 0
        %504 = vmatprep.subr.bf16.mxu0 0
        %505 = vmatpush1.bf16.msra.mxu0 0
        %506 = vmatprep.subr.bf16.mxu0 0
        %507 = vmatpush1.bf16.msra.mxu0 0
        %508 = vmatprep.subr.bf16.mxu0 0
        %509 = vmatpush1.bf16.msra.mxu0 0
        %510 = vmatprep.subr.bf16.mxu0 0
        %511 = vmatpush1.bf16.msra.mxu0 0
        %512 = vmatprep.subr.bf16.mxu0 0
        %513 = vmatpush1.bf16.msra.mxu0 0
        %514 = vmatprep.subr.bf16.mxu0 0
        %515 = vmatpush1.bf16.msra.mxu0 0
        %516 = vmatprep.subr.bf16.mxu0 0
        %517 = vmatpush1.bf16.msra.mxu0 0
        %518 = vmatprep.mubr.bf16.mxu0 0
        %519 = vmatmul.mubr.bf16.gmra.mrb[0].mxu0 %v430
        %v520 = vpop.f32.mrb[0].mxu0
        %v521 = vadd.f32 0.0, %v520
        %v522 = vpop.f32.mrb[0].mxu0
        %v523 = vpop.f32.mrb[0].mxu0
        %v524 = vadd.f32 0.0, %v523
        %v525 = vpop.f32.mrb[0].mxu0
        %526 = vmatprep.mubr.bf16.mxu0 0
        %527 = vmatmul.mubr.bf16.gmra.mrb[0].mxu0 %v431
        %v528 = vpop.f32.mrb[0].mxu0
        %v529 = vadd.f32 0.0, %v528
        %v530 = vpop.f32.mrb[0].mxu0
        %v531 = vpop.f32.mrb[0].mxu0
        %v532 = vadd.f32 0.0, %v531
        %v533 = vpop.f32.mrb[0].mxu0
        %534 = vmatprep.mubr.bf16.mxu0 0
        %535 = vmatmul.mubr.bf16.gmra.mrb[0].mxu0 %v432
        %v536 = vpop.f32.mrb[0].mxu0
        %v537 = vadd.f32 0.0, %v536
        %v538 = vpop.f32.mrb[0].mxu0
        %v539 = vpop.f32.mrb[0].mxu0
        %v540 = vadd.f32 0.0, %v539
        %v541 = vpop.f32.mrb[0].mxu0
        %542 = vmatprep.mubr.bf16.mxu0 0
        %543 = vmatmul.mubr.bf16.gmra.mrb[0].mxu0 %v433
        %v544 = vpop.f32.mrb[0].mxu0
        %v545 = vadd.f32 0.0, %v544
        %v546 = vpop.f32.mrb[0].mxu0
        %v547 = vpop.f32.mrb[0].mxu0
        %v548 = vadd.f32 0.0, %v547
        %v549 = vpop.f32.mrb[0].mxu0
        %550 = vdwg.mxu0
        %v551 = vadd.f32 %v347, %v521
        %v552 = vadd.f32 %v348, %v524
        %v553 = vadd.f32 %v349, %v529
        %v554 = vadd.f32 %v350, %v532
        %v555 = vadd.f32 %v351, %v537
        %v556 = vadd.f32 %v352, %v540
        %v557 = vadd.f32 %v353, %v545
        %v558 = vadd.f32 %v354, %v548
        %v559 = vld [vmem:[%s5] sm:$0x1]
        %v561 = vlaneseq
        %v562 = vshrl.u32 %v561, 7
        %v563 = vsub.s32 0, %v562
        %v564 = vrot.slane %v559, %v563
        %v566 = vadd.f32 %v551, %v564
        %v567 = vadd.f32 %v552, %v564
        %v568 = vadd.f32 %v553, %v564
        %v569 = vadd.f32 %v554, %v564
        %v570 = vadd.f32 %v555, %v564
        %v571 = vadd.f32 %v556, %v564
        %v572 = vadd.f32 %v557, %v564
        %v573 = vadd.f32 %v558, %v564
        %v574 = vmax.f32 %v566, 0.0
        %v575 = vmax.f32 %v567, 0.0
        %v576 = vmax.f32 %v568, 0.0
        %v577 = vmax.f32 %v569, 0.0
        %v578 = vmax.f32 %v570, 0.0
        %v579 = vmax.f32 %v571, 0.0
        %v580 = vmax.f32 %v572, 0.0
        %v581 = vmax.f32 %v573, 0.0
        %582 = vst [vmem:[%s307] sm:$0xff] %v574
        %583 = vst [vmem:[%s307 + $0x8] sm:$0xff] %v575
        %584 = vst [vmem:[%s307 + $0x10] sm:$0xff] %v576
        %585 = vst [vmem:[%s307 + $0x18] sm:$0xff] %v577
        %586 = vst [vmem:[%s307 + $0x20] sm:$0xff] %v578
        %587 = vst [vmem:[%s307 + $0x28] sm:$0xff] %v579
        %588 = vst [vmem:[%s307 + $0x30] sm:$0xff] %v580
        %589 = vst [vmem:[%s307 + $0x38] sm:$0xff] %v581
      $region48: #{inv_res_block_forward.7} parent=43 // pred_fallthru
        _
      %p590 = scmp.lt.s32.totalorder %s22, 3
      %s591 = scalar_select %p590, %s22, 3
      %p592 = scmp.lt.s32.totalorder %s21, 1
      %s593 = scalar_select %p592, %s21, 1
      %s594 = smul.addr %s593, 8
      %s595 = smul.addr %s591, 16
      %s596 = sadd.s32 %s594, %s595
      %s597 = smul.addr %s596, 8
      %s598 = scalar_lea.vmem %s6, %s597
      // Predicated region
      $region49: #{inv_res_block_forward.7} parent=43 // pred_check
        %p599 = pneg %p187
      $region50: #{inv_res_block_forward.7} parent=43 // pred_check_branch
        %601 = sbr.rel (%p599) target = $region52
      $region51: #{inv_res_block_forward.7} parent=43 // pred_region
        _
      $region52: #{inv_res_block_forward.7} parent=43 // pred_fallthru
        _
    $region44: #{inv_res_block_forward.7} parent=5 // pred_fallthru
      _
    %p602 = scmp.le.s32.totalorder 2, %s12
    // Predicated region
    $region53: #{inv_res_block_forward.7} parent=5 // pred_check
      %p603 = pneg %p602
    $region54: #{inv_res_block_forward.7} parent=5 // pred_check_branch
      %605 = sbr.rel (%p603) target = $region56
    $region55: #{inv_res_block_forward.7} parent=5 // pred_region
      %s606 = ssub.s32 %s12, 2
      // Predicated region
      $region57: #{inv_res_block_forward.7} parent=55 // pred_check
        %p607 = pneg %p193
      $region58: #{inv_res_block_forward.7} parent=55 // pred_check_branch
        %609 = sbr.rel (%p607) target = $region60
      $region59: #{inv_res_block_forward.7} parent=55 // pred_region
        %p610 = scmp.lt.s32.totalorder %s24, 3
        %s611 = scalar_select %p610, %s24, 3
        %p612 = scmp.lt.s32.totalorder %s23, 1
        %s613 = scalar_select %p612, %s23, 1
        %s614 = smul.addr %s613, 8
        %s615 = smul.addr %s611, 16
        %s616 = sadd.s32 %s614, %s615
        %s617 = smul.addr %s616, 8
        %s618 = scalar_lea.vmem %s6, %s617
      $region60: #{inv_res_block_forward.7} parent=55 // pred_fallthru
        _
    $region56: #{inv_res_block_forward.7} parent=5 // pred_fallthru
      _
  $region6: #{inv_res_block_forward.7} parent=0 // loop_footer
    %s16 = sadd.s32 1, %s12
  $region7: #{inv_res_block_forward.7} parent=0 // loop_footer_branch
    %11 = sbr.rel target = $region3
  $region8: #{inv_res_block_forward.7} parent=0 // loop_exit
    _

</llo_original>
